<compile_context>
chip_gen: v6e
topology: v6e:2x2x1
jax: 0.10.0
libtpu: 0.0.40
codegen_flags: <defaults>
</compile_context>

<pallas_src>
import functools

import jax
import jax.numpy as jnp
from jax import lax
from jax.experimental import pallas as pl
from jax.experimental.pallas import tpu as pltpu


def _round_up(x, m):
    return (x + m - 1) // m * m


def _bigru_scan_kernel(gi_f_ref, gi_b_ref, wh_ref, bhn_ref, out_ref, h_ref, *,
                       tt, t_total, t_pad, hp, unroll):
    """One grid step = `tt` GRU time steps of BOTH directions (interleaved).

    gi_f_ref : (tt, B, 3hp)  forward gi stream  (time block  tb,      fw cols)
    gi_b_ref : (tt, B, 3hp)  backward gi stream (time block NT-1-tb,  bw cols)
    wh_ref   : (2, hp, 3hp)  recurrent weights [fw, bw], gate order (r, z, n)
    bhn_ref  : (2, 1, hp)    b_hh of the "n" gate (must stay inside r*(...))
    out_ref  : (2, B, hp)    final hidden states [fw, bw]
    h_ref    : (2, B, hp)    f32 scratch carrying both recurrences across blocks
    """
    tb = pl.program_id(0)

    @pl.when(tb == 0)
    def _():
        h_ref[...] = jnp.zeros_like(h_ref)

    b = h_ref.shape[1]
    wh_f = wh_ref[0]                                   # (hp, 3hp) compute dtype
    wh_b = wh_ref[1]
    # Hoisted out of the (partially unrolled) loop: JAX does not CSE
    # broadcast_in_dim, so doing this per step would emit `tt` broadcasts.
    bhn_f = jnp.broadcast_to(bhn_ref[0].astype(jnp.float32), (b, hp))
    bhn_b = jnp.broadcast_to(bhn_ref[1].astype(jnp.float32), (b, hp))

    pad = t_pad - t_total                              # static int

    def gru_step(gi, h, wh, bhn):
        gh = jnp.dot(h.astype(wh.dtype), wh,
                     preferred_element_type=jnp.float32)          # (B, 3hp)
        # Single fused sigmoid over the contiguous (B, 2hp) r/z slice (halves
        # EUP pushes on the serialized per-step chain); the r/z split at the
        # 128-lane boundary afterwards is free.
        rz = jax.nn.sigmoid(gi[:, :2 * hp] + gh[:, :2 * hp])
        r = rz[:, :hp]
        z = rz[:, hp:]
        n = jnp.tanh(gi[:, 2 * hp:] + r * (gh[:, 2 * hp:] + bhn))
        return n + z * (h - n)            # == (1-z)*n + z*h, one fewer VPU mul

    def step(j, carry):
        h_f, h_b = carry
        # --- forward: global time index = tb*tt + j.
        gi_f = gi_f_ref[j].astype(jnp.float32)
        hf_new = gru_step(gi_f, h_f, wh_f, bhn_f)
        # --- backward: the index_map already fetched block NT-1-tb; reading
        #     in-block row tt-1-j makes this step tb*tt+j of a reversed scan
        #     over the (virtually) zero-padded time axis of length t_pad.
        gi_b = gi_b_ref[tt - 1 - j].astype(jnp.float32)
        hb_new = gru_step(gi_b, h_b, wh_b, bhn_b)
        if pad:  # static: only emit masks when T % tt != 0
            s = tb * tt + j
            # forward tail: steps past the real sequence end are skipped.
            hf_new = jnp.where(s < t_total, hf_new, h_f)
            # backward head: the first `pad` reversed steps map past the end
            # of real time (ragged last block) and are skipped (h stays 0).
            hb_new = jnp.where(s >= pad, hb_new, h_b)
        return hf_new, hb_new

    h_f, h_b = lax.fori_loop(0, tt, step, (h_ref[0], h_ref[1]), unroll=unroll)
    h_ref[0] = h_f
    h_ref[1] = h_b

    @pl.when(tb == pl.num_programs(0) - 1)
    def _():
        out_ref[...] = h_ref[...].astype(out_ref.dtype)


def bigru_pallas(x_btd, params, *, compute_dtype=jnp.bfloat16, time_block=64,
                 unroll=8):
    """x_btd: (B, T, D) float32. Returns (B, 2H) float32."""
    B, T, D = x_btd.shape
    H = params["w_hh_fw"].shape[1]          # w_hh is (3H, H) -> hidden dim
    assert params["w_hh_fw"].shape[0] == 3 * H
    HP = _round_up(H, 128)                  # lane-aligned hidden dim

    def pad_gates_last(a):
        # (..., 3H) -> (..., 3HP): zero-pad each gate chunk's last dim to HP.
        parts = []
        for g in range(3):
            p = a[..., g * H:(g + 1) * H]
            parts.append(jnp.pad(p, [(0, 0)] * (a.ndim - 1) + [(0, HP - H)]))
        return jnp.concatenate(parts, axis=-1)

    def prep_direction(w_ih, w_hh, b_ih, b_hh):
        wi = pad_gates_last(w_ih.T)                                  # (D, 3HP)
        wh = pad_gates_last(jnp.pad(w_hh.T, ((0, HP - H), (0, 0))))  # (HP, 3HP)
        # Fold b_ih (all gates) + b_hh (r,z gates) into the pre-GEMM bias;
        # b_hh of the n gate must remain inside r*(...) per GRUCell semantics.
        b_hh_rz = jnp.concatenate([b_hh[:2 * H], jnp.zeros((H,), b_hh.dtype)])
        b_pre = pad_gates_last((b_ih + b_hh_rz)[None, :])            # (1, 3HP)
        b_hn = jnp.pad(b_hh[2 * H:], (0, HP - H))[None, :]           # (1, HP)
        return wi, wh, b_pre, b_hn

    wi_f, wh_f, bpre_f, bhn_f = prep_direction(
        params["w_ih_fw"], params["w_hh_fw"], params["b_ih_fw"], params["b_hh_fw"])
    wi_b, wh_b, bpre_b, bhn_b = prep_direction(
        params["w_ih_bw"], params["w_hh_bw"], params["b_ih_bw"], params["b_hh_bw"])

    # ---- Phase 1: ONE fused input-projection GEMM for both directions.
    x_flat = jnp.transpose(x_btd, (1, 0, 2)).reshape(T * B, D).astype(compute_dtype)
    wi_cat = jnp.concatenate([wi_f, wi_b], axis=1).astype(compute_dtype)  # (D, 6HP)
    b_cat = jnp.concatenate([bpre_f, bpre_b], axis=1)                     # (1, 6HP)
    gi = jnp.dot(x_flat, wi_cat, preferred_element_type=jnp.float32) + b_cat
    gi = gi.astype(compute_dtype).reshape(T, B, 6 * HP)
    # gi is written once; no reverse / pad / stack HBM round-trips.

    wh = jnp.stack([wh_f, wh_b]).astype(compute_dtype)      # (2, HP, 3HP)
    bhn = jnp.stack([bhn_f, bhn_b]).astype(jnp.float32)     # (2, 1, HP)

    # ---- VMEM-aware time-block sizing (respects v7x's smaller per-TC VMEM).
    try:
        vmem_cap = int(pltpu.get_tpu_info().vmem_capacity_bytes)
        if not (16 * 2**20 <= vmem_cap <= 256 * 2**20):
            vmem_cap = 64 * 2**20
    except Exception:
        vmem_cap = 64 * 2**20               # conservative fallback (v7x per-TC)
    cd = jnp.dtype(compute_dtype).itemsize
    fixed = (2 * 2 * HP * 3 * HP * cd       # wh (conservatively x2 buffers)
             + 2 * 2 * HP * 4               # bhn
             + 2 * 2 * B * HP * 4           # out block
             + 2 * B * HP * 4)              # scratch h
    per_tt = 2 * 2 * B * 3 * HP * cd        # 2 gi streams x double-buffered
    budget = int(0.70 * vmem_cap)
    tt_cap = max(1, (budget - fixed - (4 << 20)) // per_tt)
    TT = int(max(1, min(time_block, T, tt_cap)))
    NT = int(pl.cdiv(T, TT))
    T_PAD = NT * TT

    footprint = fixed + per_tt * TT
    vmem_limit = int(max(32 * 2**20,
                         min(int(0.85 * vmem_cap), footprint + (8 << 20))))

    kernel = functools.partial(
        _bigru_scan_kernel, tt=TT, t_total=T, t_pad=T_PAD, hp=HP,
        unroll=max(1, min(unroll, TT)))

    out = pl.pallas_call(
        kernel,
        out_shape=jax.ShapeDtypeStruct((2, B, HP), jnp.float32),
        grid_spec=pltpu.PrefetchScalarGridSpec(
            num_scalar_prefetch=0,
            grid=(NT,),                      # time blocks (true recurrence)
            in_specs=[
                # forward gi stream: time block tb, forward half of last dim.
                pl.BlockSpec((TT, B, 3 * HP), lambda t: (t, 0, 0)),
                # backward gi stream: reversed time blocks, backward half.
                pl.BlockSpec((TT, B, 3 * HP), lambda t: (NT - 1 - t, 0, 1)),
                pl.BlockSpec((2, HP, 3 * HP), lambda t: (0, 0, 0)),
                pl.BlockSpec((2, 1, HP), lambda t: (0, 0, 0)),
            ],
            out_specs=pl.BlockSpec((2, B, HP), lambda t: (0, 0, 0)),
            scratch_shapes=[pltpu.VMEM((2, B, HP), jnp.float32)],
        ),
        compiler_params=pltpu.CompilerParams(
            dimension_semantics=("arbitrary",),
            vmem_limit_bytes=vmem_limit,
        ),
    )(gi, gi, wh, bhn)

    # Lane-dense (2, B, HP) output; slice off the hidden padding here.
    return jnp.concatenate([out[0, :, :H], out[1, :, :H]], axis=1)


# ----------------------------- pure-JAX reference -----------------------------
def _gru_cell_ref(x, h, w_ih, w_hh, b_ih, b_hh):
    H = h.shape[-1]
    gi = x @ w_ih.T + b_ih
    gh = h @ w_hh.T + b_hh
    r = jax.nn.sigmoid(gi[:, :H] + gh[:, :H])
    z = jax.nn.sigmoid(gi[:, H:2 * H] + gh[:, H:2 * H])
    n = jnp.tanh(gi[:, 2 * H:] + r * gh[:, 2 * H:])
    return (1.0 - z) * n + z * h


def bigru_ref(x_btd, params):
    B, T, D = x_btd.shape
    H = params["w_hh_fw"].shape[1]
    h1 = jnp.zeros((B, H), jnp.float32)
    for i in range(T):
        h1 = _gru_cell_ref(x_btd[:, i], h1, params["w_ih_fw"],
                           params["w_hh_fw"], params["b_ih_fw"],
                           params["b_hh_fw"])
    h2 = jnp.zeros((B, H), jnp.float32)
    for i in reversed(range(T)):
        h2 = _gru_cell_ref(x_btd[:, i], h2, params["w_ih_bw"],
                           params["w_hh_bw"], params["b_ih_bw"],
                           params["b_hh_bw"])
    return jnp.concatenate([h1, h2], axis=1)


def init_params(key, input_dim, hidden_dim):
    # Deterministic init mirroring nn.GRUCell: U(-1/sqrt(H), 1/sqrt(H)).
    k = 1.0 / jnp.sqrt(jnp.float32(hidden_dim))
    keys = jax.random.split(key, 8)
    u = lambda kk, shape: jax.random.uniform(kk, shape, jnp.float32, -k, k)
    return {
        "w_ih_fw": u(keys[0], (3 * hidden_dim, input_dim)),
        "w_hh_fw": u(keys[1], (3 * hidden_dim, hidden_dim)),
        "b_ih_fw": u(keys[2], (3 * hidden_dim,)),
        "b_hh_fw": u(keys[3], (3 * hidden_dim,)),
        "w_ih_bw": u(keys[4], (3 * hidden_dim, input_dim)),
        "w_hh_bw": u(keys[5], (3 * hidden_dim, hidden_dim)),
        "b_ih_bw": u(keys[6], (3 * hidden_dim,)),
        "b_hh_bw": u(keys[7], (3 * hidden_dim,)),
    }


if __name__ == "__main__":
    B, T, D, H = 2, 8, 16, 32
    key = jax.random.PRNGKey(0)
    kx, kp = jax.random.split(key)
    x = jax.random.normal(kx, (B, T, D), jnp.float32)
    params = init_params(kp, D, H)

    ref = bigru_ref(x, params)

    # f32 path: exact-semantics check of the kernel recurrence (single block).
    out_f32 = jax.block_until_ready(
        bigru_pallas(x, params, compute_dtype=jnp.float32))
    assert out_f32.shape == (B, 2 * H)
    assert jnp.allclose(out_f32, ref, atol=1e-4, rtol=1e-4), (
        float(jnp.max(jnp.abs(out_f32 - ref))))

    # Multi-time-block path (T % TT != 0 -> exercises the forward tail mask,
    # the backward head mask, and the reversed-block index_map).
    out_blk = jax.block_until_ready(
        bigru_pallas(x, params, compute_dtype=jnp.float32, time_block=3,
                     unroll=2))
    assert jnp.allclose(out_blk, ref, atol=1e-4, rtol=1e-4), (
        float(jnp.max(jnp.abs(out_blk - ref))))

    # bf16 fast path (MXU-native weights / gi stream, f32 gate math).
    out_bf16 = jax.block_until_ready(
        bigru_pallas(x, params, compute_dtype=jnp.bfloat16))
    assert jnp.allclose(out_bf16, ref, atol=3e-2, rtol=3e-2), (
        float(jnp.max(jnp.abs(out_bf16 - ref))))

    print("KERNEL_OK")
</pallas_src>

<mosaic_0001>
module attributes {stable_mosaic.version = 11 : i64} {
  func.func @_bigru_scan_kernel(%arg0: i32, %arg1: memref<8x2x384xf32, #tpu.memory_space<vmem>>, %arg2: memref<8x2x384xf32, #tpu.memory_space<vmem>>, %arg3: memref<2x128x384xf32, #tpu.memory_space<vmem>>, %arg4: memref<2x1x128xf32, #tpu.memory_space<vmem>>, %arg5: memref<2x2x128xf32, #tpu.memory_space<vmem>>, %arg6: memref<2x2x128xf32, #tpu.memory_space<vmem>>) attributes {dimension_semantics = [#tpu.dimension_semantics<arbitrary>], iteration_bounds = array<i64: 1>, scalar_prefetch = 0 : i64, scratch_operands = 1 : i64, tpu.core_type = #tpu.core_type<tc>, window_params = [{transform_indices = @transform_0, window_bounds = array<i64: 8, 2, 384>}, {transform_indices = @transform_1, window_bounds = array<i64: 8, 2, 384>}, {pipeline_mode = #tpu.pipeline_mode<synchronous>, transform_indices = @transform_2, window_bounds = array<i64: 2, 128, 384>}, {pipeline_mode = #tpu.pipeline_mode<synchronous>, transform_indices = @transform_3, window_bounds = array<i64: 2, 1, 128>}, {pipeline_mode = #tpu.pipeline_mode<synchronous>, transform_indices = @transform_4, window_bounds = array<i64: 2, 2, 128>}]} {
    %c0_i32 = arith.constant 0 : i32
    %0 = arith.cmpi eq, %arg0, %c0_i32 : i32
    %1 = arith.extui %0 : i1 to i32
    %c0_i32_0 = arith.constant 0 : i32
    %2 = arith.cmpi ne, %1, %c0_i32_0 : i32
    scf.if %2 {
      %cst_97 = arith.constant 0.000000e+00 : f32
      %404 = vector.broadcast %cst_97 : f32 to vector<2x2x128xf32>
      %c0_98 = arith.constant 0 : index
      %c0_99 = arith.constant 0 : index
      %c0_100 = arith.constant 0 : index
      %405 = vector.load %arg6[%c0_98, %c0_99, %c0_100] : memref<2x2x128xf32, #tpu.memory_space<vmem>>, vector<2x2x128xf32>
      tpu.vector_store %arg6[%c0_98, %c0_99, %c0_100], %404 {strides = array<i32>} : memref<2x2x128xf32, #tpu.memory_space<vmem>>, vector<2x2x128xf32>,
    } else {
    }
    %c0 = arith.constant 0 : index
    %c0_1 = arith.constant 0 : index
    %c0_2 = arith.constant 0 : index
    %3 = vector.load %arg3[%c0, %c0_1, %c0_2] : memref<2x128x384xf32, #tpu.memory_space<vmem>>, vector<1x128x384xf32>
    %4 = vector.shape_cast %3 : vector<1x128x384xf32> to vector<128x384xf32>
    %c1 = arith.constant 1 : index
    %c0_3 = arith.constant 0 : index
    %c0_4 = arith.constant 0 : index
    %5 = vector.load %arg3[%c1, %c0_3, %c0_4] : memref<2x128x384xf32, #tpu.memory_space<vmem>>, vector<1x128x384xf32>
    %6 = vector.shape_cast %5 : vector<1x128x384xf32> to vector<128x384xf32>
    %c0_5 = arith.constant 0 : index
    %c0_6 = arith.constant 0 : index
    %c0_7 = arith.constant 0 : index
    %7 = vector.load %arg4[%c0_5, %c0_6, %c0_7] : memref<2x1x128xf32, #tpu.memory_space<vmem>>, vector<1x1x128xf32>
    %8 = vector.shape_cast %7 : vector<1x1x128xf32> to vector<1x128xf32>
    %9 = vector.shape_cast %8 : vector<1x128xf32> to vector<1x128xf32>
    %10 = vector.broadcast %9 : vector<1x128xf32> to vector<2x128xf32>
    %c1_8 = arith.constant 1 : index
    %c0_9 = arith.constant 0 : index
    %c0_10 = arith.constant 0 : index
    %11 = vector.load %arg4[%c1_8, %c0_9, %c0_10] : memref<2x1x128xf32, #tpu.memory_space<vmem>>, vector<1x1x128xf32>
    %12 = vector.shape_cast %11 : vector<1x1x128xf32> to vector<1x128xf32>
    %13 = vector.shape_cast %12 : vector<1x128xf32> to vector<1x128xf32>
    %14 = vector.broadcast %13 : vector<1x128xf32> to vector<2x128xf32>
    %c0_11 = arith.constant 0 : index
    %c0_12 = arith.constant 0 : index
    %c0_13 = arith.constant 0 : index
    %15 = vector.load %arg6[%c0_11, %c0_12, %c0_13] : memref<2x2x128xf32, #tpu.memory_space<vmem>>, vector<1x2x128xf32>
    %16 = vector.shape_cast %15 : vector<1x2x128xf32> to vector<2x128xf32>
    %c1_14 = arith.constant 1 : index
    %c0_15 = arith.constant 0 : index
    %c0_16 = arith.constant 0 : index
    %17 = vector.load %arg6[%c1_14, %c0_15, %c0_16] : memref<2x2x128xf32, #tpu.memory_space<vmem>>, vector<1x2x128xf32>
    %18 = vector.shape_cast %17 : vector<1x2x128xf32> to vector<2x128xf32>
    %c0_i32_17 = arith.constant 0 : i32
    %19 = arith.index_cast %c0_i32_17 : i32 to index
    %c0_18 = arith.constant 0 : index
    %c0_19 = arith.constant 0 : index
    %20 = vector.load %arg1[%19, %c0_18, %c0_19] : memref<8x2x384xf32, #tpu.memory_space<vmem>>, vector<1x2x384xf32>
    %21 = vector.shape_cast %20 : vector<1x2x384xf32> to vector<2x384xf32>
    %cst = arith.constant dense<0.000000e+00> : vector<2x384xf32>
    %22 = tpu.matmul %16, %4, %cst {dimension_numbers = #tpu.dot_dimension_numbers<[1], [0], [0], [1], [0, 0, 1, 1], [], []>} : vector<2x128xf32>, vector<128x384xf32>, vector<2x384xf32> -> vector<2x384xf32>
    %23 = vector.extract_strided_slice %21 {offsets = [0, 0], sizes = [2, 256], strides = [1, 1]} : vector<2x384xf32> to vector<2x256xf32>
    %24 = vector.extract_strided_slice %22 {offsets = [0, 0], sizes = [2, 256], strides = [1, 1]} : vector<2x384xf32> to vector<2x256xf32>
    %25 = arith.addf %23, %24 : vector<2x256xf32>
    %26 = arith.negf %25 : vector<2x256xf32>
    %27 = math.exp %26 : vector<2x256xf32>
    %cst_20 = arith.constant 1.000000e+00 : f32
    %28 = vector.broadcast %cst_20 : f32 to vector<2x256xf32>
    %29 = arith.addf %28, %27 : vector<2x256xf32>
    %30 = arith.divf %28, %29 : vector<2x256xf32>
    %31 = vector.extract_strided_slice %30 {offsets = [0, 0], sizes = [2, 128], strides = [1, 1]} : vector<2x256xf32> to vector<2x128xf32>
    %32 = vector.extract_strided_slice %30 {offsets = [0, 128], sizes = [2, 128], strides = [1, 1]} : vector<2x256xf32> to vector<2x128xf32>
    %33 = vector.extract_strided_slice %21 {offsets = [0, 256], sizes = [2, 128], strides = [1, 1]} : vector<2x384xf32> to vector<2x128xf32>
    %34 = vector.extract_strided_slice %22 {offsets = [0, 256], sizes = [2, 128], strides = [1, 1]} : vector<2x384xf32> to vector<2x128xf32>
    %35 = arith.addf %34, %10 : vector<2x128xf32>
    %36 = arith.mulf %31, %35 : vector<2x128xf32>
    %37 = arith.addf %33, %36 : vector<2x128xf32>
    %38 = math.tanh %37 : vector<2x128xf32>
    %39 = arith.subf %16, %38 : vector<2x128xf32>
    %40 = arith.mulf %32, %39 : vector<2x128xf32>
    %41 = arith.addf %38, %40 : vector<2x128xf32>
    %c7_i32 = arith.constant 7 : i32
    %42 = arith.subi %c7_i32, %c0_i32_17 : i32
    %43 = arith.index_cast %42 : i32 to index
    %c0_21 = arith.constant 0 : index
    %c0_22 = arith.constant 0 : index
    %44 = vector.load %arg2[%43, %c0_21, %c0_22] : memref<8x2x384xf32, #tpu.memory_space<vmem>>, vector<1x2x384xf32>
    %45 = vector.shape_cast %44 : vector<1x2x384xf32> to vector<2x384xf32>
    %cst_23 = arith.constant dense<0.000000e+00> : vector<2x384xf32>
    %46 = tpu.matmul %18, %6, %cst_23 {dimension_numbers = #tpu.dot_dimension_numbers<[1], [0], [0], [1], [0, 0, 1, 1], [], []>} : vector<2x128xf32>, vector<128x384xf32>, vector<2x384xf32> -> vector<2x384xf32>
    %47 = vector.extract_strided_slice %45 {offsets = [0, 0], sizes = [2, 256], strides = [1, 1]} : vector<2x384xf32> to vector<2x256xf32>
    %48 = vector.extract_strided_slice %46 {offsets = [0, 0], sizes = [2, 256], strides = [1, 1]} : vector<2x384xf32> to vector<2x256xf32>
    %49 = arith.addf %47, %48 : vector<2x256xf32>
    %50 = arith.negf %49 : vector<2x256xf32>
    %51 = math.exp %50 : vector<2x256xf32>
    %cst_24 = arith.constant 1.000000e+00 : f32
    %52 = vector.broadcast %cst_24 : f32 to vector<2x256xf32>
    %53 = arith.addf %52, %51 : vector<2x256xf32>
    %54 = arith.divf %52, %53 : vector<2x256xf32>
    %55 = vector.extract_strided_slice %54 {offsets = [0, 0], sizes = [2, 128], strides = [1, 1]} : vector<2x256xf32> to vector<2x128xf32>
    %56 = vector.extract_strided_slice %54 {offsets = [0, 128], sizes = [2, 128], strides = [1, 1]} : vector<2x256xf32> to vector<2x128xf32>
    %57 = vector.extract_strided_slice %45 {offsets = [0, 256], sizes = [2, 128], strides = [1, 1]} : vector<2x384xf32> to vector<2x128xf32>
    %58 = vector.extract_strided_slice %46 {offsets = [0, 256], sizes = [2, 128], strides = [1, 1]} : vector<2x384xf32> to vector<2x128xf32>
    %59 = arith.addf %58, %14 : vector<2x128xf32>
    %60 = arith.mulf %55, %59 : vector<2x128xf32>
    %61 = arith.addf %57, %60 : vector<2x128xf32>
    %62 = math.tanh %61 : vector<2x128xf32>
    %63 = arith.subf %18, %62 : vector<2x128xf32>
    %64 = arith.mulf %56, %63 : vector<2x128xf32>
    %65 = arith.addf %62, %64 : vector<2x128xf32>
    %c1_i32 = arith.constant 1 : i32
    %66 = arith.index_cast %c1_i32 : i32 to index
    %c0_25 = arith.constant 0 : index
    %c0_26 = arith.constant 0 : index
    %67 = vector.load %arg1[%66, %c0_25, %c0_26] : memref<8x2x384xf32, #tpu.memory_space<vmem>>, vector<1x2x384xf32>
    %68 = vector.shape_cast %67 : vector<1x2x384xf32> to vector<2x384xf32>
    %cst_27 = arith.constant dense<0.000000e+00> : vector<2x384xf32>
    %69 = tpu.matmul %41, %4, %cst_27 {dimension_numbers = #tpu.dot_dimension_numbers<[1], [0], [0], [1], [0, 0, 1, 1], [], []>} : vector<2x128xf32>, vector<128x384xf32>, vector<2x384xf32> -> vector<2x384xf32>
    %70 = vector.extract_strided_slice %68 {offsets = [0, 0], sizes = [2, 256], strides = [1, 1]} : vector<2x384xf32> to vector<2x256xf32>
    %71 = vector.extract_strided_slice %69 {offsets = [0, 0], sizes = [2, 256], strides = [1, 1]} : vector<2x384xf32> to vector<2x256xf32>
    %72 = arith.addf %70, %71 : vector<2x256xf32>
    %73 = arith.negf %72 : vector<2x256xf32>
    %74 = math.exp %73 : vector<2x256xf32>
    %cst_28 = arith.constant 1.000000e+00 : f32
    %75 = vector.broadcast %cst_28 : f32 to vector<2x256xf32>
    %76 = arith.addf %75, %74 : vector<2x256xf32>
    %77 = arith.divf %75, %76 : vector<2x256xf32>
    %78 = vector.extract_strided_slice %77 {offsets = [0, 0], sizes = [2, 128], strides = [1, 1]} : vector<2x256xf32> to vector<2x128xf32>
    %79 = vector.extract_strided_slice %77 {offsets = [0, 128], sizes = [2, 128], strides = [1, 1]} : vector<2x256xf32> to vector<2x128xf32>
    %80 = vector.extract_strided_slice %68 {offsets = [0, 256], sizes = [2, 128], strides = [1, 1]} : vector<2x384xf32> to vector<2x128xf32>
    %81 = vector.extract_strided_slice %69 {offsets = [0, 256], sizes = [2, 128], strides = [1, 1]} : vector<2x384xf32> to vector<2x128xf32>
    %82 = arith.addf %81, %10 : vector<2x128xf32>
    %83 = arith.mulf %78, %82 : vector<2x128xf32>
    %84 = arith.addf %80, %83 : vector<2x128xf32>
    %85 = math.tanh %84 : vector<2x128xf32>
    %86 = arith.subf %41, %85 : vector<2x128xf32>
    %87 = arith.mulf %79, %86 : vector<2x128xf32>
    %88 = arith.addf %85, %87 : vector<2x128xf32>
    %c7_i32_29 = arith.constant 7 : i32
    %89 = arith.subi %c7_i32_29, %c1_i32 : i32
    %90 = arith.index_cast %89 : i32 to index
    %c0_30 = arith.constant 0 : index
    %c0_31 = arith.constant 0 : index
    %91 = vector.load %arg2[%90, %c0_30, %c0_31] : memref<8x2x384xf32, #tpu.memory_space<vmem>>, vector<1x2x384xf32>
    %92 = vector.shape_cast %91 : vector<1x2x384xf32> to vector<2x384xf32>
    %cst_32 = arith.constant dense<0.000000e+00> : vector<2x384xf32>
    %93 = tpu.matmul %65, %6, %cst_32 {dimension_numbers = #tpu.dot_dimension_numbers<[1], [0], [0], [1], [0, 0, 1, 1], [], []>} : vector<2x128xf32>, vector<128x384xf32>, vector<2x384xf32> -> vector<2x384xf32>
    %94 = vector.extract_strided_slice %92 {offsets = [0, 0], sizes = [2, 256], strides = [1, 1]} : vector<2x384xf32> to vector<2x256xf32>
    %95 = vector.extract_strided_slice %93 {offsets = [0, 0], sizes = [2, 256], strides = [1, 1]} : vector<2x384xf32> to vector<2x256xf32>
    %96 = arith.addf %94, %95 : vector<2x256xf32>
    %97 = arith.negf %96 : vector<2x256xf32>
    %98 = math.exp %97 : vector<2x256xf32>
    %cst_33 = arith.constant 1.000000e+00 : f32
    %99 = vector.broadcast %cst_33 : f32 to vector<2x256xf32>
    %100 = arith.addf %99, %98 : vector<2x256xf32>
    %101 = arith.divf %99, %100 : vector<2x256xf32>
    %102 = vector.extract_strided_slice %101 {offsets = [0, 0], sizes = [2, 128], strides = [1, 1]} : vector<2x256xf32> to vector<2x128xf32>
    %103 = vector.extract_strided_slice %101 {offsets = [0, 128], sizes = [2, 128], strides = [1, 1]} : vector<2x256xf32> to vector<2x128xf32>
    %104 = vector.extract_strided_slice %92 {offsets = [0, 256], sizes = [2, 128], strides = [1, 1]} : vector<2x384xf32> to vector<2x128xf32>
    %105 = vector.extract_strided_slice %93 {offsets = [0, 256], sizes = [2, 128], strides = [1, 1]} : vector<2x384xf32> to vector<2x128xf32>
    %106 = arith.addf %105, %14 : vector<2x128xf32>
    %107 = arith.mulf %102, %106 : vector<2x128xf32>
    %108 = arith.addf %104, %107 : vector<2x128xf32>
    %109 = math.tanh %108 : vector<2x128xf32>
    %110 = arith.subf %65, %109 : vector<2x128xf32>
    %111 = arith.mulf %103, %110 : vector<2x128xf32>
    %112 = arith.addf %109, %111 : vector<2x128xf32>
    %c2_i32 = arith.constant 2 : i32
    %113 = arith.index_cast %c2_i32 : i32 to index
    %c0_34 = arith.constant 0 : index
    %c0_35 = arith.constant 0 : index
    %114 = vector.load %arg1[%113, %c0_34, %c0_35] : memref<8x2x384xf32, #tpu.memory_space<vmem>>, vector<1x2x384xf32>
    %115 = vector.shape_cast %114 : vector<1x2x384xf32> to vector<2x384xf32>
    %cst_36 = arith.constant dense<0.000000e+00> : vector<2x384xf32>
    %116 = tpu.matmul %88, %4, %cst_36 {dimension_numbers = #tpu.dot_dimension_numbers<[1], [0], [0], [1], [0, 0, 1, 1], [], []>} : vector<2x128xf32>, vector<128x384xf32>, vector<2x384xf32> -> vector<2x384xf32>
    %117 = vector.extract_strided_slice %115 {offsets = [0, 0], sizes = [2, 256], strides = [1, 1]} : vector<2x384xf32> to vector<2x256xf32>
    %118 = vector.extract_strided_slice %116 {offsets = [0, 0], sizes = [2, 256], strides = [1, 1]} : vector<2x384xf32> to vector<2x256xf32>
    %119 = arith.addf %117, %118 : vector<2x256xf32>
    %120 = arith.negf %119 : vector<2x256xf32>
    %121 = math.exp %120 : vector<2x256xf32>
    %cst_37 = arith.constant 1.000000e+00 : f32
    %122 = vector.broadcast %cst_37 : f32 to vector<2x256xf32>
    %123 = arith.addf %122, %121 : vector<2x256xf32>
    %124 = arith.divf %122, %123 : vector<2x256xf32>
    %125 = vector.extract_strided_slice %124 {offsets = [0, 0], sizes = [2, 128], strides = [1, 1]} : vector<2x256xf32> to vector<2x128xf32>
    %126 = vector.extract_strided_slice %124 {offsets = [0, 128], sizes = [2, 128], strides = [1, 1]} : vector<2x256xf32> to vector<2x128xf32>
    %127 = vector.extract_strided_slice %115 {offsets = [0, 256], sizes = [2, 128], strides = [1, 1]} : vector<2x384xf32> to vector<2x128xf32>
    %128 = vector.extract_strided_slice %116 {offsets = [0, 256], sizes = [2, 128], strides = [1, 1]} : vector<2x384xf32> to vector<2x128xf32>
    %129 = arith.addf %128, %10 : vector<2x128xf32>
    %130 = arith.mulf %125, %129 : vector<2x128xf32>
    %131 = arith.addf %127, %130 : vector<2x128xf32>
    %132 = math.tanh %131 : vector<2x128xf32>
    %133 = arith.subf %88, %132 : vector<2x128xf32>
    %134 = arith.mulf %126, %133 : vector<2x128xf32>
    %135 = arith.addf %132, %134 : vector<2x128xf32>
    %c7_i32_38 = arith.constant 7 : i32
    %136 = arith.subi %c7_i32_38, %c2_i32 : i32
    %137 = arith.index_cast %136 : i32 to index
    %c0_39 = arith.constant 0 : index
    %c0_40 = arith.constant 0 : index
    %138 = vector.load %arg2[%137, %c0_39, %c0_40] : memref<8x2x384xf32, #tpu.memory_space<vmem>>, vector<1x2x384xf32>
    %139 = vector.shape_cast %138 : vector<1x2x384xf32> to vector<2x384xf32>
    %cst_41 = arith.constant dense<0.000000e+00> : vector<2x384xf32>
    %140 = tpu.matmul %112, %6, %cst_41 {dimension_numbers = #tpu.dot_dimension_numbers<[1], [0], [0], [1], [0, 0, 1, 1], [], []>} : vector<2x128xf32>, vector<128x384xf32>, vector<2x384xf32> -> vector<2x384xf32>
    %141 = vector.extract_strided_slice %139 {offsets = [0, 0], sizes = [2, 256], strides = [1, 1]} : vector<2x384xf32> to vector<2x256xf32>
    %142 = vector.extract_strided_slice %140 {offsets = [0, 0], sizes = [2, 256], strides = [1, 1]} : vector<2x384xf32> to vector<2x256xf32>
    %143 = arith.addf %141, %142 : vector<2x256xf32>
    %144 = arith.negf %143 : vector<2x256xf32>
    %145 = math.exp %144 : vector<2x256xf32>
    %cst_42 = arith.constant 1.000000e+00 : f32
    %146 = vector.broadcast %cst_42 : f32 to vector<2x256xf32>
    %147 = arith.addf %146, %145 : vector<2x256xf32>
    %148 = arith.divf %146, %147 : vector<2x256xf32>
    %149 = vector.extract_strided_slice %148 {offsets = [0, 0], sizes = [2, 128], strides = [1, 1]} : vector<2x256xf32> to vector<2x128xf32>
    %150 = vector.extract_strided_slice %148 {offsets = [0, 128], sizes = [2, 128], strides = [1, 1]} : vector<2x256xf32> to vector<2x128xf32>
    %151 = vector.extract_strided_slice %139 {offsets = [0, 256], sizes = [2, 128], strides = [1, 1]} : vector<2x384xf32> to vector<2x128xf32>
    %152 = vector.extract_strided_slice %140 {offsets = [0, 256], sizes = [2, 128], strides = [1, 1]} : vector<2x384xf32> to vector<2x128xf32>
    %153 = arith.addf %152, %14 : vector<2x128xf32>
    %154 = arith.mulf %149, %153 : vector<2x128xf32>
    %155 = arith.addf %151, %154 : vector<2x128xf32>
    %156 = math.tanh %155 : vector<2x128xf32>
    %157 = arith.subf %112, %156 : vector<2x128xf32>
    %158 = arith.mulf %150, %157 : vector<2x128xf32>
    %159 = arith.addf %156, %158 : vector<2x128xf32>
    %c3_i32 = arith.constant 3 : i32
    %160 = arith.index_cast %c3_i32 : i32 to index
    %c0_43 = arith.constant 0 : index
    %c0_44 = arith.constant 0 : index
    %161 = vector.load %arg1[%160, %c0_43, %c0_44] : memref<8x2x384xf32, #tpu.memory_space<vmem>>, vector<1x2x384xf32>
    %162 = vector.shape_cast %161 : vector<1x2x384xf32> to vector<2x384xf32>
    %cst_45 = arith.constant dense<0.000000e+00> : vector<2x384xf32>
    %163 = tpu.matmul %135, %4, %cst_45 {dimension_numbers = #tpu.dot_dimension_numbers<[1], [0], [0], [1], [0, 0, 1, 1], [], []>} : vector<2x128xf32>, vector<128x384xf32>, vector<2x384xf32> -> vector<2x384xf32>
    %164 = vector.extract_strided_slice %162 {offsets = [0, 0], sizes = [2, 256], strides = [1, 1]} : vector<2x384xf32> to vector<2x256xf32>
    %165 = vector.extract_strided_slice %163 {offsets = [0, 0], sizes = [2, 256], strides = [1, 1]} : vector<2x384xf32> to vector<2x256xf32>
    %166 = arith.addf %164, %165 : vector<2x256xf32>
    %167 = arith.negf %166 : vector<2x256xf32>
    %168 = math.exp %167 : vector<2x256xf32>
    %cst_46 = arith.constant 1.000000e+00 : f32
    %169 = vector.broadcast %cst_46 : f32 to vector<2x256xf32>
    %170 = arith.addf %169, %168 : vector<2x256xf32>
    %171 = arith.divf %169, %170 : vector<2x256xf32>
    %172 = vector.extract_strided_slice %171 {offsets = [0, 0], sizes = [2, 128], strides = [1, 1]} : vector<2x256xf32> to vector<2x128xf32>
    %173 = vector.extract_strided_slice %171 {offsets = [0, 128], sizes = [2, 128], strides = [1, 1]} : vector<2x256xf32> to vector<2x128xf32>
    %174 = vector.extract_strided_slice %162 {offsets = [0, 256], sizes = [2, 128], strides = [1, 1]} : vector<2x384xf32> to vector<2x128xf32>
    %175 = vector.extract_strided_slice %163 {offsets = [0, 256], sizes = [2, 128], strides = [1, 1]} : vector<2x384xf32> to vector<2x128xf32>
    %176 = arith.addf %175, %10 : vector<2x128xf32>
    %177 = arith.mulf %172, %176 : vector<2x128xf32>
    %178 = arith.addf %174, %177 : vector<2x128xf32>
    %179 = math.tanh %178 : vector<2x128xf32>
    %180 = arith.subf %135, %179 : vector<2x128xf32>
    %181 = arith.mulf %173, %180 : vector<2x128xf32>
    %182 = arith.addf %179, %181 : vector<2x128xf32>
    %c7_i32_47 = arith.constant 7 : i32
    %183 = arith.subi %c7_i32_47, %c3_i32 : i32
    %184 = arith.index_cast %183 : i32 to index
    %c0_48 = arith.constant 0 : index
    %c0_49 = arith.constant 0 : index
    %185 = vector.load %arg2[%184, %c0_48, %c0_49] : memref<8x2x384xf32, #tpu.memory_space<vmem>>, vector<1x2x384xf32>
    %186 = vector.shape_cast %185 : vector<1x2x384xf32> to vector<2x384xf32>
    %cst_50 = arith.constant dense<0.000000e+00> : vector<2x384xf32>
    %187 = tpu.matmul %159, %6, %cst_50 {dimension_numbers = #tpu.dot_dimension_numbers<[1], [0], [0], [1], [0, 0, 1, 1], [], []>} : vector<2x128xf32>, vector<128x384xf32>, vector<2x384xf32> -> vector<2x384xf32>
    %188 = vector.extract_strided_slice %186 {offsets = [0, 0], sizes = [2, 256], strides = [1, 1]} : vector<2x384xf32> to vector<2x256xf32>
    %189 = vector.extract_strided_slice %187 {offsets = [0, 0], sizes = [2, 256], strides = [1, 1]} : vector<2x384xf32> to vector<2x256xf32>
    %190 = arith.addf %188, %189 : vector<2x256xf32>
    %191 = arith.negf %190 : vector<2x256xf32>
    %192 = math.exp %191 : vector<2x256xf32>
    %cst_51 = arith.constant 1.000000e+00 : f32
    %193 = vector.broadcast %cst_51 : f32 to vector<2x256xf32>
    %194 = arith.addf %193, %192 : vector<2x256xf32>
    %195 = arith.divf %193, %194 : vector<2x256xf32>
    %196 = vector.extract_strided_slice %195 {offsets = [0, 0], sizes = [2, 128], strides = [1, 1]} : vector<2x256xf32> to vector<2x128xf32>
    %197 = vector.extract_strided_slice %195 {offsets = [0, 128], sizes = [2, 128], strides = [1, 1]} : vector<2x256xf32> to vector<2x128xf32>
    %198 = vector.extract_strided_slice %186 {offsets = [0, 256], sizes = [2, 128], strides = [1, 1]} : vector<2x384xf32> to vector<2x128xf32>
    %199 = vector.extract_strided_slice %187 {offsets = [0, 256], sizes = [2, 128], strides = [1, 1]} : vector<2x384xf32> to vector<2x128xf32>
    %200 = arith.addf %199, %14 : vector<2x128xf32>
    %201 = arith.mulf %196, %200 : vector<2x128xf32>
    %202 = arith.addf %198, %201 : vector<2x128xf32>
    %203 = math.tanh %202 : vector<2x128xf32>
    %204 = arith.subf %159, %203 : vector<2x128xf32>
    %205 = arith.mulf %197, %204 : vector<2x128xf32>
    %206 = arith.addf %203, %205 : vector<2x128xf32>
    %c4_i32 = arith.constant 4 : i32
    %207 = arith.index_cast %c4_i32 : i32 to index
    %c0_52 = arith.constant 0 : index
    %c0_53 = arith.constant 0 : index
    %208 = vector.load %arg1[%207, %c0_52, %c0_53] : memref<8x2x384xf32, #tpu.memory_space<vmem>>, vector<1x2x384xf32>
    %209 = vector.shape_cast %208 : vector<1x2x384xf32> to vector<2x384xf32>
    %cst_54 = arith.constant dense<0.000000e+00> : vector<2x384xf32>
    %210 = tpu.matmul %182, %4, %cst_54 {dimension_numbers = #tpu.dot_dimension_numbers<[1], [0], [0], [1], [0, 0, 1, 1], [], []>} : vector<2x128xf32>, vector<128x384xf32>, vector<2x384xf32> -> vector<2x384xf32>
    %211 = vector.extract_strided_slice %209 {offsets = [0, 0], sizes = [2, 256], strides = [1, 1]} : vector<2x384xf32> to vector<2x256xf32>
    %212 = vector.extract_strided_slice %210 {offsets = [0, 0], sizes = [2, 256], strides = [1, 1]} : vector<2x384xf32> to vector<2x256xf32>
    %213 = arith.addf %211, %212 : vector<2x256xf32>
    %214 = arith.negf %213 : vector<2x256xf32>
    %215 = math.exp %214 : vector<2x256xf32>
    %cst_55 = arith.constant 1.000000e+00 : f32
    %216 = vector.broadcast %cst_55 : f32 to vector<2x256xf32>
    %217 = arith.addf %216, %215 : vector<2x256xf32>
    %218 = arith.divf %216, %217 : vector<2x256xf32>
    %219 = vector.extract_strided_slice %218 {offsets = [0, 0], sizes = [2, 128], strides = [1, 1]} : vector<2x256xf32> to vector<2x128xf32>
    %220 = vector.extract_strided_slice %218 {offsets = [0, 128], sizes = [2, 128], strides = [1, 1]} : vector<2x256xf32> to vector<2x128xf32>
    %221 = vector.extract_strided_slice %209 {offsets = [0, 256], sizes = [2, 128], strides = [1, 1]} : vector<2x384xf32> to vector<2x128xf32>
    %222 = vector.extract_strided_slice %210 {offsets = [0, 256], sizes = [2, 128], strides = [1, 1]} : vector<2x384xf32> to vector<2x128xf32>
    %223 = arith.addf %222, %10 : vector<2x128xf32>
    %224 = arith.mulf %219, %223 : vector<2x128xf32>
    %225 = arith.addf %221, %224 : vector<2x128xf32>
    %226 = math.tanh %225 : vector<2x128xf32>
    %227 = arith.subf %182, %226 : vector<2x128xf32>
    %228 = arith.mulf %220, %227 : vector<2x128xf32>
    %229 = arith.addf %226, %228 : vector<2x128xf32>
    %c7_i32_56 = arith.constant 7 : i32
    %230 = arith.subi %c7_i32_56, %c4_i32 : i32
    %231 = arith.index_cast %230 : i32 to index
    %c0_57 = arith.constant 0 : index
    %c0_58 = arith.constant 0 : index
    %232 = vector.load %arg2[%231, %c0_57, %c0_58] : memref<8x2x384xf32, #tpu.memory_space<vmem>>, vector<1x2x384xf32>
    %233 = vector.shape_cast %232 : vector<1x2x384xf32> to vector<2x384xf32>
    %cst_59 = arith.constant dense<0.000000e+00> : vector<2x384xf32>
    %234 = tpu.matmul %206, %6, %cst_59 {dimension_numbers = #tpu.dot_dimension_numbers<[1], [0], [0], [1], [0, 0, 1, 1], [], []>} : vector<2x128xf32>, vector<128x384xf32>, vector<2x384xf32> -> vector<2x384xf32>
    %235 = vector.extract_strided_slice %233 {offsets = [0, 0], sizes = [2, 256], strides = [1, 1]} : vector<2x384xf32> to vector<2x256xf32>
    %236 = vector.extract_strided_slice %234 {offsets = [0, 0], sizes = [2, 256], strides = [1, 1]} : vector<2x384xf32> to vector<2x256xf32>
    %237 = arith.addf %235, %236 : vector<2x256xf32>
    %238 = arith.negf %237 : vector<2x256xf32>
    %239 = math.exp %238 : vector<2x256xf32>
    %cst_60 = arith.constant 1.000000e+00 : f32
    %240 = vector.broadcast %cst_60 : f32 to vector<2x256xf32>
    %241 = arith.addf %240, %239 : vector<2x256xf32>
    %242 = arith.divf %240, %241 : vector<2x256xf32>
    %243 = vector.extract_strided_slice %242 {offsets = [0, 0], sizes = [2, 128], strides = [1, 1]} : vector<2x256xf32> to vector<2x128xf32>
    %244 = vector.extract_strided_slice %242 {offsets = [0, 128], sizes = [2, 128], strides = [1, 1]} : vector<2x256xf32> to vector<2x128xf32>
    %245 = vector.extract_strided_slice %233 {offsets = [0, 256], sizes = [2, 128], strides = [1, 1]} : vector<2x384xf32> to vector<2x128xf32>
    %246 = vector.extract_strided_slice %234 {offsets = [0, 256], sizes = [2, 128], strides = [1, 1]} : vector<2x384xf32> to vector<2x128xf32>
    %247 = arith.addf %246, %14 : vector<2x128xf32>
    %248 = arith.mulf %243, %247 : vector<2x128xf32>
    %249 = arith.addf %245, %248 : vector<2x128xf32>
    %250 = math.tanh %249 : vector<2x128xf32>
    %251 = arith.subf %206, %250 : vector<2x128xf32>
    %252 = arith.mulf %244, %251 : vector<2x128xf32>
    %253 = arith.addf %250, %252 : vector<2x128xf32>
    %c5_i32 = arith.constant 5 : i32
    %254 = arith.index_cast %c5_i32 : i32 to index
    %c0_61 = arith.constant 0 : index
    %c0_62 = arith.constant 0 : index
    %255 = vector.load %arg1[%254, %c0_61, %c0_62] : memref<8x2x384xf32, #tpu.memory_space<vmem>>, vector<1x2x384xf32>
    %256 = vector.shape_cast %255 : vector<1x2x384xf32> to vector<2x384xf32>
    %cst_63 = arith.constant dense<0.000000e+00> : vector<2x384xf32>
    %257 = tpu.matmul %229, %4, %cst_63 {dimension_numbers = #tpu.dot_dimension_numbers<[1], [0], [0], [1], [0, 0, 1, 1], [], []>} : vector<2x128xf32>, vector<128x384xf32>, vector<2x384xf32> -> vector<2x384xf32>
    %258 = vector.extract_strided_slice %256 {offsets = [0, 0], sizes = [2, 256], strides = [1, 1]} : vector<2x384xf32> to vector<2x256xf32>
    %259 = vector.extract_strided_slice %257 {offsets = [0, 0], sizes = [2, 256], strides = [1, 1]} : vector<2x384xf32> to vector<2x256xf32>
    %260 = arith.addf %258, %259 : vector<2x256xf32>
    %261 = arith.negf %260 : vector<2x256xf32>
    %262 = math.exp %261 : vector<2x256xf32>
    %cst_64 = arith.constant 1.000000e+00 : f32
    %263 = vector.broadcast %cst_64 : f32 to vector<2x256xf32>
    %264 = arith.addf %263, %262 : vector<2x256xf32>
    %265 = arith.divf %263, %264 : vector<2x256xf32>
    %266 = vector.extract_strided_slice %265 {offsets = [0, 0], sizes = [2, 128], strides = [1, 1]} : vector<2x256xf32> to vector<2x128xf32>
    %267 = vector.extract_strided_slice %265 {offsets = [0, 128], sizes = [2, 128], strides = [1, 1]} : vector<2x256xf32> to vector<2x128xf32>
    %268 = vector.extract_strided_slice %256 {offsets = [0, 256], sizes = [2, 128], strides = [1, 1]} : vector<2x384xf32> to vector<2x128xf32>
    %269 = vector.extract_strided_slice %257 {offsets = [0, 256], sizes = [2, 128], strides = [1, 1]} : vector<2x384xf32> to vector<2x128xf32>
    %270 = arith.addf %269, %10 : vector<2x128xf32>
    %271 = arith.mulf %266, %270 : vector<2x128xf32>
    %272 = arith.addf %268, %271 : vector<2x128xf32>
    %273 = math.tanh %272 : vector<2x128xf32>
    %274 = arith.subf %229, %273 : vector<2x128xf32>
    %275 = arith.mulf %267, %274 : vector<2x128xf32>
    %276 = arith.addf %273, %275 : vector<2x128xf32>
    %c7_i32_65 = arith.constant 7 : i32
    %277 = arith.subi %c7_i32_65, %c5_i32 : i32
    %278 = arith.index_cast %277 : i32 to index
    %c0_66 = arith.constant 0 : index
    %c0_67 = arith.constant 0 : index
    %279 = vector.load %arg2[%278, %c0_66, %c0_67] : memref<8x2x384xf32, #tpu.memory_space<vmem>>, vector<1x2x384xf32>
    %280 = vector.shape_cast %279 : vector<1x2x384xf32> to vector<2x384xf32>
    %cst_68 = arith.constant dense<0.000000e+00> : vector<2x384xf32>
    %281 = tpu.matmul %253, %6, %cst_68 {dimension_numbers = #tpu.dot_dimension_numbers<[1], [0], [0], [1], [0, 0, 1, 1], [], []>} : vector<2x128xf32>, vector<128x384xf32>, vector<2x384xf32> -> vector<2x384xf32>
    %282 = vector.extract_strided_slice %280 {offsets = [0, 0], sizes = [2, 256], strides = [1, 1]} : vector<2x384xf32> to vector<2x256xf32>
    %283 = vector.extract_strided_slice %281 {offsets = [0, 0], sizes = [2, 256], strides = [1, 1]} : vector<2x384xf32> to vector<2x256xf32>
    %284 = arith.addf %282, %283 : vector<2x256xf32>
    %285 = arith.negf %284 : vector<2x256xf32>
    %286 = math.exp %285 : vector<2x256xf32>
    %cst_69 = arith.constant 1.000000e+00 : f32
    %287 = vector.broadcast %cst_69 : f32 to vector<2x256xf32>
    %288 = arith.addf %287, %286 : vector<2x256xf32>
    %289 = arith.divf %287, %288 : vector<2x256xf32>
    %290 = vector.extract_strided_slice %289 {offsets = [0, 0], sizes = [2, 128], strides = [1, 1]} : vector<2x256xf32> to vector<2x128xf32>
    %291 = vector.extract_strided_slice %289 {offsets = [0, 128], sizes = [2, 128], strides = [1, 1]} : vector<2x256xf32> to vector<2x128xf32>
    %292 = vector.extract_strided_slice %280 {offsets = [0, 256], sizes = [2, 128], strides = [1, 1]} : vector<2x384xf32> to vector<2x128xf32>
    %293 = vector.extract_strided_slice %281 {offsets = [0, 256], sizes = [2, 128], strides = [1, 1]} : vector<2x384xf32> to vector<2x128xf32>
    %294 = arith.addf %293, %14 : vector<2x128xf32>
    %295 = arith.mulf %290, %294 : vector<2x128xf32>
    %296 = arith.addf %292, %295 : vector<2x128xf32>
    %297 = math.tanh %296 : vector<2x128xf32>
    %298 = arith.subf %253, %297 : vector<2x128xf32>
    %299 = arith.mulf %291, %298 : vector<2x128xf32>
    %300 = arith.addf %297, %299 : vector<2x128xf32>
    %c6_i32 = arith.constant 6 : i32
    %301 = arith.index_cast %c6_i32 : i32 to index
    %c0_70 = arith.constant 0 : index
    %c0_71 = arith.constant 0 : index
    %302 = vector.load %arg1[%301, %c0_70, %c0_71] : memref<8x2x384xf32, #tpu.memory_space<vmem>>, vector<1x2x384xf32>
    %303 = vector.shape_cast %302 : vector<1x2x384xf32> to vector<2x384xf32>
    %cst_72 = arith.constant dense<0.000000e+00> : vector<2x384xf32>
    %304 = tpu.matmul %276, %4, %cst_72 {dimension_numbers = #tpu.dot_dimension_numbers<[1], [0], [0], [1], [0, 0, 1, 1], [], []>} : vector<2x128xf32>, vector<128x384xf32>, vector<2x384xf32> -> vector<2x384xf32>
    %305 = vector.extract_strided_slice %303 {offsets = [0, 0], sizes = [2, 256], strides = [1, 1]} : vector<2x384xf32> to vector<2x256xf32>
    %306 = vector.extract_strided_slice %304 {offsets = [0, 0], sizes = [2, 256], strides = [1, 1]} : vector<2x384xf32> to vector<2x256xf32>
    %307 = arith.addf %305, %306 : vector<2x256xf32>
    %308 = arith.negf %307 : vector<2x256xf32>
    %309 = math.exp %308 : vector<2x256xf32>
    %cst_73 = arith.constant 1.000000e+00 : f32
    %310 = vector.broadcast %cst_73 : f32 to vector<2x256xf32>
    %311 = arith.addf %310, %309 : vector<2x256xf32>
    %312 = arith.divf %310, %311 : vector<2x256xf32>
    %313 = vector.extract_strided_slice %312 {offsets = [0, 0], sizes = [2, 128], strides = [1, 1]} : vector<2x256xf32> to vector<2x128xf32>
    %314 = vector.extract_strided_slice %312 {offsets = [0, 128], sizes = [2, 128], strides = [1, 1]} : vector<2x256xf32> to vector<2x128xf32>
    %315 = vector.extract_strided_slice %303 {offsets = [0, 256], sizes = [2, 128], strides = [1, 1]} : vector<2x384xf32> to vector<2x128xf32>
    %316 = vector.extract_strided_slice %304 {offsets = [0, 256], sizes = [2, 128], strides = [1, 1]} : vector<2x384xf32> to vector<2x128xf32>
    %317 = arith.addf %316, %10 : vector<2x128xf32>
    %318 = arith.mulf %313, %317 : vector<2x128xf32>
    %319 = arith.addf %315, %318 : vector<2x128xf32>
    %320 = math.tanh %319 : vector<2x128xf32>
    %321 = arith.subf %276, %320 : vector<2x128xf32>
    %322 = arith.mulf %314, %321 : vector<2x128xf32>
    %323 = arith.addf %320, %322 : vector<2x128xf32>
    %c7_i32_74 = arith.constant 7 : i32
    %324 = arith.subi %c7_i32_74, %c6_i32 : i32
    %325 = arith.index_cast %324 : i32 to index
    %c0_75 = arith.constant 0 : index
    %c0_76 = arith.constant 0 : index
    %326 = vector.load %arg2[%325, %c0_75, %c0_76] : memref<8x2x384xf32, #tpu.memory_space<vmem>>, vector<1x2x384xf32>
    %327 = vector.shape_cast %326 : vector<1x2x384xf32> to vector<2x384xf32>
    %cst_77 = arith.constant dense<0.000000e+00> : vector<2x384xf32>
    %328 = tpu.matmul %300, %6, %cst_77 {dimension_numbers = #tpu.dot_dimension_numbers<[1], [0], [0], [1], [0, 0, 1, 1], [], []>} : vector<2x128xf32>, vector<128x384xf32>, vector<2x384xf32> -> vector<2x384xf32>
    %329 = vector.extract_strided_slice %327 {offsets = [0, 0], sizes = [2, 256], strides = [1, 1]} : vector<2x384xf32> to vector<2x256xf32>
    %330 = vector.extract_strided_slice %328 {offsets = [0, 0], sizes = [2, 256], strides = [1, 1]} : vector<2x384xf32> to vector<2x256xf32>
    %331 = arith.addf %329, %330 : vector<2x256xf32>
    %332 = arith.negf %331 : vector<2x256xf32>
    %333 = math.exp %332 : vector<2x256xf32>
    %cst_78 = arith.constant 1.000000e+00 : f32
    %334 = vector.broadcast %cst_78 : f32 to vector<2x256xf32>
    %335 = arith.addf %334, %333 : vector<2x256xf32>
    %336 = arith.divf %334, %335 : vector<2x256xf32>
    %337 = vector.extract_strided_slice %336 {offsets = [0, 0], sizes = [2, 128], strides = [1, 1]} : vector<2x256xf32> to vector<2x128xf32>
    %338 = vector.extract_strided_slice %336 {offsets = [0, 128], sizes = [2, 128], strides = [1, 1]} : vector<2x256xf32> to vector<2x128xf32>
    %339 = vector.extract_strided_slice %327 {offsets = [0, 256], sizes = [2, 128], strides = [1, 1]} : vector<2x384xf32> to vector<2x128xf32>
    %340 = vector.extract_strided_slice %328 {offsets = [0, 256], sizes = [2, 128], strides = [1, 1]} : vector<2x384xf32> to vector<2x128xf32>
    %341 = arith.addf %340, %14 : vector<2x128xf32>
    %342 = arith.mulf %337, %341 : vector<2x128xf32>
    %343 = arith.addf %339, %342 : vector<2x128xf32>
    %344 = math.tanh %343 : vector<2x128xf32>
    %345 = arith.subf %300, %344 : vector<2x128xf32>
    %346 = arith.mulf %338, %345 : vector<2x128xf32>
    %347 = arith.addf %344, %346 : vector<2x128xf32>
    %c7_i32_79 = arith.constant 7 : i32
    %348 = arith.index_cast %c7_i32_79 : i32 to index
    %c0_80 = arith.constant 0 : index
    %c0_81 = arith.constant 0 : index
    %349 = vector.load %arg1[%348, %c0_80, %c0_81] : memref<8x2x384xf32, #tpu.memory_space<vmem>>, vector<1x2x384xf32>
    %350 = vector.shape_cast %349 : vector<1x2x384xf32> to vector<2x384xf32>
    %cst_82 = arith.constant dense<0.000000e+00> : vector<2x384xf32>
    %351 = tpu.matmul %323, %4, %cst_82 {dimension_numbers = #tpu.dot_dimension_numbers<[1], [0], [0], [1], [0, 0, 1, 1], [], []>} : vector<2x128xf32>, vector<128x384xf32>, vector<2x384xf32> -> vector<2x384xf32>
    %352 = vector.extract_strided_slice %350 {offsets = [0, 0], sizes = [2, 256], strides = [1, 1]} : vector<2x384xf32> to vector<2x256xf32>
    %353 = vector.extract_strided_slice %351 {offsets = [0, 0], sizes = [2, 256], strides = [1, 1]} : vector<2x384xf32> to vector<2x256xf32>
    %354 = arith.addf %352, %353 : vector<2x256xf32>
    %355 = arith.negf %354 : vector<2x256xf32>
    %356 = math.exp %355 : vector<2x256xf32>
    %cst_83 = arith.constant 1.000000e+00 : f32
    %357 = vector.broadcast %cst_83 : f32 to vector<2x256xf32>
    %358 = arith.addf %357, %356 : vector<2x256xf32>
    %359 = arith.divf %357, %358 : vector<2x256xf32>
    %360 = vector.extract_strided_slice %359 {offsets = [0, 0], sizes = [2, 128], strides = [1, 1]} : vector<2x256xf32> to vector<2x128xf32>
    %361 = vector.extract_strided_slice %359 {offsets = [0, 128], sizes = [2, 128], strides = [1, 1]} : vector<2x256xf32> to vector<2x128xf32>
    %362 = vector.extract_strided_slice %350 {offsets = [0, 256], sizes = [2, 128], strides = [1, 1]} : vector<2x384xf32> to vector<2x128xf32>
    %363 = vector.extract_strided_slice %351 {offsets = [0, 256], sizes = [2, 128], strides = [1, 1]} : vector<2x384xf32> to vector<2x128xf32>
    %364 = arith.addf %363, %10 : vector<2x128xf32>
    %365 = arith.mulf %360, %364 : vector<2x128xf32>
    %366 = arith.addf %362, %365 : vector<2x128xf32>
    %367 = math.tanh %366 : vector<2x128xf32>
    %368 = arith.subf %323, %367 : vector<2x128xf32>
    %369 = arith.mulf %361, %368 : vector<2x128xf32>
    %370 = arith.addf %367, %369 : vector<2x128xf32>
    %c7_i32_84 = arith.constant 7 : i32
    %371 = arith.subi %c7_i32_84, %c7_i32_79 : i32
    %372 = arith.index_cast %371 : i32 to index
    %c0_85 = arith.constant 0 : index
    %c0_86 = arith.constant 0 : index
    %373 = vector.load %arg2[%372, %c0_85, %c0_86] : memref<8x2x384xf32, #tpu.memory_space<vmem>>, vector<1x2x384xf32>
    %374 = vector.shape_cast %373 : vector<1x2x384xf32> to vector<2x384xf32>
    %cst_87 = arith.constant dense<0.000000e+00> : vector<2x384xf32>
    %375 = tpu.matmul %347, %6, %cst_87 {dimension_numbers = #tpu.dot_dimension_numbers<[1], [0], [0], [1], [0, 0, 1, 1], [], []>} : vector<2x128xf32>, vector<128x384xf32>, vector<2x384xf32> -> vector<2x384xf32>
    %376 = vector.extract_strided_slice %374 {offsets = [0, 0], sizes = [2, 256], strides = [1, 1]} : vector<2x384xf32> to vector<2x256xf32>
    %377 = vector.extract_strided_slice %375 {offsets = [0, 0], sizes = [2, 256], strides = [1, 1]} : vector<2x384xf32> to vector<2x256xf32>
    %378 = arith.addf %376, %377 : vector<2x256xf32>
    %379 = arith.negf %378 : vector<2x256xf32>
    %380 = math.exp %379 : vector<2x256xf32>
    %cst_88 = arith.constant 1.000000e+00 : f32
    %381 = vector.broadcast %cst_88 : f32 to vector<2x256xf32>
    %382 = arith.addf %381, %380 : vector<2x256xf32>
    %383 = arith.divf %381, %382 : vector<2x256xf32>
    %384 = vector.extract_strided_slice %383 {offsets = [0, 0], sizes = [2, 128], strides = [1, 1]} : vector<2x256xf32> to vector<2x128xf32>
    %385 = vector.extract_strided_slice %383 {offsets = [0, 128], sizes = [2, 128], strides = [1, 1]} : vector<2x256xf32> to vector<2x128xf32>
    %386 = vector.extract_strided_slice %374 {offsets = [0, 256], sizes = [2, 128], strides = [1, 1]} : vector<2x384xf32> to vector<2x128xf32>
    %387 = vector.extract_strided_slice %375 {offsets = [0, 256], sizes = [2, 128], strides = [1, 1]} : vector<2x384xf32> to vector<2x128xf32>
    %388 = arith.addf %387, %14 : vector<2x128xf32>
    %389 = arith.mulf %384, %388 : vector<2x128xf32>
    %390 = arith.addf %386, %389 : vector<2x128xf32>
    %391 = math.tanh %390 : vector<2x128xf32>
    %392 = arith.subf %347, %391 : vector<2x128xf32>
    %393 = arith.mulf %385, %392 : vector<2x128xf32>
    %394 = arith.addf %391, %393 : vector<2x128xf32>
    %c8_i32 = arith.constant 8 : i32
    %c0_89 = arith.constant 0 : index
    %c0_90 = arith.constant 0 : index
    %c0_91 = arith.constant 0 : index
    %395 = vector.load %arg6[%c0_89, %c0_90, %c0_91] : memref<2x2x128xf32, #tpu.memory_space<vmem>>, vector<1x2x128xf32>
    %396 = vector.shape_cast %395 : vector<1x2x128xf32> to vector<2x128xf32>
    %397 = vector.shape_cast %370 : vector<2x128xf32> to vector<1x2x128xf32>
    tpu.vector_store %arg6[%c0_89, %c0_90, %c0_91], %397 {strides = array<i32>} : memref<2x2x128xf32, #tpu.memory_space<vmem>>, vector<1x2x128xf32>,
    %c1_92 = arith.constant 1 : index
    %c0_93 = arith.constant 0 : index
    %c0_94 = arith.constant 0 : index
    %398 = vector.load %arg6[%c1_92, %c0_93, %c0_94] : memref<2x2x128xf32, #tpu.memory_space<vmem>>, vector<1x2x128xf32>
    %399 = vector.shape_cast %398 : vector<1x2x128xf32> to vector<2x128xf32>
    %400 = vector.shape_cast %394 : vector<2x128xf32> to vector<1x2x128xf32>
    tpu.vector_store %arg6[%c1_92, %c0_93, %c0_94], %400 {strides = array<i32>} : memref<2x2x128xf32, #tpu.memory_space<vmem>>, vector<1x2x128xf32>,
    %c0_i32_95 = arith.constant 0 : i32
    %401 = arith.cmpi eq, %arg0, %c0_i32_95 : i32
    %402 = arith.extui %401 : i1 to i32
    %c0_i32_96 = arith.constant 0 : i32
    %403 = arith.cmpi ne, %402, %c0_i32_96 : i32
    scf.if %403 {
      %c0_97 = arith.constant 0 : index
      %c0_98 = arith.constant 0 : index
      %c0_99 = arith.constant 0 : index
      %404 = vector.load %arg6[%c0_97, %c0_98, %c0_99] : memref<2x2x128xf32, #tpu.memory_space<vmem>>, vector<2x2x128xf32>
      %c0_100 = arith.constant 0 : index
      %c0_101 = arith.constant 0 : index
      %c0_102 = arith.constant 0 : index
      %405 = vector.load %arg5[%c0_100, %c0_101, %c0_102] : memref<2x2x128xf32, #tpu.memory_space<vmem>>, vector<2x2x128xf32>
      tpu.vector_store %arg5[%c0_100, %c0_101, %c0_102], %404 {strides = array<i32>} : memref<2x2x128xf32, #tpu.memory_space<vmem>>, vector<2x2x128xf32>,
    } else {
    }
    return
  }
  func.func @transform_0(%arg0: i32) -> (i32, i32, i32) {
    %c0_i32 = arith.constant 0 : i32
    %c0_i32_0 = arith.constant 0 : i32
    %c0_i32_1 = arith.constant 0 : i32
    return %arg0, %c0_i32, %c0_i32_0 : i32, i32, i32
  }
  func.func @transform_1(%arg0: i32) -> (i32, i32, i32) {
    %c0_i32 = arith.constant 0 : i32
    %0 = arith.subi %c0_i32, %arg0 : i32
    %c0_i32_0 = arith.constant 0 : i32
    %c1_i32 = arith.constant 1 : i32
    %c0_i32_1 = arith.constant 0 : i32
    return %0, %c0_i32_0, %c1_i32 : i32, i32, i32
  }
  func.func @transform_2(%arg0: i32) -> (i32, i32, i32) {
    %c0_i32 = arith.constant 0 : i32
    %c0_i32_0 = arith.constant 0 : i32
    %c0_i32_1 = arith.constant 0 : i32
    %c0_i32_2 = arith.constant 0 : i32
    return %c0_i32, %c0_i32_0, %c0_i32_1 : i32, i32, i32
  }
  func.func @transform_3(%arg0: i32) -> (i32, i32, i32) {
    %c0_i32 = arith.constant 0 : i32
    %c0_i32_0 = arith.constant 0 : i32
    %c0_i32_1 = arith.constant 0 : i32
    %c0_i32_2 = arith.constant 0 : i32
    return %c0_i32, %c0_i32_0, %c0_i32_1 : i32, i32, i32
  }
  func.func @transform_4(%arg0: i32) -> (i32, i32, i32) {
    %c0_i32 = arith.constant 0 : i32
    %c0_i32_0 = arith.constant 0 : i32
    %c0_i32_1 = arith.constant 0 : i32
    %c0_i32_2 = arith.constant 0 : i32
    return %c0_i32, %c0_i32_0, %c0_i32_1 : i32, i32, i32
  }
}

</mosaic_0001>

<llo_original>
// kernel: tpu_custom_call.1
$region0: #{tpu_custom_call.1}
  #allocation0 [shape = 'u32[]', space=smem, size = 0x4, offset = 0x4, fixed_abs, tag = 'smem constant byte address 0x4 - core index']
  #allocation1 [shape = 'u32[144,128]{1,0:T(1,128)}', space=vmem, size = 0x12000, scoped, tag = 'internal scratch']
  #allocation2 [shape = 'f32[2,2,128]{2,1,0:T(2,128)}', space=vmem, size = 0x800, scoped, tag = 'scratch operand']
  %s0 = inlined_call_operand.hbm [shape: f32[8,2,768], index: 0, kind: input, shape index: {}]
  %s1 = inlined_call_operand.hbm [shape: f32[8,2,768], index: 1, kind: input, shape index: {}]
  %s2 = inlined_call_operand.hbm [shape: f32[2,128,384], index: 2, kind: input, shape index: {}]
  %s3 = inlined_call_operand.vmem [shape: f32[2,1,128], index: 3, kind: input, shape index: {}]
  %s4 = inlined_call_operand.hbm [shape: f32[2,2,128], index: 4, kind: output, shape index: {}]
  %s5 = sld [smem:[#allocation0]]
  $region46: #{tpu_custom_call.1} parent=0
    _
  %s7 = ssub.s32 1, %s5
  %s8 = scalar_select 0, %s7, %s5
  $region1: #{tpu_custom_call.1} parent=0
    #allocation3 [shape = 'u8[24576]{0}', space=vmem, size = 0x6000, scoped, tag = 'input window, operand 0, single buffered']
    #allocation4 [shape = 's32[1]{0}', space=sflag, size = 0x4, scoped, tag = 'scoped memory for tpu_custom_call.1']
    #allocation5 [shape = 's32[1]{0}', space=sflag, size = 0x4, scoped, tag = 'scoped memory for tpu_custom_call.1']
    #allocation6 [shape = 'u8[24576]{0}', space=vmem, size = 0x6000, scoped, tag = 'input window, operand 1, single buffered']
    #allocation7 [shape = 's32[1]{0}', space=sflag, size = 0x4, scoped, tag = 'scoped memory for tpu_custom_call.1']
    #allocation8 [shape = 'u8[393216]{0}', space=vmem, size = 0x60000, scoped, tag = 'input window, operand 2, single buffered']
    #allocation9 [shape = 'u8[2048]{0}', space=vmem, size = 0x800, scoped, tag = 'output window, operand 0, single buffered']
    %9 = vsyncpa [#allocation4], 0
    %10 = vsyncpa [#allocation7], 0
    %11 = vsyncpa [#allocation5], 0
    // Predicated region
    $region2: #{tpu_custom_call.1} parent=1 // pred_check
      _
    $region3: #{tpu_custom_call.1} parent=1 // pred_check_branch
      %13 = sbr.rel (0) target = $region5
    $region4: #{tpu_custom_call.1} parent=1 // pred_region
      %s15 = ssub.s32 768, 768
      %16 = vsyncadd [#allocation4], %s15
      %s17 = sshll.u32 [#allocation3], 4
      %s18 = int_to_ptr.vmem [resolvable:$true] %s17
      %23 = dma.hbm_to_vmem [thread:$0]  %s0, 768, %s18, [#allocation4], 192, 96, 6
    $region5: #{tpu_custom_call.1} parent=1 // pred_fallthru
      _
    // Predicated region
    $region6: #{tpu_custom_call.1} parent=1 // pred_check
      _
    $region7: #{tpu_custom_call.1} parent=1 // pred_check_branch
      %25 = sbr.rel (0) target = $region9
    $region8: #{tpu_custom_call.1} parent=1 // pred_region
      %s26 = ssub.s32 0, 0
      %s27 = smul.u32 8, %s26
      %s29 = ssub.s32 768, 768
      %30 = vsyncadd [#allocation7], %s29
      %s31 = smul.addr %s27, 6
      %s32 = sadd.s32 3, %s31
      %s33 = smul.addr %s32, 32
      %s34 = scalar_lea.hbm %s1, %s33
      %s35 = sshll.u32 [#allocation6], 4
      %s36 = int_to_ptr.vmem [resolvable:$true] %s35
      %41 = dma.hbm_to_vmem [thread:$0]  %s34, 768, %s36, [#allocation7], 192, 96, 6
    $region9: #{tpu_custom_call.1} parent=1 // pred_fallthru
      _
    // Predicated region
    $region10: #{tpu_custom_call.1} parent=1 // pred_check
      _
    $region11: #{tpu_custom_call.1} parent=1 // pred_check_branch
      %43 = sbr.rel (0) target = $region13
    $region12: #{tpu_custom_call.1} parent=1 // pred_region
      %s45 = ssub.s32 12288, 12288
      %46 = vsyncadd [#allocation7], %s45
      %s47 = sshll.u32 [#allocation8], 4
      %s48 = int_to_ptr.vmem [resolvable:$true] %s47
      %53 = dma.hbm_to_vmem [thread:$0]  %s2, 12288, %s48, [#allocation7], 384, 384, 24
    $region13: #{tpu_custom_call.1} parent=1 // pred_fallthru
      _
    // Predicated region
    $region14: #{tpu_custom_call.1} parent=1 // pred_check
      _
    $region15: #{tpu_custom_call.1} parent=1 // pred_check_branch
      %55 = sbr.rel (0) target = $region17
    $region16: #{tpu_custom_call.1} parent=1 // pred_region
      _
    $region17: #{tpu_custom_call.1} parent=1 // pred_fallthru
      _
    // Predicated region
    $region18: #{tpu_custom_call.1} parent=1 // pred_check
      _
    $region19: #{tpu_custom_call.1} parent=1 // pred_check_branch
      %57 = sbr.rel (0) target = $region21
    $region20: #{tpu_custom_call.1} parent=1 // pred_region
      %58 = dma.done [#allocation4], 768
    $region21: #{tpu_custom_call.1} parent=1 // pred_fallthru
      _
    // Predicated region
    $region22: #{tpu_custom_call.1} parent=1 // pred_check
      _
    $region23: #{tpu_custom_call.1} parent=1 // pred_check_branch
      %60 = sbr.rel (0) target = $region25
    $region24: #{tpu_custom_call.1} parent=1 // pred_region
      %61 = dma.done [#allocation7], 768
    $region25: #{tpu_custom_call.1} parent=1 // pred_fallthru
      _
    // Predicated region
    $region26: #{tpu_custom_call.1} parent=1 // pred_check
      _
    $region27: #{tpu_custom_call.1} parent=1 // pred_check_branch
      %63 = sbr.rel (0) target = $region29
    $region28: #{tpu_custom_call.1} parent=1 // pred_region
      %64 = dma.done [#allocation7], 12288
    $region29: #{tpu_custom_call.1} parent=1 // pred_fallthru
      _
    %s65 = ssub.s32 0, 0
    %s66 = smul.u32 8, %s65
    %p67 = scmp.eq.s32.totalorder 0, 0
    // Predicated region
    $region30: #{tpu_custom_call.1} parent=1 // pred_check
      %p68 = pneg %p67
    $region31: #{tpu_custom_call.1} parent=1 // pred_check_branch
      %70 = sbr.rel (%p68) target = $region33
    $region32: #{tpu_custom_call.1} parent=1 // pred_region
      %71 = vst [vmem:[#allocation2] sm:$0x3] 0.0
      %72 = vst [vmem:[#allocation2 + $0x2] sm:$0x3] 0.0
    $region33: #{tpu_custom_call.1} parent=1 // pred_fallthru
      _
    %v73 = vld [vmem:[#allocation8] sm:$0xff]
    %v74 = vld [vmem:[#allocation8 + $0x8] sm:$0xff]
    %v75 = vld [vmem:[#allocation8 + $0x10] sm:$0xff]
    %v76 = vld [vmem:[#allocation8 + $0x18] sm:$0xff]
    %v77 = vld [vmem:[#allocation8 + $0x20] sm:$0xff]
    %v78 = vld [vmem:[#allocation8 + $0x28] sm:$0xff]
    %v79 = vld [vmem:[#allocation8 + $0x30] sm:$0xff]
    %v80 = vld [vmem:[#allocation8 + $0x38] sm:$0xff]
    %v81 = vld [vmem:[#allocation8 + $0x40] sm:$0xff]
    %v82 = vld [vmem:[#allocation8 + $0x48] sm:$0xff]
    %v83 = vld [vmem:[#allocation8 + $0x50] sm:$0xff]
    %v84 = vld [vmem:[#allocation8 + $0x58] sm:$0xff]
    %v85 = vld [vmem:[#allocation8 + $0x60] sm:$0xff]
    %v86 = vld [vmem:[#allocation8 + $0x68] sm:$0xff]
    %v87 = vld [vmem:[#allocation8 + $0x70] sm:$0xff]
    %v88 = vld [vmem:[#allocation8 + $0x78] sm:$0xff]
    %v89 = vld [vmem:[#allocation8 + $0x80] sm:$0xff]
    %v90 = vld [vmem:[#allocation8 + $0x88] sm:$0xff]
    %v91 = vld [vmem:[#allocation8 + $0x90] sm:$0xff]
    %v92 = vld [vmem:[#allocation8 + $0x98] sm:$0xff]
    %v93 = vld [vmem:[#allocation8 + $0xa0] sm:$0xff]
    %v94 = vld [vmem:[#allocation8 + $0xa8] sm:$0xff]
    %v95 = vld [vmem:[#allocation8 + $0xb0] sm:$0xff]
    %v96 = vld [vmem:[#allocation8 + $0xb8] sm:$0xff]
    %v97 = vld [vmem:[#allocation8 + $0xc0] sm:$0xff]
    %v98 = vld [vmem:[#allocation8 + $0xc8] sm:$0xff]
    %v99 = vld [vmem:[#allocation8 + $0xd0] sm:$0xff]
    %v100 = vld [vmem:[#allocation8 + $0xd8] sm:$0xff]
    %v101 = vld [vmem:[#allocation8 + $0xe0] sm:$0xff]
    %v102 = vld [vmem:[#allocation8 + $0xe8] sm:$0xff]
    %v103 = vld [vmem:[#allocation8 + $0xf0] sm:$0xff]
    %v104 = vld [vmem:[#allocation8 + $0xf8] sm:$0xff]
    %v105 = vld [vmem:[#allocation8 + $0x100] sm:$0xff]
    %v106 = vld [vmem:[#allocation8 + $0x108] sm:$0xff]
    %v107 = vld [vmem:[#allocation8 + $0x110] sm:$0xff]
    %v108 = vld [vmem:[#allocation8 + $0x118] sm:$0xff]
    %v109 = vld [vmem:[#allocation8 + $0x120] sm:$0xff]
    %v110 = vld [vmem:[#allocation8 + $0x128] sm:$0xff]
    %v111 = vld [vmem:[#allocation8 + $0x130] sm:$0xff]
    %v112 = vld [vmem:[#allocation8 + $0x138] sm:$0xff]
    %v113 = vld [vmem:[#allocation8 + $0x140] sm:$0xff]
    %v114 = vld [vmem:[#allocation8 + $0x148] sm:$0xff]
    %v115 = vld [vmem:[#allocation8 + $0x150] sm:$0xff]
    %v116 = vld [vmem:[#allocation8 + $0x158] sm:$0xff]
    %v117 = vld [vmem:[#allocation8 + $0x160] sm:$0xff]
    %v118 = vld [vmem:[#allocation8 + $0x168] sm:$0xff]
    %v119 = vld [vmem:[#allocation8 + $0x170] sm:$0xff]
    %v120 = vld [vmem:[#allocation8 + $0x178] sm:$0xff]
    %s121 = scalar_lea.vmem [#allocation8], 384
    %v122 = vld [vmem:[%s121] sm:$0xff]
    %v123 = vld [vmem:[%s121 + $0x8] sm:$0xff]
    %v124 = vld [vmem:[%s121 + $0x10] sm:$0xff]
    %v125 = vld [vmem:[%s121 + $0x18] sm:$0xff]
    %v126 = vld [vmem:[%s121 + $0x20] sm:$0xff]
    %v127 = vld [vmem:[%s121 + $0x28] sm:$0xff]
    %v128 = vld [vmem:[%s121 + $0x30] sm:$0xff]
    %v129 = vld [vmem:[%s121 + $0x38] sm:$0xff]
    %v130 = vld [vmem:[%s121 + $0x40] sm:$0xff]
    %v131 = vld [vmem:[%s121 + $0x48] sm:$0xff]
    %v132 = vld [vmem:[%s121 + $0x50] sm:$0xff]
    %v133 = vld [vmem:[%s121 + $0x58] sm:$0xff]
    %v134 = vld [vmem:[%s121 + $0x60] sm:$0xff]
    %v135 = vld [vmem:[%s121 + $0x68] sm:$0xff]
    %v136 = vld [vmem:[%s121 + $0x70] sm:$0xff]
    %v137 = vld [vmem:[%s121 + $0x78] sm:$0xff]
    %v138 = vld [vmem:[%s121 + $0x80] sm:$0xff]
    %v139 = vld [vmem:[%s121 + $0x88] sm:$0xff]
    %v140 = vld [vmem:[%s121 + $0x90] sm:$0xff]
    %v141 = vld [vmem:[%s121 + $0x98] sm:$0xff]
    %v142 = vld [vmem:[%s121 + $0xa0] sm:$0xff]
    %v143 = vld [vmem:[%s121 + $0xa8] sm:$0xff]
    %v144 = vld [vmem:[%s121 + $0xb0] sm:$0xff]
    %v145 = vld [vmem:[%s121 + $0xb8] sm:$0xff]
    %v146 = vld [vmem:[%s121 + $0xc0] sm:$0xff]
    %v147 = vld [vmem:[%s121 + $0xc8] sm:$0xff]
    %v148 = vld [vmem:[%s121 + $0xd0] sm:$0xff]
    %v149 = vld [vmem:[%s121 + $0xd8] sm:$0xff]
    %v150 = vld [vmem:[%s121 + $0xe0] sm:$0xff]
    %v151 = vld [vmem:[%s121 + $0xe8] sm:$0xff]
    %v152 = vld [vmem:[%s121 + $0xf0] sm:$0xff]
    %v153 = vld [vmem:[%s121 + $0xf8] sm:$0xff]
    %v154 = vld [vmem:[%s121 + $0x100] sm:$0xff]
    %v155 = vld [vmem:[%s121 + $0x108] sm:$0xff]
    %v156 = vld [vmem:[%s121 + $0x110] sm:$0xff]
    %v157 = vld [vmem:[%s121 + $0x118] sm:$0xff]
    %v158 = vld [vmem:[%s121 + $0x120] sm:$0xff]
    %v159 = vld [vmem:[%s121 + $0x128] sm:$0xff]
    %v160 = vld [vmem:[%s121 + $0x130] sm:$0xff]
    %v161 = vld [vmem:[%s121 + $0x138] sm:$0xff]
    %v162 = vld [vmem:[%s121 + $0x140] sm:$0xff]
    %v163 = vld [vmem:[%s121 + $0x148] sm:$0xff]
    %v164 = vld [vmem:[%s121 + $0x150] sm:$0xff]
    %v165 = vld [vmem:[%s121 + $0x158] sm:$0xff]
    %v166 = vld [vmem:[%s121 + $0x160] sm:$0xff]
    %v167 = vld [vmem:[%s121 + $0x168] sm:$0xff]
    %v168 = vld [vmem:[%s121 + $0x170] sm:$0xff]
    %v169 = vld [vmem:[%s121 + $0x178] sm:$0xff]
    %v170 = vld [vmem:[%s3] sm:$0x1]
    %v172 = vlaneseq
    %v173 = vshrl.u32 %v172, 7
    %v174 = vsub.s32 0, %v173
    %v175 = vrot.slane %v170, %v174
    %s177 = scalar_lea.vmem %s3, 1
    %v178 = vld [vmem:[%s177] sm:$0x1]
    %v180 = vlaneseq
    %v181 = vshrl.u32 %v180, 7
    %v182 = vsub.s32 0, %v181
    %v183 = vrot.slane %v178, %v182
    %v185 = vld [vmem:[#allocation2] sm:$0x3]
    %s186 = scalar_lea.vmem [#allocation2], 2
    %v187 = vld [vmem:[%s186] sm:$0x3]
    %v188 = vld [vmem:[#allocation3] sm:$0x3f]
    %189 = vmatprep.subr.mxu0 %v119
    %190 = vmatpush1.msra.mxu0 %v118
    %191 = vmatprep.subr.mxu0 %v116
    %192 = vmatpush1.msra.mxu0 %v115
    %193 = vmatprep.subr.mxu0 %v113
    %194 = vmatpush1.msra.mxu0 %v112
    %195 = vmatprep.subr.mxu0 %v110
    %196 = vmatpush1.msra.mxu0 %v109
    %197 = vmatprep.subr.mxu0 %v107
    %198 = vmatpush1.msra.mxu0 %v106
    %199 = vmatprep.subr.mxu0 %v104
    %200 = vmatpush1.msra.mxu0 %v103
    %201 = vmatprep.subr.mxu0 %v101
    %202 = vmatpush1.msra.mxu0 %v100
    %203 = vmatprep.subr.mxu0 %v98
    %204 = vmatpush1.msra.mxu0 %v97
    %205 = vmatprep.subr.mxu0 %v95
    %206 = vmatpush1.msra.mxu0 %v94
    %207 = vmatprep.subr.mxu0 %v92
    %208 = vmatpush1.msra.mxu0 %v91
    %209 = vmatprep.subr.mxu0 %v89
    %210 = vmatpush1.msra.mxu0 %v88
    %211 = vmatprep.subr.mxu0 %v86
    %212 = vmatpush1.msra.mxu0 %v85
    %213 = vmatprep.subr.mxu0 %v83
    %214 = vmatpush1.msra.mxu0 %v82
    %215 = vmatprep.subr.mxu0 %v80
    %216 = vmatpush1.msra.mxu0 %v79
    %217 = vmatprep.subr.mxu0 %v77
    %218 = vmatpush1.msra.mxu0 %v76
    %219 = vmatprep.subr.mxu0 %v74
    %220 = vmatpush1.msra.mxu0 %v73
    %221 = vmatprep.subr.mxu0 0.0
    %222 = vmatpush2.msra.mxu0 0.0
    %223 = vmatprep.subr.mxu0 0.0
    %224 = vmatpush2.msra.mxu0 0.0
    %225 = vmatprep.subr.mxu0 0.0
    %226 = vmatpush2.msra.mxu0 0.0
    %227 = vmatprep.subr.mxu0 0.0
    %228 = vmatpush2.msra.mxu0 0.0
    %229 = vmatprep.subr.mxu0 0.0
    %230 = vmatpush2.msra.mxu0 0.0
    %231 = vmatprep.subr.mxu0 0.0
    %232 = vmatpush2.msra.mxu0 0.0
    %233 = vmatprep.subr.mxu0 0.0
    %234 = vmatpush2.msra.mxu0 0.0
    %235 = vmatprep.subr.mxu0 0.0
    %236 = vmatpush2.msra.mxu0 0.0
    %237 = vmatprep.subr.mxu0 0.0
    %238 = vmatpush2.msra.mxu0 0.0
    %239 = vmatprep.subr.mxu0 0.0
    %240 = vmatpush2.msra.mxu0 0.0
    %241 = vmatprep.subr.mxu0 0.0
    %242 = vmatpush2.msra.mxu0 0.0
    %243 = vmatprep.subr.mxu0 0.0
    %244 = vmatpush2.msra.mxu0 0.0
    %245 = vmatprep.subr.mxu0 0.0
    %246 = vmatpush2.msra.mxu0 0.0
    %247 = vmatprep.subr.mxu0 0.0
    %248 = vmatpush2.msra.mxu0 0.0
    %249 = vmatprep.subr.mxu0 0.0
    %250 = vmatpush2.msra.mxu0 0.0
    %251 = vmatprep.subr.mxu0 0.0
    %252 = vmatpush2.msra.mxu0 0.0
    %253 = vmatprep.mubr.f32.mxu0 0.0
    %254 = vmatmul.mubr.f32.gmra.mxu0 %v185
    %v255 = vpop.f32.mrf.mxu0
    %v256 = vadd.f32 0.0, %v255
    %v257 = vpop.f32.mrf.mxu0
    %v258 = vadd.f32 0.0, %v257
    %259 = vdwg.mxu0
    %260 = vmatprep.subr.mxu0 0.0
    %261 = vmatpush1.msra.mxu0 %v120
    %262 = vmatprep.subr.mxu0 0.0
    %263 = vmatpush1.msra.mxu0 %v117
    %264 = vmatprep.subr.mxu0 0.0
    %265 = vmatpush1.msra.mxu0 %v114
    %266 = vmatprep.subr.mxu0 0.0
    %267 = vmatpush1.msra.mxu0 %v111
    %268 = vmatprep.subr.mxu0 0.0
    %269 = vmatpush1.msra.mxu0 %v108
    %270 = vmatprep.subr.mxu0 0.0
    %271 = vmatpush1.msra.mxu0 %v105
    %272 = vmatprep.subr.mxu0 0.0
    %273 = vmatpush1.msra.mxu0 %v102
    %274 = vmatprep.subr.mxu0 0.0
    %275 = vmatpush1.msra.mxu0 %v99
    %276 = vmatprep.subr.mxu0 0.0
    %277 = vmatpush1.msra.mxu0 %v96
    %278 = vmatprep.subr.mxu0 0.0
    %279 = vmatpush1.msra.mxu0 %v93
    %280 = vmatprep.subr.mxu0 0.0
    %281 = vmatpush1.msra.mxu0 %v90
    %282 = vmatprep.subr.mxu0 0.0
    %283 = vmatpush1.msra.mxu0 %v87
    %284 = vmatprep.subr.mxu0 0.0
    %285 = vmatpush1.msra.mxu0 %v84
    %286 = vmatprep.subr.mxu0 0.0
    %287 = vmatpush1.msra.mxu0 %v81
    %288 = vmatprep.subr.mxu0 0.0
    %289 = vmatpush1.msra.mxu0 %v78
    %290 = vmatprep.subr.mxu0 0.0
    %291 = vmatpush1.msra.mxu0 %v75
    %292 = vmatprep.subr.mxu0 0.0
    %293 = vmatpush2.msra.mxu0 0.0
    %294 = vmatprep.subr.mxu0 0.0
    %295 = vmatpush2.msra.mxu0 0.0
    %296 = vmatprep.subr.mxu0 0.0
    %297 = vmatpush2.msra.mxu0 0.0
    %298 = vmatprep.subr.mxu0 0.0
    %299 = vmatpush2.msra.mxu0 0.0
    %300 = vmatprep.subr.mxu0 0.0
    %301 = vmatpush2.msra.mxu0 0.0
    %302 = vmatprep.subr.mxu0 0.0
    %303 = vmatpush2.msra.mxu0 0.0
    %304 = vmatprep.subr.mxu0 0.0
    %305 = vmatpush2.msra.mxu0 0.0
    %306 = vmatprep.subr.mxu0 0.0
    %307 = vmatpush2.msra.mxu0 0.0
    %308 = vmatprep.subr.mxu0 0.0
    %309 = vmatpush2.msra.mxu0 0.0
    %310 = vmatprep.subr.mxu0 0.0
    %311 = vmatpush2.msra.mxu0 0.0
    %312 = vmatprep.subr.mxu0 0.0
    %313 = vmatpush2.msra.mxu0 0.0
    %314 = vmatprep.subr.mxu0 0.0
    %315 = vmatpush2.msra.mxu0 0.0
    %316 = vmatprep.subr.mxu0 0.0
    %317 = vmatpush2.msra.mxu0 0.0
    %318 = vmatprep.subr.mxu0 0.0
    %319 = vmatpush2.msra.mxu0 0.0
    %320 = vmatprep.subr.mxu0 0.0
    %321 = vmatpush2.msra.mxu0 0.0
    %322 = vmatprep.subr.mxu0 0.0
    %323 = vmatpush2.msra.mxu0 0.0
    %324 = vmatprep.mubr.f32.mxu0 0.0
    %325 = vmatmul.mubr.f32.gmra.mxu0 %v185
    %v326 = vpop.f32.mrf.mxu0
    %v327 = vadd.f32 0.0, %v326
    %v328 = vpop.f32.mrf.mxu0
    %329 = vdwg.mxu0
    %v332 = vcombine.low %v256, %v258
    %v334 = vunpack.c.l.s4 1983009808
    %v335 = vunpack.c.0.s8 %v334
    %v336 = vlaneseq
    %v337 = vshrl.u32 %v336, 7
    %v338 = vsub.s32 %v335, %v337
    %v339 = vrot.slane %v332, %v338
    %v341 = vadd.f32 %v188, %v339
    %v342 = vxor.u32 %v341, 2147483648
    %v343 = vmul.f32 %v342, 1.442695
    %v344 = vpow.pop %v343
    %v345 = vadd.f32 %v344, 1.0
    %v346 = vrcp.pop %v345
    %v347 = vmul.f32 1.0, %v346
    %v348 = vadd.f32 %v327, %v175
    %v349 = vmul.f32 %v347, %v348
    %v351 = vrot.slane %v188, 4
    %v353 = vadd.f32 %v351, %v349
    %v354 = vtanh.pop %v353
    %v355 = vsub.f32 %v185, %v354
    %v357 = vrot.slane %v347, 2
    %v359 = vmul.f32 %v357, %v355
    %v360 = vadd.f32 %v354, %v359
    %s361 = scalar_lea.vmem [#allocation6], 42
    %v362 = vld [vmem:[%s361] sm:$0x3f]
    %363 = vmatprep.subr.mxu0 %v168
    %364 = vmatpush1.msra.mxu0 %v167
    %365 = vmatprep.subr.mxu0 %v165
    %366 = vmatpush1.msra.mxu0 %v164
    %367 = vmatprep.subr.mxu0 %v162
    %368 = vmatpush1.msra.mxu0 %v161
    %369 = vmatprep.subr.mxu0 %v159
    %370 = vmatpush1.msra.mxu0 %v158
    %371 = vmatprep.subr.mxu0 %v156
    %372 = vmatpush1.msra.mxu0 %v155
    %373 = vmatprep.subr.mxu0 %v153
    %374 = vmatpush1.msra.mxu0 %v152
    %375 = vmatprep.subr.mxu0 %v150
    %376 = vmatpush1.msra.mxu0 %v149
    %377 = vmatprep.subr.mxu0 %v147
    %378 = vmatpush1.msra.mxu0 %v146
    %379 = vmatprep.subr.mxu0 %v144
    %380 = vmatpush1.msra.mxu0 %v143
    %381 = vmatprep.subr.mxu0 %v141
    %382 = vmatpush1.msra.mxu0 %v140
    %383 = vmatprep.subr.mxu0 %v138
    %384 = vmatpush1.msra.mxu0 %v137
    %385 = vmatprep.subr.mxu0 %v135
    %386 = vmatpush1.msra.mxu0 %v134
    %387 = vmatprep.subr.mxu0 %v132
    %388 = vmatpush1.msra.mxu0 %v131
    %389 = vmatprep.subr.mxu0 %v129
    %390 = vmatpush1.msra.mxu0 %v128
    %391 = vmatprep.subr.mxu0 %v126
    %392 = vmatpush1.msra.mxu0 %v125
    %393 = vmatprep.subr.mxu0 %v123
    %394 = vmatpush1.msra.mxu0 %v122
    %395 = vmatprep.subr.mxu0 0.0
    %396 = vmatpush2.msra.mxu0 0.0
    %397 = vmatprep.subr.mxu0 0.0
    %398 = vmatpush2.msra.mxu0 0.0
    %399 = vmatprep.subr.mxu0 0.0
    %400 = vmatpush2.msra.mxu0 0.0
    %401 = vmatprep.subr.mxu0 0.0
    %402 = vmatpush2.msra.mxu0 0.0
    %403 = vmatprep.subr.mxu0 0.0
    %404 = vmatpush2.msra.mxu0 0.0
    %405 = vmatprep.subr.mxu0 0.0
    %406 = vmatpush2.msra.mxu0 0.0
    %407 = vmatprep.subr.mxu0 0.0
    %408 = vmatpush2.msra.mxu0 0.0
    %409 = vmatprep.subr.mxu0 0.0
    %410 = vmatpush2.msra.mxu0 0.0
    %411 = vmatprep.subr.mxu0 0.0
    %412 = vmatpush2.msra.mxu0 0.0
    %413 = vmatprep.subr.mxu0 0.0
    %414 = vmatpush2.msra.mxu0 0.0
    %415 = vmatprep.subr.mxu0 0.0
    %416 = vmatpush2.msra.mxu0 0.0
    %417 = vmatprep.subr.mxu0 0.0
    %418 = vmatpush2.msra.mxu0 0.0
    %419 = vmatprep.subr.mxu0 0.0
    %420 = vmatpush2.msra.mxu0 0.0
    %421 = vmatprep.subr.mxu0 0.0
    %422 = vmatpush2.msra.mxu0 0.0
    %423 = vmatprep.subr.mxu0 0.0
    %424 = vmatpush2.msra.mxu0 0.0
    %425 = vmatprep.subr.mxu0 0.0
    %426 = vmatpush2.msra.mxu0 0.0
    %427 = vmatprep.mubr.f32.mxu0 0.0
    %428 = vmatmul.mubr.f32.gmra.mxu0 %v187
    %v429 = vpop.f32.mrf.mxu0
    %v430 = vadd.f32 0.0, %v429
    %v431 = vpop.f32.mrf.mxu0
    %v432 = vadd.f32 0.0, %v431
    %433 = vdwg.mxu0
    %434 = vmatprep.subr.mxu0 0.0
    %435 = vmatpush1.msra.mxu0 %v169
    %436 = vmatprep.subr.mxu0 0.0
    %437 = vmatpush1.msra.mxu0 %v166
    %438 = vmatprep.subr.mxu0 0.0
    %439 = vmatpush1.msra.mxu0 %v163
    %440 = vmatprep.subr.mxu0 0.0
    %441 = vmatpush1.msra.mxu0 %v160
    %442 = vmatprep.subr.mxu0 0.0
    %443 = vmatpush1.msra.mxu0 %v157
    %444 = vmatprep.subr.mxu0 0.0
    %445 = vmatpush1.msra.mxu0 %v154
    %446 = vmatprep.subr.mxu0 0.0
    %447 = vmatpush1.msra.mxu0 %v151
    %448 = vmatprep.subr.mxu0 0.0
    %449 = vmatpush1.msra.mxu0 %v148
    %450 = vmatprep.subr.mxu0 0.0
    %451 = vmatpush1.msra.mxu0 %v145
    %452 = vmatprep.subr.mxu0 0.0
    %453 = vmatpush1.msra.mxu0 %v142
    %454 = vmatprep.subr.mxu0 0.0
    %455 = vmatpush1.msra.mxu0 %v139
    %456 = vmatprep.subr.mxu0 0.0
    %457 = vmatpush1.msra.mxu0 %v136
    %458 = vmatprep.subr.mxu0 0.0
    %459 = vmatpush1.msra.mxu0 %v133
    %460 = vmatprep.subr.mxu0 0.0
    %461 = vmatpush1.msra.mxu0 %v130
    %462 = vmatprep.subr.mxu0 0.0
    %463 = vmatpush1.msra.mxu0 %v127
    %464 = vmatprep.subr.mxu0 0.0
    %465 = vmatpush1.msra.mxu0 %v124
    %466 = vmatprep.subr.mxu0 0.0
    %467 = vmatpush2.msra.mxu0 0.0
    %468 = vmatprep.subr.mxu0 0.0
    %469 = vmatpush2.msra.mxu0 0.0
    %470 = vmatprep.subr.mxu0 0.0
    %471 = vmatpush2.msra.mxu0 0.0
    %472 = vmatprep.subr.mxu0 0.0
    %473 = vmatpush2.msra.mxu0 0.0
    %474 = vmatprep.subr.mxu0 0.0
    %475 = vmatpush2.msra.mxu0 0.0
    %476 = vmatprep.subr.mxu0 0.0
    %477 = vmatpush2.msra.mxu0 0.0
    %478 = vmatprep.subr.mxu0 0.0
    %479 = vmatpush2.msra.mxu0 0.0
    %480 = vmatprep.subr.mxu0 0.0
    %481 = vmatpush2.msra.mxu0 0.0
    %482 = vmatprep.subr.mxu0 0.0
    %483 = vmatpush2.msra.mxu0 0.0
    %484 = vmatprep.subr.mxu0 0.0
    %485 = vmatpush2.msra.mxu0 0.0
    %486 = vmatprep.subr.mxu0 0.0
    %487 = vmatpush2.msra.mxu0 0.0
    %488 = vmatprep.subr.mxu0 0.0
    %489 = vmatpush2.msra.mxu0 0.0
    %490 = vmatprep.subr.mxu0 0.0
    %491 = vmatpush2.msra.mxu0 0.0
    %492 = vmatprep.subr.mxu0 0.0
    %493 = vmatpush2.msra.mxu0 0.0
    %494 = vmatprep.subr.mxu0 0.0
    %495 = vmatpush2.msra.mxu0 0.0
    %496 = vmatprep.subr.mxu0 0.0
    %497 = vmatpush2.msra.mxu0 0.0
    %498 = vmatprep.mubr.f32.mxu0 0.0
    %499 = vmatmul.mubr.f32.gmra.mxu0 %v187
    %v500 = vpop.f32.mrf.mxu0
    %v501 = vadd.f32 0.0, %v500
    %v502 = vpop.f32.mrf.mxu0
    %503 = vdwg.mxu0
    %v506 = vcombine.low %v430, %v432
    %v508 = vunpack.c.l.s4 1983009808
    %v509 = vunpack.c.0.s8 %v508
    %v510 = vlaneseq
    %v511 = vshrl.u32 %v510, 7
    %v512 = vsub.s32 %v509, %v511
    %v513 = vrot.slane %v506, %v512
    %v515 = vadd.f32 %v362, %v513
    %v516 = vxor.u32 %v515, 2147483648
    %v517 = vmul.f32 %v516, 1.442695
    %v518 = vpow.pop %v517
    %v519 = vadd.f32 %v518, 1.0
    %v520 = vrcp.pop %v519
    %v521 = vmul.f32 1.0, %v520
    %v522 = vadd.f32 %v501, %v183
    %v523 = vmul.f32 %v521, %v522
    %v525 = vrot.slane %v362, 4
    %v527 = vadd.f32 %v525, %v523
    %v528 = vtanh.pop %v527
    %v529 = vsub.f32 %v187, %v528
    %v531 = vrot.slane %v521, 2
    %v533 = vmul.f32 %v531, %v529
    %v534 = vadd.f32 %v528, %v533
    %s535 = scalar_lea.vmem [#allocation3], 6
    %v536 = vld [vmem:[%s535] sm:$0x3f]
    %537 = vmatprep.subr.mxu0 %v119
    %538 = vmatpush1.msra.mxu0 %v118
    %539 = vmatprep.subr.mxu0 %v116
    %540 = vmatpush1.msra.mxu0 %v115
    %541 = vmatprep.subr.mxu0 %v113
    %542 = vmatpush1.msra.mxu0 %v112
    %543 = vmatprep.subr.mxu0 %v110
    %544 = vmatpush1.msra.mxu0 %v109
    %545 = vmatprep.subr.mxu0 %v107
    %546 = vmatpush1.msra.mxu0 %v106
    %547 = vmatprep.subr.mxu0 %v104
    %548 = vmatpush1.msra.mxu0 %v103
    %549 = vmatprep.subr.mxu0 %v101
    %550 = vmatpush1.msra.mxu0 %v100
    %551 = vmatprep.subr.mxu0 %v98
    %552 = vmatpush1.msra.mxu0 %v97
    %553 = vmatprep.subr.mxu0 %v95
    %554 = vmatpush1.msra.mxu0 %v94
    %555 = vmatprep.subr.mxu0 %v92
    %556 = vmatpush1.msra.mxu0 %v91
    %557 = vmatprep.subr.mxu0 %v89
    %558 = vmatpush1.msra.mxu0 %v88
    %559 = vmatprep.subr.mxu0 %v86
    %560 = vmatpush1.msra.mxu0 %v85
    %561 = vmatprep.subr.mxu0 %v83
    %562 = vmatpush1.msra.mxu0 %v82
    %563 = vmatprep.subr.mxu0 %v80
    %564 = vmatpush1.msra.mxu0 %v79
    %565 = vmatprep.subr.mxu0 %v77
    %566 = vmatpush1.msra.mxu0 %v76
    %567 = vmatprep.subr.mxu0 %v74
    %568 = vmatpush1.msra.mxu0 %v73
    %569 = vmatprep.subr.mxu0 0.0
    %570 = vmatpush2.msra.mxu0 0.0
    %571 = vmatprep.subr.mxu0 0.0
    %572 = vmatpush2.msra.mxu0 0.0
    %573 = vmatprep.subr.mxu0 0.0
    %574 = vmatpush2.msra.mxu0 0.0
    %575 = vmatprep.subr.mxu0 0.0
    %576 = vmatpush2.msra.mxu0 0.0
    %577 = vmatprep.subr.mxu0 0.0
    %578 = vmatpush2.msra.mxu0 0.0
    %579 = vmatprep.subr.mxu0 0.0
    %580 = vmatpush2.msra.mxu0 0.0
    %581 = vmatprep.subr.mxu0 0.0
    %582 = vmatpush2.msra.mxu0 0.0
    %583 = vmatprep.subr.mxu0 0.0
    %584 = vmatpush2.msra.mxu0 0.0
    %585 = vmatprep.subr.mxu0 0.0
    %586 = vmatpush2.msra.mxu0 0.0
    %587 = vmatprep.subr.mxu0 0.0
    %588 = vmatpush2.msra.mxu0 0.0
    %589 = vmatprep.subr.mxu0 0.0
    %590 = vmatpush2.msra.mxu0 0.0
    %591 = vmatprep.subr.mxu0 0.0
    %592 = vmatpush2.msra.mxu0 0.0
    %593 = vmatprep.subr.mxu0 0.0
    %594 = vmatpush2.msra.mxu0 0.0
    %595 = vmatprep.subr.mxu0 0.0
    %596 = vmatpush2.msra.mxu0 0.0
    %597 = vmatprep.subr.mxu0 0.0
    %598 = vmatpush2.msra.mxu0 0.0
    %599 = vmatprep.subr.mxu0 0.0
    %600 = vmatpush2.msra.mxu0 0.0
    %601 = vmatprep.mubr.f32.mxu0 0.0
    %602 = vmatmul.mubr.f32.gmra.mxu0 %v360
    %v603 = vpop.f32.mrf.mxu0
    %v604 = vadd.f32 0.0, %v603
    %v605 = vpop.f32.mrf.mxu0
    %v606 = vadd.f32 0.0, %v605
    %607 = vdwg.mxu0
    %608 = vmatprep.subr.mxu0 0.0
    %609 = vmatpush1.msra.mxu0 %v120
    %610 = vmatprep.subr.mxu0 0.0
    %611 = vmatpush1.msra.mxu0 %v117
    %612 = vmatprep.subr.mxu0 0.0
    %613 = vmatpush1.msra.mxu0 %v114
    %614 = vmatprep.subr.mxu0 0.0
    %615 = vmatpush1.msra.mxu0 %v111
    %616 = vmatprep.subr.mxu0 0.0
    %617 = vmatpush1.msra.mxu0 %v108
    %618 = vmatprep.subr.mxu0 0.0
    %619 = vmatpush1.msra.mxu0 %v105
    %620 = vmatprep.subr.mxu0 0.0
    %621 = vmatpush1.msra.mxu0 %v102
    %622 = vmatprep.subr.mxu0 0.0
    %623 = vmatpush1.msra.mxu0 %v99
    %624 = vmatprep.subr.mxu0 0.0
    %625 = vmatpush1.msra.mxu0 %v96
    %626 = vmatprep.subr.mxu0 0.0
    %627 = vmatpush1.msra.mxu0 %v93
    %628 = vmatprep.subr.mxu0 0.0
    %629 = vmatpush1.msra.mxu0 %v90
    %630 = vmatprep.subr.mxu0 0.0
    %631 = vmatpush1.msra.mxu0 %v87
    %632 = vmatprep.subr.mxu0 0.0
    %633 = vmatpush1.msra.mxu0 %v84
    %634 = vmatprep.subr.mxu0 0.0
    %635 = vmatpush1.msra.mxu0 %v81
    %636 = vmatprep.subr.mxu0 0.0
    %637 = vmatpush1.msra.mxu0 %v78
    %638 = vmatprep.subr.mxu0 0.0
    %639 = vmatpush1.msra.mxu0 %v75
    %640 = vmatprep.subr.mxu0 0.0
    %641 = vmatpush2.msra.mxu0 0.0
    %642 = vmatprep.subr.mxu0 0.0
    %643 = vmatpush2.msra.mxu0 0.0
    %644 = vmatprep.subr.mxu0 0.0
    %645 = vmatpush2.msra.mxu0 0.0
    %646 = vmatprep.subr.mxu0 0.0
    %647 = vmatpush2.msra.mxu0 0.0
    %648 = vmatprep.subr.mxu0 0.0
    %649 = vmatpush2.msra.mxu0 0.0
    %650 = vmatprep.subr.mxu0 0.0
    %651 = vmatpush2.msra.mxu0 0.0
    %652 = vmatprep.subr.mxu0 0.0
    %653 = vmatpush2.msra.mxu0 0.0
    %654 = vmatprep.subr.mxu0 0.0
    %655 = vmatpush2.msra.mxu0 0.0
    %656 = vmatprep.subr.mxu0 0.0
    %657 = vmatpush2.msra.mxu0 0.0
    %658 = vmatprep.subr.mxu0 0.0
    %659 = vmatpush2.msra.mxu0 0.0
    %660 = vmatprep.subr.mxu0 0.0
    %661 = vmatpush2.msra.mxu0 0.0
    %662 = vmatprep.subr.mxu0 0.0
    %663 = vmatpush2.msra.mxu0 0.0
    %664 = vmatprep.subr.mxu0 0.0
    %665 = vmatpush2.msra.mxu0 0.0
    %666 = vmatprep.subr.mxu0 0.0
    %667 = vmatpush2.msra.mxu0 0.0
    %668 = vmatprep.subr.mxu0 0.0
    %669 = vmatpush2.msra.mxu0 0.0
    %670 = vmatprep.subr.mxu0 0.0
    %671 = vmatpush2.msra.mxu0 0.0
    %672 = vmatprep.mubr.f32.mxu0 0.0
    %673 = vmatmul.mubr.f32.gmra.mxu0 %v360
    %v674 = vpop.f32.mrf.mxu0
    %v675 = vadd.f32 0.0, %v674
    %v676 = vpop.f32.mrf.mxu0
    %677 = vdwg.mxu0
    %v680 = vcombine.low %v604, %v606
    %v682 = vunpack.c.l.s4 1983009808
    %v683 = vunpack.c.0.s8 %v682
    %v684 = vlaneseq
    %v685 = vshrl.u32 %v684, 7
    %v686 = vsub.s32 %v683, %v685
    %v687 = vrot.slane %v680, %v686
    %v689 = vadd.f32 %v536, %v687
    %v690 = vxor.u32 %v689, 2147483648
    %v691 = vmul.f32 %v690, 1.442695
    %v692 = vpow.pop %v691
    %v693 = vadd.f32 %v692, 1.0
    %v694 = vrcp.pop %v693
    %v695 = vmul.f32 1.0, %v694
    %v696 = vadd.f32 %v675, %v175
    %v697 = vmul.f32 %v695, %v696
    %v699 = vrot.slane %v536, 4
    %v701 = vadd.f32 %v699, %v697
    %v702 = vtanh.pop %v701
    %v703 = vsub.f32 %v360, %v702
    %v705 = vrot.slane %v695, 2
    %v707 = vmul.f32 %v705, %v703
    %v708 = vadd.f32 %v702, %v707
    %s709 = scalar_lea.vmem [#allocation6], 36
    %v710 = vld [vmem:[%s709] sm:$0x3f]
    %711 = vmatprep.subr.mxu0 %v168
    %712 = vmatpush1.msra.mxu0 %v167
    %713 = vmatprep.subr.mxu0 %v165
    %714 = vmatpush1.msra.mxu0 %v164
    %715 = vmatprep.subr.mxu0 %v162
    %716 = vmatpush1.msra.mxu0 %v161
    %717 = vmatprep.subr.mxu0 %v159
    %718 = vmatpush1.msra.mxu0 %v158
    %719 = vmatprep.subr.mxu0 %v156
    %720 = vmatpush1.msra.mxu0 %v155
    %721 = vmatprep.subr.mxu0 %v153
    %722 = vmatpush1.msra.mxu0 %v152
    %723 = vmatprep.subr.mxu0 %v150
    %724 = vmatpush1.msra.mxu0 %v149
    %725 = vmatprep.subr.mxu0 %v147
    %726 = vmatpush1.msra.mxu0 %v146
    %727 = vmatprep.subr.mxu0 %v144
    %728 = vmatpush1.msra.mxu0 %v143
    %729 = vmatprep.subr.mxu0 %v141
    %730 = vmatpush1.msra.mxu0 %v140
    %731 = vmatprep.subr.mxu0 %v138
    %732 = vmatpush1.msra.mxu0 %v137
    %733 = vmatprep.subr.mxu0 %v135
    %734 = vmatpush1.msra.mxu0 %v134
    %735 = vmatprep.subr.mxu0 %v132
    %736 = vmatpush1.msra.mxu0 %v131
    %737 = vmatprep.subr.mxu0 %v129
    %738 = vmatpush1.msra.mxu0 %v128
    %739 = vmatprep.subr.mxu0 %v126
    %740 = vmatpush1.msra.mxu0 %v125
    %741 = vmatprep.subr.mxu0 %v123
    %742 = vmatpush1.msra.mxu0 %v122
    %743 = vmatprep.subr.mxu0 0.0
    %744 = vmatpush2.msra.mxu0 0.0
    %745 = vmatprep.subr.mxu0 0.0
    %746 = vmatpush2.msra.mxu0 0.0
    %747 = vmatprep.subr.mxu0 0.0
    %748 = vmatpush2.msra.mxu0 0.0
    %749 = vmatprep.subr.mxu0 0.0
    %750 = vmatpush2.msra.mxu0 0.0
    %751 = vmatprep.subr.mxu0 0.0
    %752 = vmatpush2.msra.mxu0 0.0
    %753 = vmatprep.subr.mxu0 0.0
    %754 = vmatpush2.msra.mxu0 0.0
    %755 = vmatprep.subr.mxu0 0.0
    %756 = vmatpush2.msra.mxu0 0.0
    %757 = vmatprep.subr.mxu0 0.0
    %758 = vmatpush2.msra.mxu0 0.0
    %759 = vmatprep.subr.mxu0 0.0
    %760 = vmatpush2.msra.mxu0 0.0
    %761 = vmatprep.subr.mxu0 0.0
    %762 = vmatpush2.msra.mxu0 0.0
    %763 = vmatprep.subr.mxu0 0.0
    %764 = vmatpush2.msra.mxu0 0.0
    %765 = vmatprep.subr.mxu0 0.0
    %766 = vmatpush2.msra.mxu0 0.0
    %767 = vmatprep.subr.mxu0 0.0
    %768 = vmatpush2.msra.mxu0 0.0
    %769 = vmatprep.subr.mxu0 0.0
    %770 = vmatpush2.msra.mxu0 0.0
    %771 = vmatprep.subr.mxu0 0.0
    %772 = vmatpush2.msra.mxu0 0.0
    %773 = vmatprep.subr.mxu0 0.0
    %774 = vmatpush2.msra.mxu0 0.0
    %775 = vmatprep.mubr.f32.mxu0 0.0
    %776 = vmatmul.mubr.f32.gmra.mxu0 %v534
    %v777 = vpop.f32.mrf.mxu0
    %v778 = vadd.f32 0.0, %v777
    %v779 = vpop.f32.mrf.mxu0
    %v780 = vadd.f32 0.0, %v779
    %781 = vdwg.mxu0
    %782 = vmatprep.subr.mxu0 0.0
    %783 = vmatpush1.msra.mxu0 %v169
    %784 = vmatprep.subr.mxu0 0.0
    %785 = vmatpush1.msra.mxu0 %v166
    %786 = vmatprep.subr.mxu0 0.0
    %787 = vmatpush1.msra.mxu0 %v163
    %788 = vmatprep.subr.mxu0 0.0
    %789 = vmatpush1.msra.mxu0 %v160
    %790 = vmatprep.subr.mxu0 0.0
    %791 = vmatpush1.msra.mxu0 %v157
    %792 = vmatprep.subr.mxu0 0.0
    %793 = vmatpush1.msra.mxu0 %v154
    %794 = vmatprep.subr.mxu0 0.0
    %795 = vmatpush1.msra.mxu0 %v151
    %796 = vmatprep.subr.mxu0 0.0
    %797 = vmatpush1.msra.mxu0 %v148
    %798 = vmatprep.subr.mxu0 0.0
    %799 = vmatpush1.msra.mxu0 %v145
    %800 = vmatprep.subr.mxu0 0.0
    %801 = vmatpush1.msra.mxu0 %v142
    %802 = vmatprep.subr.mxu0 0.0
    %803 = vmatpush1.msra.mxu0 %v139
    %804 = vmatprep.subr.mxu0 0.0
    %805 = vmatpush1.msra.mxu0 %v136
    %806 = vmatprep.subr.mxu0 0.0
    %807 = vmatpush1.msra.mxu0 %v133
    %808 = vmatprep.subr.mxu0 0.0
    %809 = vmatpush1.msra.mxu0 %v130
    %810 = vmatprep.subr.mxu0 0.0
    %811 = vmatpush1.msra.mxu0 %v127
    %812 = vmatprep.subr.mxu0 0.0
    %813 = vmatpush1.msra.mxu0 %v124
    %814 = vmatprep.subr.mxu0 0.0
    %815 = vmatpush2.msra.mxu0 0.0
    %816 = vmatprep.subr.mxu0 0.0
    %817 = vmatpush2.msra.mxu0 0.0
    %818 = vmatprep.subr.mxu0 0.0
    %819 = vmatpush2.msra.mxu0 0.0
    %820 = vmatprep.subr.mxu0 0.0
    %821 = vmatpush2.msra.mxu0 0.0
    %822 = vmatprep.subr.mxu0 0.0
    %823 = vmatpush2.msra.mxu0 0.0
    %824 = vmatprep.subr.mxu0 0.0
    %825 = vmatpush2.msra.mxu0 0.0
    %826 = vmatprep.subr.mxu0 0.0
    %827 = vmatpush2.msra.mxu0 0.0
    %828 = vmatprep.subr.mxu0 0.0
    %829 = vmatpush2.msra.mxu0 0.0
    %830 = vmatprep.subr.mxu0 0.0
    %831 = vmatpush2.msra.mxu0 0.0
    %832 = vmatprep.subr.mxu0 0.0
    %833 = vmatpush2.msra.mxu0 0.0
    %834 = vmatprep.subr.mxu0 0.0
    %835 = vmatpush2.msra.mxu0 0.0
    %836 = vmatprep.subr.mxu0 0.0
    %837 = vmatpush2.msra.mxu0 0.0
    %838 = vmatprep.subr.mxu0 0.0
    %839 = vmatpush2.msra.mxu0 0.0
    %840 = vmatprep.subr.mxu0 0.0
    %841 = vmatpush2.msra.mxu0 0.0
    %842 = vmatprep.subr.mxu0 0.0
    %843 = vmatpush2.msra.mxu0 0.0
    %844 = vmatprep.subr.mxu0 0.0
    %845 = vmatpush2.msra.mxu0 0.0
    %846 = vmatprep.mubr.f32.mxu0 0.0
    %847 = vmatmul.mubr.f32.gmra.mxu0 %v534
    %v848 = vpop.f32.mrf.mxu0
    %v849 = vadd.f32 0.0, %v848
    %v850 = vpop.f32.mrf.mxu0
    %851 = vdwg.mxu0
    %v854 = vcombine.low %v778, %v780
    %v856 = vunpack.c.l.s4 1983009808
    %v857 = vunpack.c.0.s8 %v856
    %v858 = vlaneseq
    %v859 = vshrl.u32 %v858, 7
    %v860 = vsub.s32 %v857, %v859
    %v861 = vrot.slane %v854, %v860
    %v863 = vadd.f32 %v710, %v861
    %v864 = vxor.u32 %v863, 2147483648
    %v865 = vmul.f32 %v864, 1.442695
    %v866 = vpow.pop %v865
    %v867 = vadd.f32 %v866, 1.0
    %v868 = vrcp.pop %v867
    %v869 = vmul.f32 1.0, %v868
    %v870 = vadd.f32 %v849, %v183
    %v871 = vmul.f32 %v869, %v870
    %v873 = vrot.slane %v710, 4
    %v875 = vadd.f32 %v873, %v871
    %v876 = vtanh.pop %v875
    %v877 = vsub.f32 %v534, %v876
    %v879 = vrot.slane %v869, 2
    %v881 = vmul.f32 %v879, %v877
    %v882 = vadd.f32 %v876, %v881
    %s883 = scalar_lea.vmem [#allocation3], 12
    %v884 = vld [vmem:[%s883] sm:$0x3f]
    %885 = vmatprep.subr.mxu0 %v119
    %886 = vmatpush1.msra.mxu0 %v118
    %887 = vmatprep.subr.mxu0 %v116
    %888 = vmatpush1.msra.mxu0 %v115
    %889 = vmatprep.subr.mxu0 %v113
    %890 = vmatpush1.msra.mxu0 %v112
    %891 = vmatprep.subr.mxu0 %v110
    %892 = vmatpush1.msra.mxu0 %v109
    %893 = vmatprep.subr.mxu0 %v107
    %894 = vmatpush1.msra.mxu0 %v106
    %895 = vmatprep.subr.mxu0 %v104
    %896 = vmatpush1.msra.mxu0 %v103
    %897 = vmatprep.subr.mxu0 %v101
    %898 = vmatpush1.msra.mxu0 %v100
    %899 = vmatprep.subr.mxu0 %v98
    %900 = vmatpush1.msra.mxu0 %v97
    %901 = vmatprep.subr.mxu0 %v95
    %902 = vmatpush1.msra.mxu0 %v94
    %903 = vmatprep.subr.mxu0 %v92
    %904 = vmatpush1.msra.mxu0 %v91
    %905 = vmatprep.subr.mxu0 %v89
    %906 = vmatpush1.msra.mxu0 %v88
    %907 = vmatprep.subr.mxu0 %v86
    %908 = vmatpush1.msra.mxu0 %v85
    %909 = vmatprep.subr.mxu0 %v83
    %910 = vmatpush1.msra.mxu0 %v82
    %911 = vmatprep.subr.mxu0 %v80
    %912 = vmatpush1.msra.mxu0 %v79
    %913 = vmatprep.subr.mxu0 %v77
    %914 = vmatpush1.msra.mxu0 %v76
    %915 = vmatprep.subr.mxu0 %v74
    %916 = vmatpush1.msra.mxu0 %v73
    %917 = vmatprep.subr.mxu0 0.0
    %918 = vmatpush2.msra.mxu0 0.0
    %919 = vmatprep.subr.mxu0 0.0
    %920 = vmatpush2.msra.mxu0 0.0
    %921 = vmatprep.subr.mxu0 0.0
    %922 = vmatpush2.msra.mxu0 0.0
    %923 = vmatprep.subr.mxu0 0.0
    %924 = vmatpush2.msra.mxu0 0.0
    %925 = vmatprep.subr.mxu0 0.0
    %926 = vmatpush2.msra.mxu0 0.0
    %927 = vmatprep.subr.mxu0 0.0
    %928 = vmatpush2.msra.mxu0 0.0
    %929 = vmatprep.subr.mxu0 0.0
    %930 = vmatpush2.msra.mxu0 0.0
    %931 = vmatprep.subr.mxu0 0.0
    %932 = vmatpush2.msra.mxu0 0.0
    %933 = vmatprep.subr.mxu0 0.0
    %934 = vmatpush2.msra.mxu0 0.0
    %935 = vmatprep.subr.mxu0 0.0
    %936 = vmatpush2.msra.mxu0 0.0
    %937 = vmatprep.subr.mxu0 0.0
    %938 = vmatpush2.msra.mxu0 0.0
    %939 = vmatprep.subr.mxu0 0.0
    %940 = vmatpush2.msra.mxu0 0.0
    %941 = vmatprep.subr.mxu0 0.0
    %942 = vmatpush2.msra.mxu0 0.0
    %943 = vmatprep.subr.mxu0 0.0
    %944 = vmatpush2.msra.mxu0 0.0
    %945 = vmatprep.subr.mxu0 0.0
    %946 = vmatpush2.msra.mxu0 0.0
    %947 = vmatprep.subr.mxu0 0.0
    %948 = vmatpush2.msra.mxu0 0.0
    %949 = vmatprep.mubr.f32.mxu0 0.0
    %950 = vmatmul.mubr.f32.gmra.mxu0 %v708
    %v951 = vpop.f32.mrf.mxu0
    %v952 = vadd.f32 0.0, %v951
    %v953 = vpop.f32.mrf.mxu0
    %v954 = vadd.f32 0.0, %v953
    %955 = vdwg.mxu0
    %956 = vmatprep.subr.mxu0 0.0
    %957 = vmatpush1.msra.mxu0 %v120
    %958 = vmatprep.subr.mxu0 0.0
    %959 = vmatpush1.msra.mxu0 %v117
    %960 = vmatprep.subr.mxu0 0.0
    %961 = vmatpush1.msra.mxu0 %v114
    %962 = vmatprep.subr.mxu0 0.0
    %963 = vmatpush1.msra.mxu0 %v111
    %964 = vmatprep.subr.mxu0 0.0
    %965 = vmatpush1.msra.mxu0 %v108
    %966 = vmatprep.subr.mxu0 0.0
    %967 = vmatpush1.msra.mxu0 %v105
    %968 = vmatprep.subr.mxu0 0.0
    %969 = vmatpush1.msra.mxu0 %v102
    %970 = vmatprep.subr.mxu0 0.0
    %971 = vmatpush1.msra.mxu0 %v99
    %972 = vmatprep.subr.mxu0 0.0
    %973 = vmatpush1.msra.mxu0 %v96
    %974 = vmatprep.subr.mxu0 0.0
    %975 = vmatpush1.msra.mxu0 %v93
    %976 = vmatprep.subr.mxu0 0.0
    %977 = vmatpush1.msra.mxu0 %v90
    %978 = vmatprep.subr.mxu0 0.0
    %979 = vmatpush1.msra.mxu0 %v87
    %980 = vmatprep.subr.mxu0 0.0
    %981 = vmatpush1.msra.mxu0 %v84
    %982 = vmatprep.subr.mxu0 0.0
    %983 = vmatpush1.msra.mxu0 %v81
    %984 = vmatprep.subr.mxu0 0.0
    %985 = vmatpush1.msra.mxu0 %v78
    %986 = vmatprep.subr.mxu0 0.0
    %987 = vmatpush1.msra.mxu0 %v75
    %988 = vmatprep.subr.mxu0 0.0
    %989 = vmatpush2.msra.mxu0 0.0
    %990 = vmatprep.subr.mxu0 0.0
    %991 = vmatpush2.msra.mxu0 0.0
    %992 = vmatprep.subr.mxu0 0.0
    %993 = vmatpush2.msra.mxu0 0.0
    %994 = vmatprep.subr.mxu0 0.0
    %995 = vmatpush2.msra.mxu0 0.0
    %996 = vmatprep.subr.mxu0 0.0
    %997 = vmatpush2.msra.mxu0 0.0
    %998 = vmatprep.subr.mxu0 0.0
    %999 = vmatpush2.msra.mxu0 0.0
    %1000 = vmatprep.subr.mxu0 0.0
    %1001 = vmatpush2.msra.mxu0 0.0
    %1002 = vmatprep.subr.mxu0 0.0
    %1003 = vmatpush2.msra.mxu0 0.0
    %1004 = vmatprep.subr.mxu0 0.0
    %1005 = vmatpush2.msra.mxu0 0.0
    %1006 = vmatprep.subr.mxu0 0.0
    %1007 = vmatpush2.msra.mxu0 0.0
    %1008 = vmatprep.subr.mxu0 0.0
    %1009 = vmatpush2.msra.mxu0 0.0
    %1010 = vmatprep.subr.mxu0 0.0
    %1011 = vmatpush2.msra.mxu0 0.0
    %1012 = vmatprep.subr.mxu0 0.0
    %1013 = vmatpush2.msra.mxu0 0.0
    %1014 = vmatprep.subr.mxu0 0.0
    %1015 = vmatpush2.msra.mxu0 0.0
    %1016 = vmatprep.subr.mxu0 0.0
    %1017 = vmatpush2.msra.mxu0 0.0
    %1018 = vmatprep.subr.mxu0 0.0
    %1019 = vmatpush2.msra.mxu0 0.0
    %1020 = vmatprep.mubr.f32.mxu0 0.0
    %1021 = vmatmul.mubr.f32.gmra.mxu0 %v708
    %v1022 = vpop.f32.mrf.mxu0
    %v1023 = vadd.f32 0.0, %v1022
    %v1024 = vpop.f32.mrf.mxu0
    %1025 = vdwg.mxu0
    %v1028 = vcombine.low %v952, %v954
    %v1030 = vunpack.c.l.s4 1983009808
    %v1031 = vunpack.c.0.s8 %v1030
    %v1032 = vlaneseq
    %v1033 = vshrl.u32 %v1032, 7
    %v1034 = vsub.s32 %v1031, %v1033
    %v1035 = vrot.slane %v1028, %v1034
    %v1037 = vadd.f32 %v884, %v1035
    %v1038 = vxor.u32 %v1037, 2147483648
    %v1039 = vmul.f32 %v1038, 1.442695
    %v1040 = vpow.pop %v1039
    %v1041 = vadd.f32 %v1040, 1.0
    %v1042 = vrcp.pop %v1041
    %v1043 = vmul.f32 1.0, %v1042
    %v1044 = vadd.f32 %v1023, %v175
    %v1045 = vmul.f32 %v1043, %v1044
    %v1047 = vrot.slane %v884, 4
    %v1049 = vadd.f32 %v1047, %v1045
    %v1050 = vtanh.pop %v1049
    %v1051 = vsub.f32 %v708, %v1050
    %v1053 = vrot.slane %v1043, 2
    %v1055 = vmul.f32 %v1053, %v1051
    %v1056 = vadd.f32 %v1050, %v1055
    %s1057 = scalar_lea.vmem [#allocation6], 30
    %v1058 = vld [vmem:[%s1057] sm:$0x3f]
    %1059 = vmatprep.subr.mxu0 %v168
    %1060 = vmatpush1.msra.mxu0 %v167
    %1061 = vmatprep.subr.mxu0 %v165
    %1062 = vmatpush1.msra.mxu0 %v164
    %1063 = vmatprep.subr.mxu0 %v162
    %1064 = vmatpush1.msra.mxu0 %v161
    %1065 = vmatprep.subr.mxu0 %v159
    %1066 = vmatpush1.msra.mxu0 %v158
    %1067 = vmatprep.subr.mxu0 %v156
    %1068 = vmatpush1.msra.mxu0 %v155
    %1069 = vmatprep.subr.mxu0 %v153
    %1070 = vmatpush1.msra.mxu0 %v152
    %1071 = vmatprep.subr.mxu0 %v150
    %1072 = vmatpush1.msra.mxu0 %v149
    %1073 = vmatprep.subr.mxu0 %v147
    %1074 = vmatpush1.msra.mxu0 %v146
    %1075 = vmatprep.subr.mxu0 %v144
    %1076 = vmatpush1.msra.mxu0 %v143
    %1077 = vmatprep.subr.mxu0 %v141
    %1078 = vmatpush1.msra.mxu0 %v140
    %1079 = vmatprep.subr.mxu0 %v138
    %1080 = vmatpush1.msra.mxu0 %v137
    %1081 = vmatprep.subr.mxu0 %v135
    %1082 = vmatpush1.msra.mxu0 %v134
    %1083 = vmatprep.subr.mxu0 %v132
    %1084 = vmatpush1.msra.mxu0 %v131
    %1085 = vmatprep.subr.mxu0 %v129
    %1086 = vmatpush1.msra.mxu0 %v128
    %1087 = vmatprep.subr.mxu0 %v126
    %1088 = vmatpush1.msra.mxu0 %v125
    %1089 = vmatprep.subr.mxu0 %v123
    %1090 = vmatpush1.msra.mxu0 %v122
    %1091 = vmatprep.subr.mxu0 0.0
    %1092 = vmatpush2.msra.mxu0 0.0
    %1093 = vmatprep.subr.mxu0 0.0
    %1094 = vmatpush2.msra.mxu0 0.0
    %1095 = vmatprep.subr.mxu0 0.0
    %1096 = vmatpush2.msra.mxu0 0.0
    %1097 = vmatprep.subr.mxu0 0.0
    %1098 = vmatpush2.msra.mxu0 0.0
    %1099 = vmatprep.subr.mxu0 0.0
    %1100 = vmatpush2.msra.mxu0 0.0
    %1101 = vmatprep.subr.mxu0 0.0
    %1102 = vmatpush2.msra.mxu0 0.0
    %1103 = vmatprep.subr.mxu0 0.0
    %1104 = vmatpush2.msra.mxu0 0.0
    %1105 = vmatprep.subr.mxu0 0.0
    %1106 = vmatpush2.msra.mxu0 0.0
    %1107 = vmatprep.subr.mxu0 0.0
    %1108 = vmatpush2.msra.mxu0 0.0
    %1109 = vmatprep.subr.mxu0 0.0
    %1110 = vmatpush2.msra.mxu0 0.0
    %1111 = vmatprep.subr.mxu0 0.0
    %1112 = vmatpush2.msra.mxu0 0.0
    %1113 = vmatprep.subr.mxu0 0.0
    %1114 = vmatpush2.msra.mxu0 0.0
    %1115 = vmatprep.subr.mxu0 0.0
    %1116 = vmatpush2.msra.mxu0 0.0
    %1117 = vmatprep.subr.mxu0 0.0
    %1118 = vmatpush2.msra.mxu0 0.0
    %1119 = vmatprep.subr.mxu0 0.0
    %1120 = vmatpush2.msra.mxu0 0.0
    %1121 = vmatprep.subr.mxu0 0.0
    %1122 = vmatpush2.msra.mxu0 0.0
    %1123 = vmatprep.mubr.f32.mxu0 0.0
    %1124 = vmatmul.mubr.f32.gmra.mxu0 %v882
    %v1125 = vpop.f32.mrf.mxu0
    %v1126 = vadd.f32 0.0, %v1125
    %v1127 = vpop.f32.mrf.mxu0
    %v1128 = vadd.f32 0.0, %v1127
    %1129 = vdwg.mxu0
    %1130 = vmatprep.subr.mxu0 0.0
    %1131 = vmatpush1.msra.mxu0 %v169
    %1132 = vmatprep.subr.mxu0 0.0
    %1133 = vmatpush1.msra.mxu0 %v166
    %1134 = vmatprep.subr.mxu0 0.0
    %1135 = vmatpush1.msra.mxu0 %v163
    %1136 = vmatprep.subr.mxu0 0.0
    %1137 = vmatpush1.msra.mxu0 %v160
    %1138 = vmatprep.subr.mxu0 0.0
    %1139 = vmatpush1.msra.mxu0 %v157
    %1140 = vmatprep.subr.mxu0 0.0
    %1141 = vmatpush1.msra.mxu0 %v154
    %1142 = vmatprep.subr.mxu0 0.0
    %1143 = vmatpush1.msra.mxu0 %v151
    %1144 = vmatprep.subr.mxu0 0.0
    %1145 = vmatpush1.msra.mxu0 %v148
    %1146 = vmatprep.subr.mxu0 0.0
    %1147 = vmatpush1.msra.mxu0 %v145
    %1148 = vmatprep.subr.mxu0 0.0
    %1149 = vmatpush1.msra.mxu0 %v142
    %1150 = vmatprep.subr.mxu0 0.0
    %1151 = vmatpush1.msra.mxu0 %v139
    %1152 = vmatprep.subr.mxu0 0.0
    %1153 = vmatpush1.msra.mxu0 %v136
    %1154 = vmatprep.subr.mxu0 0.0
    %1155 = vmatpush1.msra.mxu0 %v133
    %1156 = vmatprep.subr.mxu0 0.0
    %1157 = vmatpush1.msra.mxu0 %v130
    %1158 = vmatprep.subr.mxu0 0.0
    %1159 = vmatpush1.msra.mxu0 %v127
    %1160 = vmatprep.subr.mxu0 0.0
    %1161 = vmatpush1.msra.mxu0 %v124
    %1162 = vmatprep.subr.mxu0 0.0
    %1163 = vmatpush2.msra.mxu0 0.0
    %1164 = vmatprep.subr.mxu0 0.0
    %1165 = vmatpush2.msra.mxu0 0.0
    %1166 = vmatprep.subr.mxu0 0.0
    %1167 = vmatpush2.msra.mxu0 0.0
    %1168 = vmatprep.subr.mxu0 0.0
    %1169 = vmatpush2.msra.mxu0 0.0
    %1170 = vmatprep.subr.mxu0 0.0
    %1171 = vmatpush2.msra.mxu0 0.0
    %1172 = vmatprep.subr.mxu0 0.0
    %1173 = vmatpush2.msra.mxu0 0.0
    %1174 = vmatprep.subr.mxu0 0.0
    %1175 = vmatpush2.msra.mxu0 0.0
    %1176 = vmatprep.subr.mxu0 0.0
    %1177 = vmatpush2.msra.mxu0 0.0
    %1178 = vmatprep.subr.mxu0 0.0
    %1179 = vmatpush2.msra.mxu0 0.0
    %1180 = vmatprep.subr.mxu0 0.0
    %1181 = vmatpush2.msra.mxu0 0.0
    %1182 = vmatprep.subr.mxu0 0.0
    %1183 = vmatpush2.msra.mxu0 0.0
    %1184 = vmatprep.subr.mxu0 0.0
    %1185 = vmatpush2.msra.mxu0 0.0
    %1186 = vmatprep.subr.mxu0 0.0
    %1187 = vmatpush2.msra.mxu0 0.0
    %1188 = vmatprep.subr.mxu0 0.0
    %1189 = vmatpush2.msra.mxu0 0.0
    %1190 = vmatprep.subr.mxu0 0.0
    %1191 = vmatpush2.msra.mxu0 0.0
    %1192 = vmatprep.subr.mxu0 0.0
    %1193 = vmatpush2.msra.mxu0 0.0
    %1194 = vmatprep.mubr.f32.mxu0 0.0
    %1195 = vmatmul.mubr.f32.gmra.mxu0 %v882
    %v1196 = vpop.f32.mrf.mxu0
    %v1197 = vadd.f32 0.0, %v1196
    %v1198 = vpop.f32.mrf.mxu0
    %1199 = vdwg.mxu0
    %v1202 = vcombine.low %v1126, %v1128
    %v1204 = vunpack.c.l.s4 1983009808
    %v1205 = vunpack.c.0.s8 %v1204
    %v1206 = vlaneseq
    %v1207 = vshrl.u32 %v1206, 7
    %v1208 = vsub.s32 %v1205, %v1207
    %v1209 = vrot.slane %v1202, %v1208
    %v1211 = vadd.f32 %v1058, %v1209
    %v1212 = vxor.u32 %v1211, 2147483648
    %v1213 = vmul.f32 %v1212, 1.442695
    %v1214 = vpow.pop %v1213
    %v1215 = vadd.f32 %v1214, 1.0
    %v1216 = vrcp.pop %v1215
    %v1217 = vmul.f32 1.0, %v1216
    %v1218 = vadd.f32 %v1197, %v183
    %v1219 = vmul.f32 %v1217, %v1218
    %v1221 = vrot.slane %v1058, 4
    %v1223 = vadd.f32 %v1221, %v1219
    %v1224 = vtanh.pop %v1223
    %v1225 = vsub.f32 %v882, %v1224
    %v1227 = vrot.slane %v1217, 2
    %v1229 = vmul.f32 %v1227, %v1225
    %v1230 = vadd.f32 %v1224, %v1229
    %s1231 = scalar_lea.vmem [#allocation3], 18
    %v1232 = vld [vmem:[%s1231] sm:$0x3f]
    %1233 = vmatprep.subr.mxu0 %v119
    %1234 = vmatpush1.msra.mxu0 %v118
    %1235 = vmatprep.subr.mxu0 %v116
    %1236 = vmatpush1.msra.mxu0 %v115
    %1237 = vmatprep.subr.mxu0 %v113
    %1238 = vmatpush1.msra.mxu0 %v112
    %1239 = vmatprep.subr.mxu0 %v110
    %1240 = vmatpush1.msra.mxu0 %v109
    %1241 = vmatprep.subr.mxu0 %v107
    %1242 = vmatpush1.msra.mxu0 %v106
    %1243 = vmatprep.subr.mxu0 %v104
    %1244 = vmatpush1.msra.mxu0 %v103
    %1245 = vmatprep.subr.mxu0 %v101
    %1246 = vmatpush1.msra.mxu0 %v100
    %1247 = vmatprep.subr.mxu0 %v98
    %1248 = vmatpush1.msra.mxu0 %v97
    %1249 = vmatprep.subr.mxu0 %v95
    %1250 = vmatpush1.msra.mxu0 %v94
    %1251 = vmatprep.subr.mxu0 %v92
    %1252 = vmatpush1.msra.mxu0 %v91
    %1253 = vmatprep.subr.mxu0 %v89
    %1254 = vmatpush1.msra.mxu0 %v88
    %1255 = vmatprep.subr.mxu0 %v86
    %1256 = vmatpush1.msra.mxu0 %v85
    %1257 = vmatprep.subr.mxu0 %v83
    %1258 = vmatpush1.msra.mxu0 %v82
    %1259 = vmatprep.subr.mxu0 %v80
    %1260 = vmatpush1.msra.mxu0 %v79
    %1261 = vmatprep.subr.mxu0 %v77
    %1262 = vmatpush1.msra.mxu0 %v76
    %1263 = vmatprep.subr.mxu0 %v74
    %1264 = vmatpush1.msra.mxu0 %v73
    %1265 = vmatprep.subr.mxu0 0.0
    %1266 = vmatpush2.msra.mxu0 0.0
    %1267 = vmatprep.subr.mxu0 0.0
    %1268 = vmatpush2.msra.mxu0 0.0
    %1269 = vmatprep.subr.mxu0 0.0
    %1270 = vmatpush2.msra.mxu0 0.0
    %1271 = vmatprep.subr.mxu0 0.0
    %1272 = vmatpush2.msra.mxu0 0.0
    %1273 = vmatprep.subr.mxu0 0.0
    %1274 = vmatpush2.msra.mxu0 0.0
    %1275 = vmatprep.subr.mxu0 0.0
    %1276 = vmatpush2.msra.mxu0 0.0
    %1277 = vmatprep.subr.mxu0 0.0
    %1278 = vmatpush2.msra.mxu0 0.0
    %1279 = vmatprep.subr.mxu0 0.0
    %1280 = vmatpush2.msra.mxu0 0.0
    %1281 = vmatprep.subr.mxu0 0.0
    %1282 = vmatpush2.msra.mxu0 0.0
    %1283 = vmatprep.subr.mxu0 0.0
    %1284 = vmatpush2.msra.mxu0 0.0
    %1285 = vmatprep.subr.mxu0 0.0
    %1286 = vmatpush2.msra.mxu0 0.0
    %1287 = vmatprep.subr.mxu0 0.0
    %1288 = vmatpush2.msra.mxu0 0.0
    %1289 = vmatprep.subr.mxu0 0.0
    %1290 = vmatpush2.msra.mxu0 0.0
    %1291 = vmatprep.subr.mxu0 0.0
    %1292 = vmatpush2.msra.mxu0 0.0
    %1293 = vmatprep.subr.mxu0 0.0
    %1294 = vmatpush2.msra.mxu0 0.0
    %1295 = vmatprep.subr.mxu0 0.0
    %1296 = vmatpush2.msra.mxu0 0.0
    %1297 = vmatprep.mubr.f32.mxu0 0.0
    %1298 = vmatmul.mubr.f32.gmra.mxu0 %v1056
    %v1299 = vpop.f32.mrf.mxu0
    %v1300 = vadd.f32 0.0, %v1299
    %v1301 = vpop.f32.mrf.mxu0
    %v1302 = vadd.f32 0.0, %v1301
    %1303 = vdwg.mxu0
    %1304 = vmatprep.subr.mxu0 0.0
    %1305 = vmatpush1.msra.mxu0 %v120
    %1306 = vmatprep.subr.mxu0 0.0
    %1307 = vmatpush1.msra.mxu0 %v117
    %1308 = vmatprep.subr.mxu0 0.0
    %1309 = vmatpush1.msra.mxu0 %v114
    %1310 = vmatprep.subr.mxu0 0.0
    %1311 = vmatpush1.msra.mxu0 %v111
    %1312 = vmatprep.subr.mxu0 0.0
    %1313 = vmatpush1.msra.mxu0 %v108
    %1314 = vmatprep.subr.mxu0 0.0
    %1315 = vmatpush1.msra.mxu0 %v105
    %1316 = vmatprep.subr.mxu0 0.0
    %1317 = vmatpush1.msra.mxu0 %v102
    %1318 = vmatprep.subr.mxu0 0.0
    %1319 = vmatpush1.msra.mxu0 %v99
    %1320 = vmatprep.subr.mxu0 0.0
    %1321 = vmatpush1.msra.mxu0 %v96
    %1322 = vmatprep.subr.mxu0 0.0
    %1323 = vmatpush1.msra.mxu0 %v93
    %1324 = vmatprep.subr.mxu0 0.0
    %1325 = vmatpush1.msra.mxu0 %v90
    %1326 = vmatprep.subr.mxu0 0.0
    %1327 = vmatpush1.msra.mxu0 %v87
    %1328 = vmatprep.subr.mxu0 0.0
    %1329 = vmatpush1.msra.mxu0 %v84
    %1330 = vmatprep.subr.mxu0 0.0
    %1331 = vmatpush1.msra.mxu0 %v81
    %1332 = vmatprep.subr.mxu0 0.0
    %1333 = vmatpush1.msra.mxu0 %v78
    %1334 = vmatprep.subr.mxu0 0.0
    %1335 = vmatpush1.msra.mxu0 %v75
    %1336 = vmatprep.subr.mxu0 0.0
    %1337 = vmatpush2.msra.mxu0 0.0
    %1338 = vmatprep.subr.mxu0 0.0
    %1339 = vmatpush2.msra.mxu0 0.0
    %1340 = vmatprep.subr.mxu0 0.0
    %1341 = vmatpush2.msra.mxu0 0.0
    %1342 = vmatprep.subr.mxu0 0.0
    %1343 = vmatpush2.msra.mxu0 0.0
    %1344 = vmatprep.subr.mxu0 0.0
    %1345 = vmatpush2.msra.mxu0 0.0
    %1346 = vmatprep.subr.mxu0 0.0
    %1347 = vmatpush2.msra.mxu0 0.0
    %1348 = vmatprep.subr.mxu0 0.0
    %1349 = vmatpush2.msra.mxu0 0.0
    %1350 = vmatprep.subr.mxu0 0.0
    %1351 = vmatpush2.msra.mxu0 0.0
    %1352 = vmatprep.subr.mxu0 0.0
    %1353 = vmatpush2.msra.mxu0 0.0
    %1354 = vmatprep.subr.mxu0 0.0
    %1355 = vmatpush2.msra.mxu0 0.0
    %1356 = vmatprep.subr.mxu0 0.0
    %1357 = vmatpush2.msra.mxu0 0.0
    %1358 = vmatprep.subr.mxu0 0.0
    %1359 = vmatpush2.msra.mxu0 0.0
    %1360 = vmatprep.subr.mxu0 0.0
    %1361 = vmatpush2.msra.mxu0 0.0
    %1362 = vmatprep.subr.mxu0 0.0
    %1363 = vmatpush2.msra.mxu0 0.0
    %1364 = vmatprep.subr.mxu0 0.0
    %1365 = vmatpush2.msra.mxu0 0.0
    %1366 = vmatprep.subr.mxu0 0.0
    %1367 = vmatpush2.msra.mxu0 0.0
    %1368 = vmatprep.mubr.f32.mxu0 0.0
    %1369 = vmatmul.mubr.f32.gmra.mxu0 %v1056
    %v1370 = vpop.f32.mrf.mxu0
    %v1371 = vadd.f32 0.0, %v1370
    %v1372 = vpop.f32.mrf.mxu0
    %1373 = vdwg.mxu0
    %v1376 = vcombine.low %v1300, %v1302
    %v1378 = vunpack.c.l.s4 1983009808
    %v1379 = vunpack.c.0.s8 %v1378
    %v1380 = vlaneseq
    %v1381 = vshrl.u32 %v1380, 7
    %v1382 = vsub.s32 %v1379, %v1381
    %v1383 = vrot.slane %v1376, %v1382
    %v1385 = vadd.f32 %v1232, %v1383
    %v1386 = vxor.u32 %v1385, 2147483648
    %v1387 = vmul.f32 %v1386, 1.442695
    %v1388 = vpow.pop %v1387
    %v1389 = vadd.f32 %v1388, 1.0
    %v1390 = vrcp.pop %v1389
    %v1391 = vmul.f32 1.0, %v1390
    %v1392 = vadd.f32 %v1371, %v175
    %v1393 = vmul.f32 %v1391, %v1392
    %v1395 = vrot.slane %v1232, 4
    %v1397 = vadd.f32 %v1395, %v1393
    %v1398 = vtanh.pop %v1397
    %v1399 = vsub.f32 %v1056, %v1398
    %v1401 = vrot.slane %v1391, 2
    %v1403 = vmul.f32 %v1401, %v1399
    %v1404 = vadd.f32 %v1398, %v1403
    %s1405 = scalar_lea.vmem [#allocation6], 24
    %v1406 = vld [vmem:[%s1405] sm:$0x3f]
    %1407 = vmatprep.subr.mxu0 %v168
    %1408 = vmatpush1.msra.mxu0 %v167
    %1409 = vmatprep.subr.mxu0 %v165
    %1410 = vmatpush1.msra.mxu0 %v164
    %1411 = vmatprep.subr.mxu0 %v162
    %1412 = vmatpush1.msra.mxu0 %v161
    %1413 = vmatprep.subr.mxu0 %v159
    %1414 = vmatpush1.msra.mxu0 %v158
    %1415 = vmatprep.subr.mxu0 %v156
    %1416 = vmatpush1.msra.mxu0 %v155
    %1417 = vmatprep.subr.mxu0 %v153
    %1418 = vmatpush1.msra.mxu0 %v152
    %1419 = vmatprep.subr.mxu0 %v150
    %1420 = vmatpush1.msra.mxu0 %v149
    %1421 = vmatprep.subr.mxu0 %v147
    %1422 = vmatpush1.msra.mxu0 %v146
    %1423 = vmatprep.subr.mxu0 %v144
    %1424 = vmatpush1.msra.mxu0 %v143
    %1425 = vmatprep.subr.mxu0 %v141
    %1426 = vmatpush1.msra.mxu0 %v140
    %1427 = vmatprep.subr.mxu0 %v138
    %1428 = vmatpush1.msra.mxu0 %v137
    %1429 = vmatprep.subr.mxu0 %v135
    %1430 = vmatpush1.msra.mxu0 %v134
    %1431 = vmatprep.subr.mxu0 %v132
    %1432 = vmatpush1.msra.mxu0 %v131
    %1433 = vmatprep.subr.mxu0 %v129
    %1434 = vmatpush1.msra.mxu0 %v128
    %1435 = vmatprep.subr.mxu0 %v126
    %1436 = vmatpush1.msra.mxu0 %v125
    %1437 = vmatprep.subr.mxu0 %v123
    %1438 = vmatpush1.msra.mxu0 %v122
    %1439 = vmatprep.subr.mxu0 0.0
    %1440 = vmatpush2.msra.mxu0 0.0
    %1441 = vmatprep.subr.mxu0 0.0
    %1442 = vmatpush2.msra.mxu0 0.0
    %1443 = vmatprep.subr.mxu0 0.0
    %1444 = vmatpush2.msra.mxu0 0.0
    %1445 = vmatprep.subr.mxu0 0.0
    %1446 = vmatpush2.msra.mxu0 0.0
    %1447 = vmatprep.subr.mxu0 0.0
    %1448 = vmatpush2.msra.mxu0 0.0
    %1449 = vmatprep.subr.mxu0 0.0
    %1450 = vmatpush2.msra.mxu0 0.0
    %1451 = vmatprep.subr.mxu0 0.0
    %1452 = vmatpush2.msra.mxu0 0.0
    %1453 = vmatprep.subr.mxu0 0.0
    %1454 = vmatpush2.msra.mxu0 0.0
    %1455 = vmatprep.subr.mxu0 0.0
    %1456 = vmatpush2.msra.mxu0 0.0
    %1457 = vmatprep.subr.mxu0 0.0
    %1458 = vmatpush2.msra.mxu0 0.0
    %1459 = vmatprep.subr.mxu0 0.0
    %1460 = vmatpush2.msra.mxu0 0.0
    %1461 = vmatprep.subr.mxu0 0.0
    %1462 = vmatpush2.msra.mxu0 0.0
    %1463 = vmatprep.subr.mxu0 0.0
    %1464 = vmatpush2.msra.mxu0 0.0
    %1465 = vmatprep.subr.mxu0 0.0
    %1466 = vmatpush2.msra.mxu0 0.0
    %1467 = vmatprep.subr.mxu0 0.0
    %1468 = vmatpush2.msra.mxu0 0.0
    %1469 = vmatprep.subr.mxu0 0.0
    %1470 = vmatpush2.msra.mxu0 0.0
    %1471 = vmatprep.mubr.f32.mxu0 0.0
    %1472 = vmatmul.mubr.f32.gmra.mxu0 %v1230
    %v1473 = vpop.f32.mrf.mxu0
    %v1474 = vadd.f32 0.0, %v1473
    %v1475 = vpop.f32.mrf.mxu0
    %v1476 = vadd.f32 0.0, %v1475
    %1477 = vdwg.mxu0
    %1478 = vmatprep.subr.mxu0 0.0
    %1479 = vmatpush1.msra.mxu0 %v169
    %1480 = vmatprep.subr.mxu0 0.0
    %1481 = vmatpush1.msra.mxu0 %v166
    %1482 = vmatprep.subr.mxu0 0.0
    %1483 = vmatpush1.msra.mxu0 %v163
    %1484 = vmatprep.subr.mxu0 0.0
    %1485 = vmatpush1.msra.mxu0 %v160
    %1486 = vmatprep.subr.mxu0 0.0
    %1487 = vmatpush1.msra.mxu0 %v157
    %1488 = vmatprep.subr.mxu0 0.0
    %1489 = vmatpush1.msra.mxu0 %v154
    %1490 = vmatprep.subr.mxu0 0.0
    %1491 = vmatpush1.msra.mxu0 %v151
    %1492 = vmatprep.subr.mxu0 0.0
    %1493 = vmatpush1.msra.mxu0 %v148
    %1494 = vmatprep.subr.mxu0 0.0
    %1495 = vmatpush1.msra.mxu0 %v145
    %1496 = vmatprep.subr.mxu0 0.0
    %1497 = vmatpush1.msra.mxu0 %v142
    %1498 = vmatprep.subr.mxu0 0.0
    %1499 = vmatpush1.msra.mxu0 %v139
    %1500 = vmatprep.subr.mxu0 0.0
    %1501 = vmatpush1.msra.mxu0 %v136
    %1502 = vmatprep.subr.mxu0 0.0
    %1503 = vmatpush1.msra.mxu0 %v133
    %1504 = vmatprep.subr.mxu0 0.0
    %1505 = vmatpush1.msra.mxu0 %v130
    %1506 = vmatprep.subr.mxu0 0.0
    %1507 = vmatpush1.msra.mxu0 %v127
    %1508 = vmatprep.subr.mxu0 0.0
    %1509 = vmatpush1.msra.mxu0 %v124
    %1510 = vmatprep.subr.mxu0 0.0
    %1511 = vmatpush2.msra.mxu0 0.0
    %1512 = vmatprep.subr.mxu0 0.0
    %1513 = vmatpush2.msra.mxu0 0.0
    %1514 = vmatprep.subr.mxu0 0.0
    %1515 = vmatpush2.msra.mxu0 0.0
    %1516 = vmatprep.subr.mxu0 0.0
    %1517 = vmatpush2.msra.mxu0 0.0
    %1518 = vmatprep.subr.mxu0 0.0
    %1519 = vmatpush2.msra.mxu0 0.0
    %1520 = vmatprep.subr.mxu0 0.0
    %1521 = vmatpush2.msra.mxu0 0.0
    %1522 = vmatprep.subr.mxu0 0.0
    %1523 = vmatpush2.msra.mxu0 0.0
    %1524 = vmatprep.subr.mxu0 0.0
    %1525 = vmatpush2.msra.mxu0 0.0
    %1526 = vmatprep.subr.mxu0 0.0
    %1527 = vmatpush2.msra.mxu0 0.0
    %1528 = vmatprep.subr.mxu0 0.0
    %1529 = vmatpush2.msra.mxu0 0.0
    %1530 = vmatprep.subr.mxu0 0.0
    %1531 = vmatpush2.msra.mxu0 0.0
    %1532 = vmatprep.subr.mxu0 0.0
    %1533 = vmatpush2.msra.mxu0 0.0
    %1534 = vmatprep.subr.mxu0 0.0
    %1535 = vmatpush2.msra.mxu0 0.0
    %1536 = vmatprep.subr.mxu0 0.0
    %1537 = vmatpush2.msra.mxu0 0.0
    %1538 = vmatprep.subr.mxu0 0.0
    %1539 = vmatpush2.msra.mxu0 0.0
    %1540 = vmatprep.subr.mxu0 0.0
    %1541 = vmatpush2.msra.mxu0 0.0
    %1542 = vmatprep.mubr.f32.mxu0 0.0
    %1543 = vmatmul.mubr.f32.gmra.mxu0 %v1230
    %v1544 = vpop.f32.mrf.mxu0
    %v1545 = vadd.f32 0.0, %v1544
    %v1546 = vpop.f32.mrf.mxu0
    %1547 = vdwg.mxu0
    %v1550 = vcombine.low %v1474, %v1476
    %v1552 = vunpack.c.l.s4 1983009808
    %v1553 = vunpack.c.0.s8 %v1552
    %v1554 = vlaneseq
    %v1555 = vshrl.u32 %v1554, 7
    %v1556 = vsub.s32 %v1553, %v1555
    %v1557 = vrot.slane %v1550, %v1556
    %v1559 = vadd.f32 %v1406, %v1557
    %v1560 = vxor.u32 %v1559, 2147483648
    %v1561 = vmul.f32 %v1560, 1.442695
    %v1562 = vpow.pop %v1561
    %v1563 = vadd.f32 %v1562, 1.0
    %v1564 = vrcp.pop %v1563
    %v1565 = vmul.f32 1.0, %v1564
    %v1566 = vadd.f32 %v1545, %v183
    %v1567 = vmul.f32 %v1565, %v1566
    %v1569 = vrot.slane %v1406, 4
    %v1571 = vadd.f32 %v1569, %v1567
    %v1572 = vtanh.pop %v1571
    %v1573 = vsub.f32 %v1230, %v1572
    %v1575 = vrot.slane %v1565, 2
    %v1577 = vmul.f32 %v1575, %v1573
    %v1578 = vadd.f32 %v1572, %v1577
    %s1579 = scalar_lea.vmem [#allocation3], 24
    %v1580 = vld [vmem:[%s1579] sm:$0x3f]
    %1581 = vmatprep.subr.mxu0 %v119
    %1582 = vmatpush1.msra.mxu0 %v118
    %1583 = vmatprep.subr.mxu0 %v116
    %1584 = vmatpush1.msra.mxu0 %v115
    %1585 = vmatprep.subr.mxu0 %v113
    %1586 = vmatpush1.msra.mxu0 %v112
    %1587 = vmatprep.subr.mxu0 %v110
    %1588 = vmatpush1.msra.mxu0 %v109
    %1589 = vmatprep.subr.mxu0 %v107
    %1590 = vmatpush1.msra.mxu0 %v106
    %1591 = vmatprep.subr.mxu0 %v104
    %1592 = vmatpush1.msra.mxu0 %v103
    %1593 = vmatprep.subr.mxu0 %v101
    %1594 = vmatpush1.msra.mxu0 %v100
    %1595 = vmatprep.subr.mxu0 %v98
    %1596 = vmatpush1.msra.mxu0 %v97
    %1597 = vmatprep.subr.mxu0 %v95
    %1598 = vmatpush1.msra.mxu0 %v94
    %1599 = vmatprep.subr.mxu0 %v92
    %1600 = vmatpush1.msra.mxu0 %v91
    %1601 = vmatprep.subr.mxu0 %v89
    %1602 = vmatpush1.msra.mxu0 %v88
    %1603 = vmatprep.subr.mxu0 %v86
    %1604 = vmatpush1.msra.mxu0 %v85
    %1605 = vmatprep.subr.mxu0 %v83
    %1606 = vmatpush1.msra.mxu0 %v82
    %1607 = vmatprep.subr.mxu0 %v80
    %1608 = vmatpush1.msra.mxu0 %v79
    %1609 = vmatprep.subr.mxu0 %v77
    %1610 = vmatpush1.msra.mxu0 %v76
    %1611 = vmatprep.subr.mxu0 %v74
    %1612 = vmatpush1.msra.mxu0 %v73
    %1613 = vmatprep.subr.mxu0 0.0
    %1614 = vmatpush2.msra.mxu0 0.0
    %1615 = vmatprep.subr.mxu0 0.0
    %1616 = vmatpush2.msra.mxu0 0.0
    %1617 = vmatprep.subr.mxu0 0.0
    %1618 = vmatpush2.msra.mxu0 0.0
    %1619 = vmatprep.subr.mxu0 0.0
    %1620 = vmatpush2.msra.mxu0 0.0
    %1621 = vmatprep.subr.mxu0 0.0
    %1622 = vmatpush2.msra.mxu0 0.0
    %1623 = vmatprep.subr.mxu0 0.0
    %1624 = vmatpush2.msra.mxu0 0.0
    %1625 = vmatprep.subr.mxu0 0.0
    %1626 = vmatpush2.msra.mxu0 0.0
    %1627 = vmatprep.subr.mxu0 0.0
    %1628 = vmatpush2.msra.mxu0 0.0
    %1629 = vmatprep.subr.mxu0 0.0
    %1630 = vmatpush2.msra.mxu0 0.0
    %1631 = vmatprep.subr.mxu0 0.0
    %1632 = vmatpush2.msra.mxu0 0.0
    %1633 = vmatprep.subr.mxu0 0.0
    %1634 = vmatpush2.msra.mxu0 0.0
    %1635 = vmatprep.subr.mxu0 0.0
    %1636 = vmatpush2.msra.mxu0 0.0
    %1637 = vmatprep.subr.mxu0 0.0
    %1638 = vmatpush2.msra.mxu0 0.0
    %1639 = vmatprep.subr.mxu0 0.0
    %1640 = vmatpush2.msra.mxu0 0.0
    %1641 = vmatprep.subr.mxu0 0.0
    %1642 = vmatpush2.msra.mxu0 0.0
    %1643 = vmatprep.subr.mxu0 0.0
    %1644 = vmatpush2.msra.mxu0 0.0
    %1645 = vmatprep.mubr.f32.mxu0 0.0
    %1646 = vmatmul.mubr.f32.gmra.mxu0 %v1404
    %v1647 = vpop.f32.mrf.mxu0
    %v1648 = vadd.f32 0.0, %v1647
    %v1649 = vpop.f32.mrf.mxu0
    %v1650 = vadd.f32 0.0, %v1649
    %1651 = vdwg.mxu0
    %1652 = vmatprep.subr.mxu0 0.0
    %1653 = vmatpush1.msra.mxu0 %v120
    %1654 = vmatprep.subr.mxu0 0.0
    %1655 = vmatpush1.msra.mxu0 %v117
    %1656 = vmatprep.subr.mxu0 0.0
    %1657 = vmatpush1.msra.mxu0 %v114
    %1658 = vmatprep.subr.mxu0 0.0
    %1659 = vmatpush1.msra.mxu0 %v111
    %1660 = vmatprep.subr.mxu0 0.0
    %1661 = vmatpush1.msra.mxu0 %v108
    %1662 = vmatprep.subr.mxu0 0.0
    %1663 = vmatpush1.msra.mxu0 %v105
    %1664 = vmatprep.subr.mxu0 0.0
    %1665 = vmatpush1.msra.mxu0 %v102
    %1666 = vmatprep.subr.mxu0 0.0
    %1667 = vmatpush1.msra.mxu0 %v99
    %1668 = vmatprep.subr.mxu0 0.0
    %1669 = vmatpush1.msra.mxu0 %v96
    %1670 = vmatprep.subr.mxu0 0.0
    %1671 = vmatpush1.msra.mxu0 %v93
    %1672 = vmatprep.subr.mxu0 0.0
    %1673 = vmatpush1.msra.mxu0 %v90
    %1674 = vmatprep.subr.mxu0 0.0
    %1675 = vmatpush1.msra.mxu0 %v87
    %1676 = vmatprep.subr.mxu0 0.0
    %1677 = vmatpush1.msra.mxu0 %v84
    %1678 = vmatprep.subr.mxu0 0.0
    %1679 = vmatpush1.msra.mxu0 %v81
    %1680 = vmatprep.subr.mxu0 0.0
    %1681 = vmatpush1.msra.mxu0 %v78
    %1682 = vmatprep.subr.mxu0 0.0
    %1683 = vmatpush1.msra.mxu0 %v75
    %1684 = vmatprep.subr.mxu0 0.0
    %1685 = vmatpush2.msra.mxu0 0.0
    %1686 = vmatprep.subr.mxu0 0.0
    %1687 = vmatpush2.msra.mxu0 0.0
    %1688 = vmatprep.subr.mxu0 0.0
    %1689 = vmatpush2.msra.mxu0 0.0
    %1690 = vmatprep.subr.mxu0 0.0
    %1691 = vmatpush2.msra.mxu0 0.0
    %1692 = vmatprep.subr.mxu0 0.0
    %1693 = vmatpush2.msra.mxu0 0.0
    %1694 = vmatprep.subr.mxu0 0.0
    %1695 = vmatpush2.msra.mxu0 0.0
    %1696 = vmatprep.subr.mxu0 0.0
    %1697 = vmatpush2.msra.mxu0 0.0
    %1698 = vmatprep.subr.mxu0 0.0
    %1699 = vmatpush2.msra.mxu0 0.0
    %1700 = vmatprep.subr.mxu0 0.0
    %1701 = vmatpush2.msra.mxu0 0.0
    %1702 = vmatprep.subr.mxu0 0.0
    %1703 = vmatpush2.msra.mxu0 0.0
    %1704 = vmatprep.subr.mxu0 0.0
    %1705 = vmatpush2.msra.mxu0 0.0
    %1706 = vmatprep.subr.mxu0 0.0
    %1707 = vmatpush2.msra.mxu0 0.0
    %1708 = vmatprep.subr.mxu0 0.0
    %1709 = vmatpush2.msra.mxu0 0.0
    %1710 = vmatprep.subr.mxu0 0.0
    %1711 = vmatpush2.msra.mxu0 0.0
    %1712 = vmatprep.subr.mxu0 0.0
    %1713 = vmatpush2.msra.mxu0 0.0
    %1714 = vmatprep.subr.mxu0 0.0
    %1715 = vmatpush2.msra.mxu0 0.0
    %1716 = vmatprep.mubr.f32.mxu0 0.0
    %1717 = vmatmul.mubr.f32.gmra.mxu0 %v1404
    %v1718 = vpop.f32.mrf.mxu0
    %v1719 = vadd.f32 0.0, %v1718
    %v1720 = vpop.f32.mrf.mxu0
    %1721 = vdwg.mxu0
    %v1724 = vcombine.low %v1648, %v1650
    %v1726 = vunpack.c.l.s4 1983009808
    %v1727 = vunpack.c.0.s8 %v1726
    %v1728 = vlaneseq
    %v1729 = vshrl.u32 %v1728, 7
    %v1730 = vsub.s32 %v1727, %v1729
    %v1731 = vrot.slane %v1724, %v1730
    %v1733 = vadd.f32 %v1580, %v1731
    %v1734 = vxor.u32 %v1733, 2147483648
    %v1735 = vmul.f32 %v1734, 1.442695
    %v1736 = vpow.pop %v1735
    %v1737 = vadd.f32 %v1736, 1.0
    %v1738 = vrcp.pop %v1737
    %v1739 = vmul.f32 1.0, %v1738
    %v1740 = vadd.f32 %v1719, %v175
    %v1741 = vmul.f32 %v1739, %v1740
    %v1743 = vrot.slane %v1580, 4
    %v1745 = vadd.f32 %v1743, %v1741
    %v1746 = vtanh.pop %v1745
    %v1747 = vsub.f32 %v1404, %v1746
    %v1749 = vrot.slane %v1739, 2
    %v1751 = vmul.f32 %v1749, %v1747
    %v1752 = vadd.f32 %v1746, %v1751
    %s1753 = scalar_lea.vmem [#allocation6], 18
    %v1754 = vld [vmem:[%s1753] sm:$0x3f]
    %1755 = vmatprep.subr.mxu0 %v168
    %1756 = vmatpush1.msra.mxu0 %v167
    %1757 = vmatprep.subr.mxu0 %v165
    %1758 = vmatpush1.msra.mxu0 %v164
    %1759 = vmatprep.subr.mxu0 %v162
    %1760 = vmatpush1.msra.mxu0 %v161
    %1761 = vmatprep.subr.mxu0 %v159
    %1762 = vmatpush1.msra.mxu0 %v158
    %1763 = vmatprep.subr.mxu0 %v156
    %1764 = vmatpush1.msra.mxu0 %v155
    %1765 = vmatprep.subr.mxu0 %v153
    %1766 = vmatpush1.msra.mxu0 %v152
    %1767 = vmatprep.subr.mxu0 %v150
    %1768 = vmatpush1.msra.mxu0 %v149
    %1769 = vmatprep.subr.mxu0 %v147
    %1770 = vmatpush1.msra.mxu0 %v146
    %1771 = vmatprep.subr.mxu0 %v144
    %1772 = vmatpush1.msra.mxu0 %v143
    %1773 = vmatprep.subr.mxu0 %v141
    %1774 = vmatpush1.msra.mxu0 %v140
    %1775 = vmatprep.subr.mxu0 %v138
    %1776 = vmatpush1.msra.mxu0 %v137
    %1777 = vmatprep.subr.mxu0 %v135
    %1778 = vmatpush1.msra.mxu0 %v134
    %1779 = vmatprep.subr.mxu0 %v132
    %1780 = vmatpush1.msra.mxu0 %v131
    %1781 = vmatprep.subr.mxu0 %v129
    %1782 = vmatpush1.msra.mxu0 %v128
    %1783 = vmatprep.subr.mxu0 %v126
    %1784 = vmatpush1.msra.mxu0 %v125
    %1785 = vmatprep.subr.mxu0 %v123
    %1786 = vmatpush1.msra.mxu0 %v122
    %1787 = vmatprep.subr.mxu0 0.0
    %1788 = vmatpush2.msra.mxu0 0.0
    %1789 = vmatprep.subr.mxu0 0.0
    %1790 = vmatpush2.msra.mxu0 0.0
    %1791 = vmatprep.subr.mxu0 0.0
    %1792 = vmatpush2.msra.mxu0 0.0
    %1793 = vmatprep.subr.mxu0 0.0
    %1794 = vmatpush2.msra.mxu0 0.0
    %1795 = vmatprep.subr.mxu0 0.0
    %1796 = vmatpush2.msra.mxu0 0.0
    %1797 = vmatprep.subr.mxu0 0.0
    %1798 = vmatpush2.msra.mxu0 0.0
    %1799 = vmatprep.subr.mxu0 0.0
    %1800 = vmatpush2.msra.mxu0 0.0
    %1801 = vmatprep.subr.mxu0 0.0
    %1802 = vmatpush2.msra.mxu0 0.0
    %1803 = vmatprep.subr.mxu0 0.0
    %1804 = vmatpush2.msra.mxu0 0.0
    %1805 = vmatprep.subr.mxu0 0.0
    %1806 = vmatpush2.msra.mxu0 0.0
    %1807 = vmatprep.subr.mxu0 0.0
    %1808 = vmatpush2.msra.mxu0 0.0
    %1809 = vmatprep.subr.mxu0 0.0
    %1810 = vmatpush2.msra.mxu0 0.0
    %1811 = vmatprep.subr.mxu0 0.0
    %1812 = vmatpush2.msra.mxu0 0.0
    %1813 = vmatprep.subr.mxu0 0.0
    %1814 = vmatpush2.msra.mxu0 0.0
    %1815 = vmatprep.subr.mxu0 0.0
    %1816 = vmatpush2.msra.mxu0 0.0
    %1817 = vmatprep.subr.mxu0 0.0
    %1818 = vmatpush2.msra.mxu0 0.0
    %1819 = vmatprep.mubr.f32.mxu0 0.0
    %1820 = vmatmul.mubr.f32.gmra.mxu0 %v1578
    %v1821 = vpop.f32.mrf.mxu0
    %v1822 = vadd.f32 0.0, %v1821
    %v1823 = vpop.f32.mrf.mxu0
    %v1824 = vadd.f32 0.0, %v1823
    %1825 = vdwg.mxu0
    %1826 = vmatprep.subr.mxu0 0.0
    %1827 = vmatpush1.msra.mxu0 %v169
    %1828 = vmatprep.subr.mxu0 0.0
    %1829 = vmatpush1.msra.mxu0 %v166
    %1830 = vmatprep.subr.mxu0 0.0
    %1831 = vmatpush1.msra.mxu0 %v163
    %1832 = vmatprep.subr.mxu0 0.0
    %1833 = vmatpush1.msra.mxu0 %v160
    %1834 = vmatprep.subr.mxu0 0.0
    %1835 = vmatpush1.msra.mxu0 %v157
    %1836 = vmatprep.subr.mxu0 0.0
    %1837 = vmatpush1.msra.mxu0 %v154
    %1838 = vmatprep.subr.mxu0 0.0
    %1839 = vmatpush1.msra.mxu0 %v151
    %1840 = vmatprep.subr.mxu0 0.0
    %1841 = vmatpush1.msra.mxu0 %v148
    %1842 = vmatprep.subr.mxu0 0.0
    %1843 = vmatpush1.msra.mxu0 %v145
    %1844 = vmatprep.subr.mxu0 0.0
    %1845 = vmatpush1.msra.mxu0 %v142
    %1846 = vmatprep.subr.mxu0 0.0
    %1847 = vmatpush1.msra.mxu0 %v139
    %1848 = vmatprep.subr.mxu0 0.0
    %1849 = vmatpush1.msra.mxu0 %v136
    %1850 = vmatprep.subr.mxu0 0.0
    %1851 = vmatpush1.msra.mxu0 %v133
    %1852 = vmatprep.subr.mxu0 0.0
    %1853 = vmatpush1.msra.mxu0 %v130
    %1854 = vmatprep.subr.mxu0 0.0
    %1855 = vmatpush1.msra.mxu0 %v127
    %1856 = vmatprep.subr.mxu0 0.0
    %1857 = vmatpush1.msra.mxu0 %v124
    %1858 = vmatprep.subr.mxu0 0.0
    %1859 = vmatpush2.msra.mxu0 0.0
    %1860 = vmatprep.subr.mxu0 0.0
    %1861 = vmatpush2.msra.mxu0 0.0
    %1862 = vmatprep.subr.mxu0 0.0
    %1863 = vmatpush2.msra.mxu0 0.0
    %1864 = vmatprep.subr.mxu0 0.0
    %1865 = vmatpush2.msra.mxu0 0.0
    %1866 = vmatprep.subr.mxu0 0.0
    %1867 = vmatpush2.msra.mxu0 0.0
    %1868 = vmatprep.subr.mxu0 0.0
    %1869 = vmatpush2.msra.mxu0 0.0
    %1870 = vmatprep.subr.mxu0 0.0
    %1871 = vmatpush2.msra.mxu0 0.0
    %1872 = vmatprep.subr.mxu0 0.0
    %1873 = vmatpush2.msra.mxu0 0.0
    %1874 = vmatprep.subr.mxu0 0.0
    %1875 = vmatpush2.msra.mxu0 0.0
    %1876 = vmatprep.subr.mxu0 0.0
    %1877 = vmatpush2.msra.mxu0 0.0
    %1878 = vmatprep.subr.mxu0 0.0
    %1879 = vmatpush2.msra.mxu0 0.0
    %1880 = vmatprep.subr.mxu0 0.0
    %1881 = vmatpush2.msra.mxu0 0.0
    %1882 = vmatprep.subr.mxu0 0.0
    %1883 = vmatpush2.msra.mxu0 0.0
    %1884 = vmatprep.subr.mxu0 0.0
    %1885 = vmatpush2.msra.mxu0 0.0
    %1886 = vmatprep.subr.mxu0 0.0
    %1887 = vmatpush2.msra.mxu0 0.0
    %1888 = vmatprep.subr.mxu0 0.0
    %1889 = vmatpush2.msra.mxu0 0.0
    %1890 = vmatprep.mubr.f32.mxu0 0.0
    %1891 = vmatmul.mubr.f32.gmra.mxu0 %v1578
    %v1892 = vpop.f32.mrf.mxu0
    %v1893 = vadd.f32 0.0, %v1892
    %v1894 = vpop.f32.mrf.mxu0
    %1895 = vdwg.mxu0
    %v1898 = vcombine.low %v1822, %v1824
    %v1900 = vunpack.c.l.s4 1983009808
    %v1901 = vunpack.c.0.s8 %v1900
    %v1902 = vlaneseq
    %v1903 = vshrl.u32 %v1902, 7
    %v1904 = vsub.s32 %v1901, %v1903
    %v1905 = vrot.slane %v1898, %v1904
    %v1907 = vadd.f32 %v1754, %v1905
    %v1908 = vxor.u32 %v1907, 2147483648
    %v1909 = vmul.f32 %v1908, 1.442695
    %v1910 = vpow.pop %v1909
    %v1911 = vadd.f32 %v1910, 1.0
    %v1912 = vrcp.pop %v1911
    %v1913 = vmul.f32 1.0, %v1912
    %v1914 = vadd.f32 %v1893, %v183
    %v1915 = vmul.f32 %v1913, %v1914
    %v1917 = vrot.slane %v1754, 4
    %v1919 = vadd.f32 %v1917, %v1915
    %v1920 = vtanh.pop %v1919
    %v1921 = vsub.f32 %v1578, %v1920
    %v1923 = vrot.slane %v1913, 2
    %v1925 = vmul.f32 %v1923, %v1921
    %v1926 = vadd.f32 %v1920, %v1925
    %s1927 = scalar_lea.vmem [#allocation3], 30
    %v1928 = vld [vmem:[%s1927] sm:$0x3f]
    %1929 = vmatprep.subr.mxu0 %v119
    %1930 = vmatpush1.msra.mxu0 %v118
    %1931 = vmatprep.subr.mxu0 %v116
    %1932 = vmatpush1.msra.mxu0 %v115
    %1933 = vmatprep.subr.mxu0 %v113
    %1934 = vmatpush1.msra.mxu0 %v112
    %1935 = vmatprep.subr.mxu0 %v110
    %1936 = vmatpush1.msra.mxu0 %v109
    %1937 = vmatprep.subr.mxu0 %v107
    %1938 = vmatpush1.msra.mxu0 %v106
    %1939 = vmatprep.subr.mxu0 %v104
    %1940 = vmatpush1.msra.mxu0 %v103
    %1941 = vmatprep.subr.mxu0 %v101
    %1942 = vmatpush1.msra.mxu0 %v100
    %1943 = vmatprep.subr.mxu0 %v98
    %1944 = vmatpush1.msra.mxu0 %v97
    %1945 = vmatprep.subr.mxu0 %v95
    %1946 = vmatpush1.msra.mxu0 %v94
    %1947 = vmatprep.subr.mxu0 %v92
    %1948 = vmatpush1.msra.mxu0 %v91
    %1949 = vmatprep.subr.mxu0 %v89
    %1950 = vmatpush1.msra.mxu0 %v88
    %1951 = vmatprep.subr.mxu0 %v86
    %1952 = vmatpush1.msra.mxu0 %v85
    %1953 = vmatprep.subr.mxu0 %v83
    %1954 = vmatpush1.msra.mxu0 %v82
    %1955 = vmatprep.subr.mxu0 %v80
    %1956 = vmatpush1.msra.mxu0 %v79
    %1957 = vmatprep.subr.mxu0 %v77
    %1958 = vmatpush1.msra.mxu0 %v76
    %1959 = vmatprep.subr.mxu0 %v74
    %1960 = vmatpush1.msra.mxu0 %v73
    %1961 = vmatprep.subr.mxu0 0.0
    %1962 = vmatpush2.msra.mxu0 0.0
    %1963 = vmatprep.subr.mxu0 0.0
    %1964 = vmatpush2.msra.mxu0 0.0
    %1965 = vmatprep.subr.mxu0 0.0
    %1966 = vmatpush2.msra.mxu0 0.0
    %1967 = vmatprep.subr.mxu0 0.0
    %1968 = vmatpush2.msra.mxu0 0.0
    %1969 = vmatprep.subr.mxu0 0.0
    %1970 = vmatpush2.msra.mxu0 0.0
    %1971 = vmatprep.subr.mxu0 0.0
    %1972 = vmatpush2.msra.mxu0 0.0
    %1973 = vmatprep.subr.mxu0 0.0
    %1974 = vmatpush2.msra.mxu0 0.0
    %1975 = vmatprep.subr.mxu0 0.0
    %1976 = vmatpush2.msra.mxu0 0.0
    %1977 = vmatprep.subr.mxu0 0.0
    %1978 = vmatpush2.msra.mxu0 0.0
    %1979 = vmatprep.subr.mxu0 0.0
    %1980 = vmatpush2.msra.mxu0 0.0
    %1981 = vmatprep.subr.mxu0 0.0
    %1982 = vmatpush2.msra.mxu0 0.0
    %1983 = vmatprep.subr.mxu0 0.0
    %1984 = vmatpush2.msra.mxu0 0.0
    %1985 = vmatprep.subr.mxu0 0.0
    %1986 = vmatpush2.msra.mxu0 0.0
    %1987 = vmatprep.subr.mxu0 0.0
    %1988 = vmatpush2.msra.mxu0 0.0
    %1989 = vmatprep.subr.mxu0 0.0
    %1990 = vmatpush2.msra.mxu0 0.0
    %1991 = vmatprep.subr.mxu0 0.0
    %1992 = vmatpush2.msra.mxu0 0.0
    %1993 = vmatprep.mubr.f32.mxu0 0.0
    %1994 = vmatmul.mubr.f32.gmra.mxu0 %v1752
    %v1995 = vpop.f32.mrf.mxu0
    %v1996 = vadd.f32 0.0, %v1995
    %v1997 = vpop.f32.mrf.mxu0
    %v1998 = vadd.f32 0.0, %v1997
    %1999 = vdwg.mxu0
    %2000 = vmatprep.subr.mxu0 0.0
    %2001 = vmatpush1.msra.mxu0 %v120
    %2002 = vmatprep.subr.mxu0 0.0
    %2003 = vmatpush1.msra.mxu0 %v117
    %2004 = vmatprep.subr.mxu0 0.0
    %2005 = vmatpush1.msra.mxu0 %v114
    %2006 = vmatprep.subr.mxu0 0.0
    %2007 = vmatpush1.msra.mxu0 %v111
    %2008 = vmatprep.subr.mxu0 0.0
    %2009 = vmatpush1.msra.mxu0 %v108
    %2010 = vmatprep.subr.mxu0 0.0
    %2011 = vmatpush1.msra.mxu0 %v105
    %2012 = vmatprep.subr.mxu0 0.0
    %2013 = vmatpush1.msra.mxu0 %v102
    %2014 = vmatprep.subr.mxu0 0.0
    %2015 = vmatpush1.msra.mxu0 %v99
    %2016 = vmatprep.subr.mxu0 0.0
    %2017 = vmatpush1.msra.mxu0 %v96
    %2018 = vmatprep.subr.mxu0 0.0
    %2019 = vmatpush1.msra.mxu0 %v93
    %2020 = vmatprep.subr.mxu0 0.0
    %2021 = vmatpush1.msra.mxu0 %v90
    %2022 = vmatprep.subr.mxu0 0.0
    %2023 = vmatpush1.msra.mxu0 %v87
    %2024 = vmatprep.subr.mxu0 0.0
    %2025 = vmatpush1.msra.mxu0 %v84
    %2026 = vmatprep.subr.mxu0 0.0
    %2027 = vmatpush1.msra.mxu0 %v81
    %2028 = vmatprep.subr.mxu0 0.0
    %2029 = vmatpush1.msra.mxu0 %v78
    %2030 = vmatprep.subr.mxu0 0.0
    %2031 = vmatpush1.msra.mxu0 %v75
    %2032 = vmatprep.subr.mxu0 0.0
    %2033 = vmatpush2.msra.mxu0 0.0
    %2034 = vmatprep.subr.mxu0 0.0
    %2035 = vmatpush2.msra.mxu0 0.0
    %2036 = vmatprep.subr.mxu0 0.0
    %2037 = vmatpush2.msra.mxu0 0.0
    %2038 = vmatprep.subr.mxu0 0.0
    %2039 = vmatpush2.msra.mxu0 0.0
    %2040 = vmatprep.subr.mxu0 0.0
    %2041 = vmatpush2.msra.mxu0 0.0
    %2042 = vmatprep.subr.mxu0 0.0
    %2043 = vmatpush2.msra.mxu0 0.0
    %2044 = vmatprep.subr.mxu0 0.0
    %2045 = vmatpush2.msra.mxu0 0.0
    %2046 = vmatprep.subr.mxu0 0.0
    %2047 = vmatpush2.msra.mxu0 0.0
    %2048 = vmatprep.subr.mxu0 0.0
    %2049 = vmatpush2.msra.mxu0 0.0
    %2050 = vmatprep.subr.mxu0 0.0
    %2051 = vmatpush2.msra.mxu0 0.0
    %2052 = vmatprep.subr.mxu0 0.0
    %2053 = vmatpush2.msra.mxu0 0.0
    %2054 = vmatprep.subr.mxu0 0.0
    %2055 = vmatpush2.msra.mxu0 0.0
    %2056 = vmatprep.subr.mxu0 0.0
    %2057 = vmatpush2.msra.mxu0 0.0
    %2058 = vmatprep.subr.mxu0 0.0
    %2059 = vmatpush2.msra.mxu0 0.0
    %2060 = vmatprep.subr.mxu0 0.0
    %2061 = vmatpush2.msra.mxu0 0.0
    %2062 = vmatprep.subr.mxu0 0.0
    %2063 = vmatpush2.msra.mxu0 0.0
    %2064 = vmatprep.mubr.f32.mxu0 0.0
    %2065 = vmatmul.mubr.f32.gmra.mxu0 %v1752
    %v2066 = vpop.f32.mrf.mxu0
    %v2067 = vadd.f32 0.0, %v2066
    %v2068 = vpop.f32.mrf.mxu0
    %2069 = vdwg.mxu0
    %v2072 = vcombine.low %v1996, %v1998
    %v2074 = vunpack.c.l.s4 1983009808
    %v2075 = vunpack.c.0.s8 %v2074
    %v2076 = vlaneseq
    %v2077 = vshrl.u32 %v2076, 7
    %v2078 = vsub.s32 %v2075, %v2077
    %v2079 = vrot.slane %v2072, %v2078
    %v2081 = vadd.f32 %v1928, %v2079
    %v2082 = vxor.u32 %v2081, 2147483648
    %v2083 = vmul.f32 %v2082, 1.442695
    %v2084 = vpow.pop %v2083
    %v2085 = vadd.f32 %v2084, 1.0
    %v2086 = vrcp.pop %v2085
    %v2087 = vmul.f32 1.0, %v2086
    %v2088 = vadd.f32 %v2067, %v175
    %v2089 = vmul.f32 %v2087, %v2088
    %v2091 = vrot.slane %v1928, 4
    %v2093 = vadd.f32 %v2091, %v2089
    %v2094 = vtanh.pop %v2093
    %v2095 = vsub.f32 %v1752, %v2094
    %v2097 = vrot.slane %v2087, 2
    %v2099 = vmul.f32 %v2097, %v2095
    %v2100 = vadd.f32 %v2094, %v2099
    %s2101 = scalar_lea.vmem [#allocation6], 12
    %v2102 = vld [vmem:[%s2101] sm:$0x3f]
    %2103 = vmatprep.subr.mxu0 %v168
    %2104 = vmatpush1.msra.mxu0 %v167
    %2105 = vmatprep.subr.mxu0 %v165
    %2106 = vmatpush1.msra.mxu0 %v164
    %2107 = vmatprep.subr.mxu0 %v162
    %2108 = vmatpush1.msra.mxu0 %v161
    %2109 = vmatprep.subr.mxu0 %v159
    %2110 = vmatpush1.msra.mxu0 %v158
    %2111 = vmatprep.subr.mxu0 %v156
    %2112 = vmatpush1.msra.mxu0 %v155
    %2113 = vmatprep.subr.mxu0 %v153
    %2114 = vmatpush1.msra.mxu0 %v152
    %2115 = vmatprep.subr.mxu0 %v150
    %2116 = vmatpush1.msra.mxu0 %v149
    %2117 = vmatprep.subr.mxu0 %v147
    %2118 = vmatpush1.msra.mxu0 %v146
    %2119 = vmatprep.subr.mxu0 %v144
    %2120 = vmatpush1.msra.mxu0 %v143
    %2121 = vmatprep.subr.mxu0 %v141
    %2122 = vmatpush1.msra.mxu0 %v140
    %2123 = vmatprep.subr.mxu0 %v138
    %2124 = vmatpush1.msra.mxu0 %v137
    %2125 = vmatprep.subr.mxu0 %v135
    %2126 = vmatpush1.msra.mxu0 %v134
    %2127 = vmatprep.subr.mxu0 %v132
    %2128 = vmatpush1.msra.mxu0 %v131
    %2129 = vmatprep.subr.mxu0 %v129
    %2130 = vmatpush1.msra.mxu0 %v128
    %2131 = vmatprep.subr.mxu0 %v126
    %2132 = vmatpush1.msra.mxu0 %v125
    %2133 = vmatprep.subr.mxu0 %v123
    %2134 = vmatpush1.msra.mxu0 %v122
    %2135 = vmatprep.subr.mxu0 0.0
    %2136 = vmatpush2.msra.mxu0 0.0
    %2137 = vmatprep.subr.mxu0 0.0
    %2138 = vmatpush2.msra.mxu0 0.0
    %2139 = vmatprep.subr.mxu0 0.0
    %2140 = vmatpush2.msra.mxu0 0.0
    %2141 = vmatprep.subr.mxu0 0.0
    %2142 = vmatpush2.msra.mxu0 0.0
    %2143 = vmatprep.subr.mxu0 0.0
    %2144 = vmatpush2.msra.mxu0 0.0
    %2145 = vmatprep.subr.mxu0 0.0
    %2146 = vmatpush2.msra.mxu0 0.0
    %2147 = vmatprep.subr.mxu0 0.0
    %2148 = vmatpush2.msra.mxu0 0.0
    %2149 = vmatprep.subr.mxu0 0.0
    %2150 = vmatpush2.msra.mxu0 0.0
    %2151 = vmatprep.subr.mxu0 0.0
    %2152 = vmatpush2.msra.mxu0 0.0
    %2153 = vmatprep.subr.mxu0 0.0
    %2154 = vmatpush2.msra.mxu0 0.0
    %2155 = vmatprep.subr.mxu0 0.0
    %2156 = vmatpush2.msra.mxu0 0.0
    %2157 = vmatprep.subr.mxu0 0.0
    %2158 = vmatpush2.msra.mxu0 0.0
    %2159 = vmatprep.subr.mxu0 0.0
    %2160 = vmatpush2.msra.mxu0 0.0
    %2161 = vmatprep.subr.mxu0 0.0
    %2162 = vmatpush2.msra.mxu0 0.0
    %2163 = vmatprep.subr.mxu0 0.0
    %2164 = vmatpush2.msra.mxu0 0.0
    %2165 = vmatprep.subr.mxu0 0.0
    %2166 = vmatpush2.msra.mxu0 0.0
    %2167 = vmatprep.mubr.f32.mxu0 0.0
    %2168 = vmatmul.mubr.f32.gmra.mxu0 %v1926
    %v2169 = vpop.f32.mrf.mxu0
    %v2170 = vadd.f32 0.0, %v2169
    %v2171 = vpop.f32.mrf.mxu0
    %v2172 = vadd.f32 0.0, %v2171
    %2173 = vdwg.mxu0
    %2174 = vmatprep.subr.mxu0 0.0
    %2175 = vmatpush1.msra.mxu0 %v169
    %2176 = vmatprep.subr.mxu0 0.0
    %2177 = vmatpush1.msra.mxu0 %v166
    %2178 = vmatprep.subr.mxu0 0.0
    %2179 = vmatpush1.msra.mxu0 %v163
    %2180 = vmatprep.subr.mxu0 0.0
    %2181 = vmatpush1.msra.mxu0 %v160
    %2182 = vmatprep.subr.mxu0 0.0
    %2183 = vmatpush1.msra.mxu0 %v157
    %2184 = vmatprep.subr.mxu0 0.0
    %2185 = vmatpush1.msra.mxu0 %v154
    %2186 = vmatprep.subr.mxu0 0.0
    %2187 = vmatpush1.msra.mxu0 %v151
    %2188 = vmatprep.subr.mxu0 0.0
    %2189 = vmatpush1.msra.mxu0 %v148
    %2190 = vmatprep.subr.mxu0 0.0
    %2191 = vmatpush1.msra.mxu0 %v145
    %2192 = vmatprep.subr.mxu0 0.0
    %2193 = vmatpush1.msra.mxu0 %v142
    %2194 = vmatprep.subr.mxu0 0.0
    %2195 = vmatpush1.msra.mxu0 %v139
    %2196 = vmatprep.subr.mxu0 0.0
    %2197 = vmatpush1.msra.mxu0 %v136
    %2198 = vmatprep.subr.mxu0 0.0
    %2199 = vmatpush1.msra.mxu0 %v133
    %2200 = vmatprep.subr.mxu0 0.0
    %2201 = vmatpush1.msra.mxu0 %v130
    %2202 = vmatprep.subr.mxu0 0.0
    %2203 = vmatpush1.msra.mxu0 %v127
    %2204 = vmatprep.subr.mxu0 0.0
    %2205 = vmatpush1.msra.mxu0 %v124
    %2206 = vmatprep.subr.mxu0 0.0
    %2207 = vmatpush2.msra.mxu0 0.0
    %2208 = vmatprep.subr.mxu0 0.0
    %2209 = vmatpush2.msra.mxu0 0.0
    %2210 = vmatprep.subr.mxu0 0.0
    %2211 = vmatpush2.msra.mxu0 0.0
    %2212 = vmatprep.subr.mxu0 0.0
    %2213 = vmatpush2.msra.mxu0 0.0
    %2214 = vmatprep.subr.mxu0 0.0
    %2215 = vmatpush2.msra.mxu0 0.0
    %2216 = vmatprep.subr.mxu0 0.0
    %2217 = vmatpush2.msra.mxu0 0.0
    %2218 = vmatprep.subr.mxu0 0.0
    %2219 = vmatpush2.msra.mxu0 0.0
    %2220 = vmatprep.subr.mxu0 0.0
    %2221 = vmatpush2.msra.mxu0 0.0
    %2222 = vmatprep.subr.mxu0 0.0
    %2223 = vmatpush2.msra.mxu0 0.0
    %2224 = vmatprep.subr.mxu0 0.0
    %2225 = vmatpush2.msra.mxu0 0.0
    %2226 = vmatprep.subr.mxu0 0.0
    %2227 = vmatpush2.msra.mxu0 0.0
    %2228 = vmatprep.subr.mxu0 0.0
    %2229 = vmatpush2.msra.mxu0 0.0
    %2230 = vmatprep.subr.mxu0 0.0
    %2231 = vmatpush2.msra.mxu0 0.0
    %2232 = vmatprep.subr.mxu0 0.0
    %2233 = vmatpush2.msra.mxu0 0.0
    %2234 = vmatprep.subr.mxu0 0.0
    %2235 = vmatpush2.msra.mxu0 0.0
    %2236 = vmatprep.subr.mxu0 0.0
    %2237 = vmatpush2.msra.mxu0 0.0
    %2238 = vmatprep.mubr.f32.mxu0 0.0
    %2239 = vmatmul.mubr.f32.gmra.mxu0 %v1926
    %v2240 = vpop.f32.mrf.mxu0
    %v2241 = vadd.f32 0.0, %v2240
    %v2242 = vpop.f32.mrf.mxu0
    %2243 = vdwg.mxu0
    %v2246 = vcombine.low %v2170, %v2172
    %v2248 = vunpack.c.l.s4 1983009808
    %v2249 = vunpack.c.0.s8 %v2248
    %v2250 = vlaneseq
    %v2251 = vshrl.u32 %v2250, 7
    %v2252 = vsub.s32 %v2249, %v2251
    %v2253 = vrot.slane %v2246, %v2252
    %v2255 = vadd.f32 %v2102, %v2253
    %v2256 = vxor.u32 %v2255, 2147483648
    %v2257 = vmul.f32 %v2256, 1.442695
    %v2258 = vpow.pop %v2257
    %v2259 = vadd.f32 %v2258, 1.0
    %v2260 = vrcp.pop %v2259
    %v2261 = vmul.f32 1.0, %v2260
    %v2262 = vadd.f32 %v2241, %v183
    %v2263 = vmul.f32 %v2261, %v2262
    %v2265 = vrot.slane %v2102, 4
    %v2267 = vadd.f32 %v2265, %v2263
    %v2268 = vtanh.pop %v2267
    %v2269 = vsub.f32 %v1926, %v2268
    %v2271 = vrot.slane %v2261, 2
    %v2273 = vmul.f32 %v2271, %v2269
    %v2274 = vadd.f32 %v2268, %v2273
    %s2275 = scalar_lea.vmem [#allocation3], 36
    %v2276 = vld [vmem:[%s2275] sm:$0x3f]
    %2277 = vmatprep.subr.mxu0 %v119
    %2278 = vmatpush1.msra.mxu0 %v118
    %2279 = vmatprep.subr.mxu0 %v116
    %2280 = vmatpush1.msra.mxu0 %v115
    %2281 = vmatprep.subr.mxu0 %v113
    %2282 = vmatpush1.msra.mxu0 %v112
    %2283 = vmatprep.subr.mxu0 %v110
    %2284 = vmatpush1.msra.mxu0 %v109
    %2285 = vmatprep.subr.mxu0 %v107
    %2286 = vmatpush1.msra.mxu0 %v106
    %2287 = vmatprep.subr.mxu0 %v104
    %2288 = vmatpush1.msra.mxu0 %v103
    %2289 = vmatprep.subr.mxu0 %v101
    %2290 = vmatpush1.msra.mxu0 %v100
    %2291 = vmatprep.subr.mxu0 %v98
    %2292 = vmatpush1.msra.mxu0 %v97
    %2293 = vmatprep.subr.mxu0 %v95
    %2294 = vmatpush1.msra.mxu0 %v94
    %2295 = vmatprep.subr.mxu0 %v92
    %2296 = vmatpush1.msra.mxu0 %v91
    %2297 = vmatprep.subr.mxu0 %v89
    %2298 = vmatpush1.msra.mxu0 %v88
    %2299 = vmatprep.subr.mxu0 %v86
    %2300 = vmatpush1.msra.mxu0 %v85
    %2301 = vmatprep.subr.mxu0 %v83
    %2302 = vmatpush1.msra.mxu0 %v82
    %2303 = vmatprep.subr.mxu0 %v80
    %2304 = vmatpush1.msra.mxu0 %v79
    %2305 = vmatprep.subr.mxu0 %v77
    %2306 = vmatpush1.msra.mxu0 %v76
    %2307 = vmatprep.subr.mxu0 %v74
    %2308 = vmatpush1.msra.mxu0 %v73
    %2309 = vmatprep.subr.mxu0 0.0
    %2310 = vmatpush2.msra.mxu0 0.0
    %2311 = vmatprep.subr.mxu0 0.0
    %2312 = vmatpush2.msra.mxu0 0.0
    %2313 = vmatprep.subr.mxu0 0.0
    %2314 = vmatpush2.msra.mxu0 0.0
    %2315 = vmatprep.subr.mxu0 0.0
    %2316 = vmatpush2.msra.mxu0 0.0
    %2317 = vmatprep.subr.mxu0 0.0
    %2318 = vmatpush2.msra.mxu0 0.0
    %2319 = vmatprep.subr.mxu0 0.0
    %2320 = vmatpush2.msra.mxu0 0.0
    %2321 = vmatprep.subr.mxu0 0.0
    %2322 = vmatpush2.msra.mxu0 0.0
    %2323 = vmatprep.subr.mxu0 0.0
    %2324 = vmatpush2.msra.mxu0 0.0
    %2325 = vmatprep.subr.mxu0 0.0
    %2326 = vmatpush2.msra.mxu0 0.0
    %2327 = vmatprep.subr.mxu0 0.0
    %2328 = vmatpush2.msra.mxu0 0.0
    %2329 = vmatprep.subr.mxu0 0.0
    %2330 = vmatpush2.msra.mxu0 0.0
    %2331 = vmatprep.subr.mxu0 0.0
    %2332 = vmatpush2.msra.mxu0 0.0
    %2333 = vmatprep.subr.mxu0 0.0
    %2334 = vmatpush2.msra.mxu0 0.0
    %2335 = vmatprep.subr.mxu0 0.0
    %2336 = vmatpush2.msra.mxu0 0.0
    %2337 = vmatprep.subr.mxu0 0.0
    %2338 = vmatpush2.msra.mxu0 0.0
    %2339 = vmatprep.subr.mxu0 0.0
    %2340 = vmatpush2.msra.mxu0 0.0
    %2341 = vmatprep.mubr.f32.mxu0 0.0
    %2342 = vmatmul.mubr.f32.gmra.mxu0 %v2100
    %v2343 = vpop.f32.mrf.mxu0
    %v2344 = vadd.f32 0.0, %v2343
    %v2345 = vpop.f32.mrf.mxu0
    %v2346 = vadd.f32 0.0, %v2345
    %2347 = vdwg.mxu0
    %2348 = vmatprep.subr.mxu0 0.0
    %2349 = vmatpush1.msra.mxu0 %v120
    %2350 = vmatprep.subr.mxu0 0.0
    %2351 = vmatpush1.msra.mxu0 %v117
    %2352 = vmatprep.subr.mxu0 0.0
    %2353 = vmatpush1.msra.mxu0 %v114
    %2354 = vmatprep.subr.mxu0 0.0
    %2355 = vmatpush1.msra.mxu0 %v111
    %2356 = vmatprep.subr.mxu0 0.0
    %2357 = vmatpush1.msra.mxu0 %v108
    %2358 = vmatprep.subr.mxu0 0.0
    %2359 = vmatpush1.msra.mxu0 %v105
    %2360 = vmatprep.subr.mxu0 0.0
    %2361 = vmatpush1.msra.mxu0 %v102
    %2362 = vmatprep.subr.mxu0 0.0
    %2363 = vmatpush1.msra.mxu0 %v99
    %2364 = vmatprep.subr.mxu0 0.0
    %2365 = vmatpush1.msra.mxu0 %v96
    %2366 = vmatprep.subr.mxu0 0.0
    %2367 = vmatpush1.msra.mxu0 %v93
    %2368 = vmatprep.subr.mxu0 0.0
    %2369 = vmatpush1.msra.mxu0 %v90
    %2370 = vmatprep.subr.mxu0 0.0
    %2371 = vmatpush1.msra.mxu0 %v87
    %2372 = vmatprep.subr.mxu0 0.0
    %2373 = vmatpush1.msra.mxu0 %v84
    %2374 = vmatprep.subr.mxu0 0.0
    %2375 = vmatpush1.msra.mxu0 %v81
    %2376 = vmatprep.subr.mxu0 0.0
    %2377 = vmatpush1.msra.mxu0 %v78
    %2378 = vmatprep.subr.mxu0 0.0
    %2379 = vmatpush1.msra.mxu0 %v75
    %2380 = vmatprep.subr.mxu0 0.0
    %2381 = vmatpush2.msra.mxu0 0.0
    %2382 = vmatprep.subr.mxu0 0.0
    %2383 = vmatpush2.msra.mxu0 0.0
    %2384 = vmatprep.subr.mxu0 0.0
    %2385 = vmatpush2.msra.mxu0 0.0
    %2386 = vmatprep.subr.mxu0 0.0
    %2387 = vmatpush2.msra.mxu0 0.0
    %2388 = vmatprep.subr.mxu0 0.0
    %2389 = vmatpush2.msra.mxu0 0.0
    %2390 = vmatprep.subr.mxu0 0.0
    %2391 = vmatpush2.msra.mxu0 0.0
    %2392 = vmatprep.subr.mxu0 0.0
    %2393 = vmatpush2.msra.mxu0 0.0
    %2394 = vmatprep.subr.mxu0 0.0
    %2395 = vmatpush2.msra.mxu0 0.0
    %2396 = vmatprep.subr.mxu0 0.0
    %2397 = vmatpush2.msra.mxu0 0.0
    %2398 = vmatprep.subr.mxu0 0.0
    %2399 = vmatpush2.msra.mxu0 0.0
    %2400 = vmatprep.subr.mxu0 0.0
    %2401 = vmatpush2.msra.mxu0 0.0
    %2402 = vmatprep.subr.mxu0 0.0
    %2403 = vmatpush2.msra.mxu0 0.0
    %2404 = vmatprep.subr.mxu0 0.0
    %2405 = vmatpush2.msra.mxu0 0.0
    %2406 = vmatprep.subr.mxu0 0.0
    %2407 = vmatpush2.msra.mxu0 0.0
    %2408 = vmatprep.subr.mxu0 0.0
    %2409 = vmatpush2.msra.mxu0 0.0
    %2410 = vmatprep.subr.mxu0 0.0
    %2411 = vmatpush2.msra.mxu0 0.0
    %2412 = vmatprep.mubr.f32.mxu0 0.0
    %2413 = vmatmul.mubr.f32.gmra.mxu0 %v2100
    %v2414 = vpop.f32.mrf.mxu0
    %v2415 = vadd.f32 0.0, %v2414
    %v2416 = vpop.f32.mrf.mxu0
    %2417 = vdwg.mxu0
    %v2420 = vcombine.low %v2344, %v2346
    %v2422 = vunpack.c.l.s4 1983009808
    %v2423 = vunpack.c.0.s8 %v2422
    %v2424 = vlaneseq
    %v2425 = vshrl.u32 %v2424, 7
    %v2426 = vsub.s32 %v2423, %v2425
    %v2427 = vrot.slane %v2420, %v2426
    %v2429 = vadd.f32 %v2276, %v2427
    %v2430 = vxor.u32 %v2429, 2147483648
    %v2431 = vmul.f32 %v2430, 1.442695
    %v2432 = vpow.pop %v2431
    %v2433 = vadd.f32 %v2432, 1.0
    %v2434 = vrcp.pop %v2433
    %v2435 = vmul.f32 1.0, %v2434
    %v2436 = vadd.f32 %v2415, %v175
    %v2437 = vmul.f32 %v2435, %v2436
    %v2439 = vrot.slane %v2276, 4
    %v2441 = vadd.f32 %v2439, %v2437
    %v2442 = vtanh.pop %v2441
    %v2443 = vsub.f32 %v2100, %v2442
    %v2445 = vrot.slane %v2435, 2
    %v2447 = vmul.f32 %v2445, %v2443
    %v2448 = vadd.f32 %v2442, %v2447
    %s2449 = scalar_lea.vmem [#allocation6], 6
    %v2450 = vld [vmem:[%s2449] sm:$0x3f]
    %2451 = vmatprep.subr.mxu0 %v168
    %2452 = vmatpush1.msra.mxu0 %v167
    %2453 = vmatprep.subr.mxu0 %v165
    %2454 = vmatpush1.msra.mxu0 %v164
    %2455 = vmatprep.subr.mxu0 %v162
    %2456 = vmatpush1.msra.mxu0 %v161
    %2457 = vmatprep.subr.mxu0 %v159
    %2458 = vmatpush1.msra.mxu0 %v158
    %2459 = vmatprep.subr.mxu0 %v156
    %2460 = vmatpush1.msra.mxu0 %v155
    %2461 = vmatprep.subr.mxu0 %v153
    %2462 = vmatpush1.msra.mxu0 %v152
    %2463 = vmatprep.subr.mxu0 %v150
    %2464 = vmatpush1.msra.mxu0 %v149
    %2465 = vmatprep.subr.mxu0 %v147
    %2466 = vmatpush1.msra.mxu0 %v146
    %2467 = vmatprep.subr.mxu0 %v144
    %2468 = vmatpush1.msra.mxu0 %v143
    %2469 = vmatprep.subr.mxu0 %v141
    %2470 = vmatpush1.msra.mxu0 %v140
    %2471 = vmatprep.subr.mxu0 %v138
    %2472 = vmatpush1.msra.mxu0 %v137
    %2473 = vmatprep.subr.mxu0 %v135
    %2474 = vmatpush1.msra.mxu0 %v134
    %2475 = vmatprep.subr.mxu0 %v132
    %2476 = vmatpush1.msra.mxu0 %v131
    %2477 = vmatprep.subr.mxu0 %v129
    %2478 = vmatpush1.msra.mxu0 %v128
    %2479 = vmatprep.subr.mxu0 %v126
    %2480 = vmatpush1.msra.mxu0 %v125
    %2481 = vmatprep.subr.mxu0 %v123
    %2482 = vmatpush1.msra.mxu0 %v122
    %2483 = vmatprep.subr.mxu0 0.0
    %2484 = vmatpush2.msra.mxu0 0.0
    %2485 = vmatprep.subr.mxu0 0.0
    %2486 = vmatpush2.msra.mxu0 0.0
    %2487 = vmatprep.subr.mxu0 0.0
    %2488 = vmatpush2.msra.mxu0 0.0
    %2489 = vmatprep.subr.mxu0 0.0
    %2490 = vmatpush2.msra.mxu0 0.0
    %2491 = vmatprep.subr.mxu0 0.0
    %2492 = vmatpush2.msra.mxu0 0.0
    %2493 = vmatprep.subr.mxu0 0.0
    %2494 = vmatpush2.msra.mxu0 0.0
    %2495 = vmatprep.subr.mxu0 0.0
    %2496 = vmatpush2.msra.mxu0 0.0
    %2497 = vmatprep.subr.mxu0 0.0
    %2498 = vmatpush2.msra.mxu0 0.0
    %2499 = vmatprep.subr.mxu0 0.0
    %2500 = vmatpush2.msra.mxu0 0.0
    %2501 = vmatprep.subr.mxu0 0.0
    %2502 = vmatpush2.msra.mxu0 0.0
    %2503 = vmatprep.subr.mxu0 0.0
    %2504 = vmatpush2.msra.mxu0 0.0
    %2505 = vmatprep.subr.mxu0 0.0
    %2506 = vmatpush2.msra.mxu0 0.0
    %2507 = vmatprep.subr.mxu0 0.0
    %2508 = vmatpush2.msra.mxu0 0.0
    %2509 = vmatprep.subr.mxu0 0.0
    %2510 = vmatpush2.msra.mxu0 0.0
    %2511 = vmatprep.subr.mxu0 0.0
    %2512 = vmatpush2.msra.mxu0 0.0
    %2513 = vmatprep.subr.mxu0 0.0
    %2514 = vmatpush2.msra.mxu0 0.0
    %2515 = vmatprep.mubr.f32.mxu0 0.0
    %2516 = vmatmul.mubr.f32.gmra.mxu0 %v2274
    %v2517 = vpop.f32.mrf.mxu0
    %v2518 = vadd.f32 0.0, %v2517
    %v2519 = vpop.f32.mrf.mxu0
    %v2520 = vadd.f32 0.0, %v2519
    %2521 = vdwg.mxu0
    %2522 = vmatprep.subr.mxu0 0.0
    %2523 = vmatpush1.msra.mxu0 %v169
    %2524 = vmatprep.subr.mxu0 0.0
    %2525 = vmatpush1.msra.mxu0 %v166
    %2526 = vmatprep.subr.mxu0 0.0
    %2527 = vmatpush1.msra.mxu0 %v163
    %2528 = vmatprep.subr.mxu0 0.0
    %2529 = vmatpush1.msra.mxu0 %v160
    %2530 = vmatprep.subr.mxu0 0.0
    %2531 = vmatpush1.msra.mxu0 %v157
    %2532 = vmatprep.subr.mxu0 0.0
    %2533 = vmatpush1.msra.mxu0 %v154
    %2534 = vmatprep.subr.mxu0 0.0
    %2535 = vmatpush1.msra.mxu0 %v151
    %2536 = vmatprep.subr.mxu0 0.0
    %2537 = vmatpush1.msra.mxu0 %v148
    %2538 = vmatprep.subr.mxu0 0.0
    %2539 = vmatpush1.msra.mxu0 %v145
    %2540 = vmatprep.subr.mxu0 0.0
    %2541 = vmatpush1.msra.mxu0 %v142
    %2542 = vmatprep.subr.mxu0 0.0
    %2543 = vmatpush1.msra.mxu0 %v139
    %2544 = vmatprep.subr.mxu0 0.0
    %2545 = vmatpush1.msra.mxu0 %v136
    %2546 = vmatprep.subr.mxu0 0.0
    %2547 = vmatpush1.msra.mxu0 %v133
    %2548 = vmatprep.subr.mxu0 0.0
    %2549 = vmatpush1.msra.mxu0 %v130
    %2550 = vmatprep.subr.mxu0 0.0
    %2551 = vmatpush1.msra.mxu0 %v127
    %2552 = vmatprep.subr.mxu0 0.0
    %2553 = vmatpush1.msra.mxu0 %v124
    %2554 = vmatprep.subr.mxu0 0.0
    %2555 = vmatpush2.msra.mxu0 0.0
    %2556 = vmatprep.subr.mxu0 0.0
    %2557 = vmatpush2.msra.mxu0 0.0
    %2558 = vmatprep.subr.mxu0 0.0
    %2559 = vmatpush2.msra.mxu0 0.0
    %2560 = vmatprep.subr.mxu0 0.0
    %2561 = vmatpush2.msra.mxu0 0.0
    %2562 = vmatprep.subr.mxu0 0.0
    %2563 = vmatpush2.msra.mxu0 0.0
    %2564 = vmatprep.subr.mxu0 0.0
    %2565 = vmatpush2.msra.mxu0 0.0
    %2566 = vmatprep.subr.mxu0 0.0
    %2567 = vmatpush2.msra.mxu0 0.0
    %2568 = vmatprep.subr.mxu0 0.0
    %2569 = vmatpush2.msra.mxu0 0.0
    %2570 = vmatprep.subr.mxu0 0.0
    %2571 = vmatpush2.msra.mxu0 0.0
    %2572 = vmatprep.subr.mxu0 0.0
    %2573 = vmatpush2.msra.mxu0 0.0
    %2574 = vmatprep.subr.mxu0 0.0
    %2575 = vmatpush2.msra.mxu0 0.0
    %2576 = vmatprep.subr.mxu0 0.0
    %2577 = vmatpush2.msra.mxu0 0.0
    %2578 = vmatprep.subr.mxu0 0.0
    %2579 = vmatpush2.msra.mxu0 0.0
    %2580 = vmatprep.subr.mxu0 0.0
    %2581 = vmatpush2.msra.mxu0 0.0
    %2582 = vmatprep.subr.mxu0 0.0
    %2583 = vmatpush2.msra.mxu0 0.0
    %2584 = vmatprep.subr.mxu0 0.0
    %2585 = vmatpush2.msra.mxu0 0.0
    %2586 = vmatprep.mubr.f32.mxu0 0.0
    %2587 = vmatmul.mubr.f32.gmra.mxu0 %v2274
    %v2588 = vpop.f32.mrf.mxu0
    %v2589 = vadd.f32 0.0, %v2588
    %v2590 = vpop.f32.mrf.mxu0
    %2591 = vdwg.mxu0
    %v2594 = vcombine.low %v2518, %v2520
    %v2596 = vunpack.c.l.s4 1983009808
    %v2597 = vunpack.c.0.s8 %v2596
    %v2598 = vlaneseq
    %v2599 = vshrl.u32 %v2598, 7
    %v2600 = vsub.s32 %v2597, %v2599
    %v2601 = vrot.slane %v2594, %v2600
    %v2603 = vadd.f32 %v2450, %v2601
    %v2604 = vxor.u32 %v2603, 2147483648
    %v2605 = vmul.f32 %v2604, 1.442695
    %v2606 = vpow.pop %v2605
    %v2607 = vadd.f32 %v2606, 1.0
    %v2608 = vrcp.pop %v2607
    %v2609 = vmul.f32 1.0, %v2608
    %v2610 = vadd.f32 %v2589, %v183
    %v2611 = vmul.f32 %v2609, %v2610
    %v2613 = vrot.slane %v2450, 4
    %v2615 = vadd.f32 %v2613, %v2611
    %v2616 = vtanh.pop %v2615
    %v2617 = vsub.f32 %v2274, %v2616
    %v2619 = vrot.slane %v2609, 2
    %v2621 = vmul.f32 %v2619, %v2617
    %v2622 = vadd.f32 %v2616, %v2621
    %s2623 = scalar_lea.vmem [#allocation3], 42
    %v2624 = vld [vmem:[%s2623] sm:$0x3f]
    %2625 = vmatprep.subr.mxu0 %v119
    %2626 = vmatpush1.msra.mxu0 %v118
    %2627 = vmatprep.subr.mxu0 %v116
    %2628 = vmatpush1.msra.mxu0 %v115
    %2629 = vmatprep.subr.mxu0 %v113
    %2630 = vmatpush1.msra.mxu0 %v112
    %2631 = vmatprep.subr.mxu0 %v110
    %2632 = vmatpush1.msra.mxu0 %v109
    %2633 = vmatprep.subr.mxu0 %v107
    %2634 = vmatpush1.msra.mxu0 %v106
    %2635 = vmatprep.subr.mxu0 %v104
    %2636 = vmatpush1.msra.mxu0 %v103
    %2637 = vmatprep.subr.mxu0 %v101
    %2638 = vmatpush1.msra.mxu0 %v100
    %2639 = vmatprep.subr.mxu0 %v98
    %2640 = vmatpush1.msra.mxu0 %v97
    %2641 = vmatprep.subr.mxu0 %v95
    %2642 = vmatpush1.msra.mxu0 %v94
    %2643 = vmatprep.subr.mxu0 %v92
    %2644 = vmatpush1.msra.mxu0 %v91
    %2645 = vmatprep.subr.mxu0 %v89
    %2646 = vmatpush1.msra.mxu0 %v88
    %2647 = vmatprep.subr.mxu0 %v86
    %2648 = vmatpush1.msra.mxu0 %v85
    %2649 = vmatprep.subr.mxu0 %v83
    %2650 = vmatpush1.msra.mxu0 %v82
    %2651 = vmatprep.subr.mxu0 %v80
    %2652 = vmatpush1.msra.mxu0 %v79
    %2653 = vmatprep.subr.mxu0 %v77
    %2654 = vmatpush1.msra.mxu0 %v76
    %2655 = vmatprep.subr.mxu0 %v74
    %2656 = vmatpush1.msra.mxu0 %v73
    %2657 = vmatprep.subr.mxu0 0.0
    %2658 = vmatpush2.msra.mxu0 0.0
    %2659 = vmatprep.subr.mxu0 0.0
    %2660 = vmatpush2.msra.mxu0 0.0
    %2661 = vmatprep.subr.mxu0 0.0
    %2662 = vmatpush2.msra.mxu0 0.0
    %2663 = vmatprep.subr.mxu0 0.0
    %2664 = vmatpush2.msra.mxu0 0.0
    %2665 = vmatprep.subr.mxu0 0.0
    %2666 = vmatpush2.msra.mxu0 0.0
    %2667 = vmatprep.subr.mxu0 0.0
    %2668 = vmatpush2.msra.mxu0 0.0
    %2669 = vmatprep.subr.mxu0 0.0
    %2670 = vmatpush2.msra.mxu0 0.0
    %2671 = vmatprep.subr.mxu0 0.0
    %2672 = vmatpush2.msra.mxu0 0.0
    %2673 = vmatprep.subr.mxu0 0.0
    %2674 = vmatpush2.msra.mxu0 0.0
    %2675 = vmatprep.subr.mxu0 0.0
    %2676 = vmatpush2.msra.mxu0 0.0
    %2677 = vmatprep.subr.mxu0 0.0
    %2678 = vmatpush2.msra.mxu0 0.0
    %2679 = vmatprep.subr.mxu0 0.0
    %2680 = vmatpush2.msra.mxu0 0.0
    %2681 = vmatprep.subr.mxu0 0.0
    %2682 = vmatpush2.msra.mxu0 0.0
    %2683 = vmatprep.subr.mxu0 0.0
    %2684 = vmatpush2.msra.mxu0 0.0
    %2685 = vmatprep.subr.mxu0 0.0
    %2686 = vmatpush2.msra.mxu0 0.0
    %2687 = vmatprep.subr.mxu0 0.0
    %2688 = vmatpush2.msra.mxu0 0.0
    %2689 = vmatprep.mubr.f32.mxu0 0.0
    %2690 = vmatmul.mubr.f32.gmra.mxu0 %v2448
    %v2691 = vpop.f32.mrf.mxu0
    %v2692 = vadd.f32 0.0, %v2691
    %v2693 = vpop.f32.mrf.mxu0
    %v2694 = vadd.f32 0.0, %v2693
    %2695 = vdwg.mxu0
    %2696 = vmatprep.subr.mxu0 0.0
    %2697 = vmatpush1.msra.mxu0 %v120
    %2698 = vmatprep.subr.mxu0 0.0
    %2699 = vmatpush1.msra.mxu0 %v117
    %2700 = vmatprep.subr.mxu0 0.0
    %2701 = vmatpush1.msra.mxu0 %v114
    %2702 = vmatprep.subr.mxu0 0.0
    %2703 = vmatpush1.msra.mxu0 %v111
    %2704 = vmatprep.subr.mxu0 0.0
    %2705 = vmatpush1.msra.mxu0 %v108
    %2706 = vmatprep.subr.mxu0 0.0
    %2707 = vmatpush1.msra.mxu0 %v105
    %2708 = vmatprep.subr.mxu0 0.0
    %2709 = vmatpush1.msra.mxu0 %v102
    %2710 = vmatprep.subr.mxu0 0.0
    %2711 = vmatpush1.msra.mxu0 %v99
    %2712 = vmatprep.subr.mxu0 0.0
    %2713 = vmatpush1.msra.mxu0 %v96
    %2714 = vmatprep.subr.mxu0 0.0
    %2715 = vmatpush1.msra.mxu0 %v93
    %2716 = vmatprep.subr.mxu0 0.0
    %2717 = vmatpush1.msra.mxu0 %v90
    %2718 = vmatprep.subr.mxu0 0.0
    %2719 = vmatpush1.msra.mxu0 %v87
    %2720 = vmatprep.subr.mxu0 0.0
    %2721 = vmatpush1.msra.mxu0 %v84
    %2722 = vmatprep.subr.mxu0 0.0
    %2723 = vmatpush1.msra.mxu0 %v81
    %2724 = vmatprep.subr.mxu0 0.0
    %2725 = vmatpush1.msra.mxu0 %v78
    %2726 = vmatprep.subr.mxu0 0.0
    %2727 = vmatpush1.msra.mxu0 %v75
    %2728 = vmatprep.subr.mxu0 0.0
    %2729 = vmatpush2.msra.mxu0 0.0
    %2730 = vmatprep.subr.mxu0 0.0
    %2731 = vmatpush2.msra.mxu0 0.0
    %2732 = vmatprep.subr.mxu0 0.0
    %2733 = vmatpush2.msra.mxu0 0.0
    %2734 = vmatprep.subr.mxu0 0.0
    %2735 = vmatpush2.msra.mxu0 0.0
    %2736 = vmatprep.subr.mxu0 0.0
    %2737 = vmatpush2.msra.mxu0 0.0
    %2738 = vmatprep.subr.mxu0 0.0
    %2739 = vmatpush2.msra.mxu0 0.0
    %2740 = vmatprep.subr.mxu0 0.0
    %2741 = vmatpush2.msra.mxu0 0.0
    %2742 = vmatprep.subr.mxu0 0.0
    %2743 = vmatpush2.msra.mxu0 0.0
    %2744 = vmatprep.subr.mxu0 0.0
    %2745 = vmatpush2.msra.mxu0 0.0
    %2746 = vmatprep.subr.mxu0 0.0
    %2747 = vmatpush2.msra.mxu0 0.0
    %2748 = vmatprep.subr.mxu0 0.0
    %2749 = vmatpush2.msra.mxu0 0.0
    %2750 = vmatprep.subr.mxu0 0.0
    %2751 = vmatpush2.msra.mxu0 0.0
    %2752 = vmatprep.subr.mxu0 0.0
    %2753 = vmatpush2.msra.mxu0 0.0
    %2754 = vmatprep.subr.mxu0 0.0
    %2755 = vmatpush2.msra.mxu0 0.0
    %2756 = vmatprep.subr.mxu0 0.0
    %2757 = vmatpush2.msra.mxu0 0.0
    %2758 = vmatprep.subr.mxu0 0.0
    %2759 = vmatpush2.msra.mxu0 0.0
    %2760 = vmatprep.mubr.f32.mxu0 0.0
    %2761 = vmatmul.mubr.f32.gmra.mxu0 %v2448
    %v2762 = vpop.f32.mrf.mxu0
    %v2763 = vadd.f32 0.0, %v2762
    %v2764 = vpop.f32.mrf.mxu0
    %2765 = vdwg.mxu0
    %v2768 = vcombine.low %v2692, %v2694
    %v2770 = vunpack.c.l.s4 1983009808
    %v2771 = vunpack.c.0.s8 %v2770
    %v2772 = vlaneseq
    %v2773 = vshrl.u32 %v2772, 7
    %v2774 = vsub.s32 %v2771, %v2773
    %v2775 = vrot.slane %v2768, %v2774
    %v2777 = vadd.f32 %v2624, %v2775
    %v2778 = vxor.u32 %v2777, 2147483648
    %v2779 = vmul.f32 %v2778, 1.442695
    %v2780 = vpow.pop %v2779
    %v2781 = vadd.f32 %v2780, 1.0
    %v2782 = vrcp.pop %v2781
    %v2783 = vmul.f32 1.0, %v2782
    %v2784 = vadd.f32 %v2763, %v175
    %v2785 = vmul.f32 %v2783, %v2784
    %v2787 = vrot.slane %v2624, 4
    %v2789 = vadd.f32 %v2787, %v2785
    %v2790 = vtanh.pop %v2789
    %v2791 = vsub.f32 %v2448, %v2790
    %v2793 = vrot.slane %v2783, 2
    %v2795 = vmul.f32 %v2793, %v2791
    %v2796 = vadd.f32 %v2790, %v2795
    %v2797 = vld [vmem:[#allocation6] sm:$0x3f]
    %2798 = vmatprep.subr.mxu0 %v168
    %2799 = vmatpush1.msra.mxu0 %v167
    %2800 = vmatprep.subr.mxu0 %v165
    %2801 = vmatpush1.msra.mxu0 %v164
    %2802 = vmatprep.subr.mxu0 %v162
    %2803 = vmatpush1.msra.mxu0 %v161
    %2804 = vmatprep.subr.mxu0 %v159
    %2805 = vmatpush1.msra.mxu0 %v158
    %2806 = vmatprep.subr.mxu0 %v156
    %2807 = vmatpush1.msra.mxu0 %v155
    %2808 = vmatprep.subr.mxu0 %v153
    %2809 = vmatpush1.msra.mxu0 %v152
    %2810 = vmatprep.subr.mxu0 %v150
    %2811 = vmatpush1.msra.mxu0 %v149
    %2812 = vmatprep.subr.mxu0 %v147
    %2813 = vmatpush1.msra.mxu0 %v146
    %2814 = vmatprep.subr.mxu0 %v144
    %2815 = vmatpush1.msra.mxu0 %v143
    %2816 = vmatprep.subr.mxu0 %v141
    %2817 = vmatpush1.msra.mxu0 %v140
    %2818 = vmatprep.subr.mxu0 %v138
    %2819 = vmatpush1.msra.mxu0 %v137
    %2820 = vmatprep.subr.mxu0 %v135
    %2821 = vmatpush1.msra.mxu0 %v134
    %2822 = vmatprep.subr.mxu0 %v132
    %2823 = vmatpush1.msra.mxu0 %v131
    %2824 = vmatprep.subr.mxu0 %v129
    %2825 = vmatpush1.msra.mxu0 %v128
    %2826 = vmatprep.subr.mxu0 %v126
    %2827 = vmatpush1.msra.mxu0 %v125
    %2828 = vmatprep.subr.mxu0 %v123
    %2829 = vmatpush1.msra.mxu0 %v122
    %2830 = vmatprep.subr.mxu0 0.0
    %2831 = vmatpush2.msra.mxu0 0.0
    %2832 = vmatprep.subr.mxu0 0.0
    %2833 = vmatpush2.msra.mxu0 0.0
    %2834 = vmatprep.subr.mxu0 0.0
    %2835 = vmatpush2.msra.mxu0 0.0
    %2836 = vmatprep.subr.mxu0 0.0
    %2837 = vmatpush2.msra.mxu0 0.0
    %2838 = vmatprep.subr.mxu0 0.0
    %2839 = vmatpush2.msra.mxu0 0.0
    %2840 = vmatprep.subr.mxu0 0.0
    %2841 = vmatpush2.msra.mxu0 0.0
    %2842 = vmatprep.subr.mxu0 0.0
    %2843 = vmatpush2.msra.mxu0 0.0
    %2844 = vmatprep.subr.mxu0 0.0
    %2845 = vmatpush2.msra.mxu0 0.0
    %2846 = vmatprep.subr.mxu0 0.0
    %2847 = vmatpush2.msra.mxu0 0.0
    %2848 = vmatprep.subr.mxu0 0.0
    %2849 = vmatpush2.msra.mxu0 0.0
    %2850 = vmatprep.subr.mxu0 0.0
    %2851 = vmatpush2.msra.mxu0 0.0
    %2852 = vmatprep.subr.mxu0 0.0
    %2853 = vmatpush2.msra.mxu0 0.0
    %2854 = vmatprep.subr.mxu0 0.0
    %2855 = vmatpush2.msra.mxu0 0.0
    %2856 = vmatprep.subr.mxu0 0.0
    %2857 = vmatpush2.msra.mxu0 0.0
    %2858 = vmatprep.subr.mxu0 0.0
    %2859 = vmatpush2.msra.mxu0 0.0
    %2860 = vmatprep.subr.mxu0 0.0
    %2861 = vmatpush2.msra.mxu0 0.0
    %2862 = vmatprep.mubr.f32.mxu0 0.0
    %2863 = vmatmul.mubr.f32.gmra.mxu0 %v2622
    %v2864 = vpop.f32.mrf.mxu0
    %v2865 = vadd.f32 0.0, %v2864
    %v2866 = vpop.f32.mrf.mxu0
    %v2867 = vadd.f32 0.0, %v2866
    %2868 = vdwg.mxu0
    %2869 = vmatprep.subr.mxu0 0.0
    %2870 = vmatpush1.msra.mxu0 %v169
    %2871 = vmatprep.subr.mxu0 0.0
    %2872 = vmatpush1.msra.mxu0 %v166
    %2873 = vmatprep.subr.mxu0 0.0
    %2874 = vmatpush1.msra.mxu0 %v163
    %2875 = vmatprep.subr.mxu0 0.0
    %2876 = vmatpush1.msra.mxu0 %v160
    %2877 = vmatprep.subr.mxu0 0.0
    %2878 = vmatpush1.msra.mxu0 %v157
    %2879 = vmatprep.subr.mxu0 0.0
    %2880 = vmatpush1.msra.mxu0 %v154
    %2881 = vmatprep.subr.mxu0 0.0
    %2882 = vmatpush1.msra.mxu0 %v151
    %2883 = vmatprep.subr.mxu0 0.0
    %2884 = vmatpush1.msra.mxu0 %v148
    %2885 = vmatprep.subr.mxu0 0.0
    %2886 = vmatpush1.msra.mxu0 %v145
    %2887 = vmatprep.subr.mxu0 0.0
    %2888 = vmatpush1.msra.mxu0 %v142
    %2889 = vmatprep.subr.mxu0 0.0
    %2890 = vmatpush1.msra.mxu0 %v139
    %2891 = vmatprep.subr.mxu0 0.0
    %2892 = vmatpush1.msra.mxu0 %v136
    %2893 = vmatprep.subr.mxu0 0.0
    %2894 = vmatpush1.msra.mxu0 %v133
    %2895 = vmatprep.subr.mxu0 0.0
    %2896 = vmatpush1.msra.mxu0 %v130
    %2897 = vmatprep.subr.mxu0 0.0
    %2898 = vmatpush1.msra.mxu0 %v127
    %2899 = vmatprep.subr.mxu0 0.0
    %2900 = vmatpush1.msra.mxu0 %v124
    %2901 = vmatprep.subr.mxu0 0.0
    %2902 = vmatpush2.msra.mxu0 0.0
    %2903 = vmatprep.subr.mxu0 0.0
    %2904 = vmatpush2.msra.mxu0 0.0
    %2905 = vmatprep.subr.mxu0 0.0
    %2906 = vmatpush2.msra.mxu0 0.0
    %2907 = vmatprep.subr.mxu0 0.0
    %2908 = vmatpush2.msra.mxu0 0.0
    %2909 = vmatprep.subr.mxu0 0.0
    %2910 = vmatpush2.msra.mxu0 0.0
    %2911 = vmatprep.subr.mxu0 0.0
    %2912 = vmatpush2.msra.mxu0 0.0
    %2913 = vmatprep.subr.mxu0 0.0
    %2914 = vmatpush2.msra.mxu0 0.0
    %2915 = vmatprep.subr.mxu0 0.0
    %2916 = vmatpush2.msra.mxu0 0.0
    %2917 = vmatprep.subr.mxu0 0.0
    %2918 = vmatpush2.msra.mxu0 0.0
    %2919 = vmatprep.subr.mxu0 0.0
    %2920 = vmatpush2.msra.mxu0 0.0
    %2921 = vmatprep.subr.mxu0 0.0
    %2922 = vmatpush2.msra.mxu0 0.0
    %2923 = vmatprep.subr.mxu0 0.0
    %2924 = vmatpush2.msra.mxu0 0.0
    %2925 = vmatprep.subr.mxu0 0.0
    %2926 = vmatpush2.msra.mxu0 0.0
    %2927 = vmatprep.subr.mxu0 0.0
    %2928 = vmatpush2.msra.mxu0 0.0
    %2929 = vmatprep.subr.mxu0 0.0
    %2930 = vmatpush2.msra.mxu0 0.0
    %2931 = vmatprep.subr.mxu0 0.0
    %2932 = vmatpush2.msra.mxu0 0.0
    %2933 = vmatprep.mubr.f32.mxu0 0.0
    %2934 = vmatmul.mubr.f32.gmra.mxu0 %v2622
    %v2935 = vpop.f32.mrf.mxu0
    %v2936 = vadd.f32 0.0, %v2935
    %v2937 = vpop.f32.mrf.mxu0
    %2938 = vdwg.mxu0
    %v2941 = vcombine.low %v2865, %v2867
    %v2943 = vunpack.c.l.s4 1983009808
    %v2944 = vunpack.c.0.s8 %v2943
    %v2945 = vlaneseq
    %v2946 = vshrl.u32 %v2945, 7
    %v2947 = vsub.s32 %v2944, %v2946
    %v2948 = vrot.slane %v2941, %v2947
    %v2950 = vadd.f32 %v2797, %v2948
    %v2951 = vxor.u32 %v2950, 2147483648
    %v2952 = vmul.f32 %v2951, 1.442695
    %v2953 = vpow.pop %v2952
    %v2954 = vadd.f32 %v2953, 1.0
    %v2955 = vrcp.pop %v2954
    %v2956 = vmul.f32 1.0, %v2955
    %v2957 = vadd.f32 %v2936, %v183
    %v2958 = vmul.f32 %v2956, %v2957
    %v2960 = vrot.slane %v2797, 4
    %v2962 = vadd.f32 %v2960, %v2958
    %v2963 = vtanh.pop %v2962
    %v2964 = vsub.f32 %v2622, %v2963
    %v2966 = vrot.slane %v2956, 2
    %v2968 = vmul.f32 %v2966, %v2964
    %v2969 = vadd.f32 %v2963, %v2968
    %2970 = vst [vmem:[#allocation2] sm:$0x3] %v2796
    %2971 = vst [vmem:[%s186] sm:$0x3] %v2969
    // Predicated region
    $region34: #{tpu_custom_call.1} parent=1 // pred_check
      %p2972 = pneg %p67
    $region35: #{tpu_custom_call.1} parent=1 // pred_check_branch
      %2974 = sbr.rel (%p2972) target = $region37
    $region36: #{tpu_custom_call.1} parent=1 // pred_region
      %v2975 = vld [vmem:[#allocation2] sm:$0x3]
      %v2976 = vld [vmem:[#allocation2 + $0x2] sm:$0x3]
      %2977 = vst [vmem:[#allocation9] sm:$0x3] %v2975
      %2978 = vst [vmem:[#allocation9 + $0x2] sm:$0x3] %v2976
    $region37: #{tpu_custom_call.1} parent=1 // pred_fallthru
      _
    // Predicated region
    $region38: #{tpu_custom_call.1} parent=1 // pred_check
      _
    $region39: #{tpu_custom_call.1} parent=1 // pred_check_branch
      %2980 = sbr.rel (0) target = $region41
    $region40: #{tpu_custom_call.1} parent=1 // pred_region
      %s2982 = ssub.s32 64, 64
      %2983 = vsyncadd [#allocation5], %s2982
      %s2984 = sshll.u32 [#allocation9], 4
      %s2985 = int_to_ptr.vmem [resolvable:$true] %s2984
      %2990 = dma.vmem_to_hbm [thread:$0]  %s2985, 64, %s4, [#allocation5], 32, 32, 2
    $region41: #{tpu_custom_call.1} parent=1 // pred_fallthru
      _
    // Predicated region
    $region42: #{tpu_custom_call.1} parent=1 // pred_check
      _
    $region43: #{tpu_custom_call.1} parent=1 // pred_check_branch
      %2992 = sbr.rel (0) target = $region45
    $region44: #{tpu_custom_call.1} parent=1 // pred_region
      %2993 = dma.done [#allocation5], 64
    $region45: #{tpu_custom_call.1} parent=1 // pred_fallthru
      _
    %2994 = vsyncpa [#allocation4], 1
    %2995 = vsyncpa [#allocation7], 1
    %2996 = vsyncpa [#allocation5], 1

</llo_original>
